<compile_context>
chip_gen: v7x
topology: tpu7x:2x2x1
jax: 0.10.0
libtpu: 0.0.40
codegen_flags: <defaults>
</compile_context>

<pallas_src>
import functools

import jax
import jax.numpy as jnp
from jax.experimental import pallas as pl
from jax.experimental.pallas import tpu as pltpu

_SUBLANE = 8     # f32 sublane group: batch is padded to a multiple of this
_LANE = 128


def _round_up(v, m):
    return (v + m - 1) // m * m


# ---------------------------------------------------------------------------
# In-kernel building blocks (all values are time-major (T, B, C) in VMEM)
# ---------------------------------------------------------------------------

def _conv_relu_tm(x, w_flat, b, k):
    """'same'-padded Conv1d + ReLU: in-VMEM im2col + ONE bf16 MXU matmul.
    x: (T, B, Cin) f32; w_flat: (k*Cin, Cout) bf16 (rows ordered (tap, cin));
    b: (1, Cout) f32."""
    T, B, Cin = x.shape
    Cout = w_flat.shape[-1]
    pad = k // 2
    zer = jnp.zeros((pad, B, Cin), x.dtype)
    xp = jnp.concatenate([zer, x, zer], axis=0)            # pad on leading dim: no relayout
    # im2col: (T, B, k*Cin); time shifts are leading-dim slices (cheap, untiled axis).
    cols = jnp.concatenate([xp[kk:kk + T] for kk in range(k)], axis=-1)
    acc = jnp.dot(cols.reshape(T * B, k * Cin).astype(jnp.bfloat16), w_flat,
                  preferred_element_type=jnp.float32)
    acc = jnp.maximum(acc + b, 0.0)
    return acc.reshape(T, B, Cout)


def _maxpool2_tm(h):
    """MaxPool1d(kernel=2, stride=2) along leading (time) axis: reshape + one max."""
    T, B, C = h.shape
    h2 = h.reshape(T // 2, 2, B, C)
    return jnp.maximum(h2[:, 0], h2[:, 1])


# ---------------------------------------------------------------------------
# Fused kernel: conv stack + stacked LSTM + FC
# ---------------------------------------------------------------------------

def _fused_kernel(*refs, T, Bb, F, Hp, NCp, num_lstms):
    # refs: x, (conv_w, conv_b)*4, (wih, whh, bias)*num_lstms, fc_w, fc_b,
    #       out, gx_scr, seq_scr
    idx = 0
    x_ref = refs[idx]; idx += 1
    conv = []
    for _ in range(4):
        conv.append((refs[idx], refs[idx + 1])); idx += 2
    lstm = []
    for _ in range(num_lstms):
        lstm.append((refs[idx], refs[idx + 1], refs[idx + 2])); idx += 3
    fcw_ref, fcb_ref = refs[idx], refs[idx + 1]; idx += 2
    out_ref = refs[idx]; idx += 1
    gx_scr, seq_scr = refs[idx], refs[idx + 1]

    Tq = T // 4

    # ---- conv stack (time-major, VMEM resident) ----
    h = x_ref[...]                                              # (T, Bb, F)
    h = _conv_relu_tm(h, conv[0][0][...], conv[0][1][...], 3)   # (T, Bb, 64)
    h = _conv_relu_tm(h, conv[1][0][...], conv[1][1][...], 3)   # (T, Bb, 128)
    h = _maxpool2_tm(h)                                         # (T/2, Bb, 128)
    h = _conv_relu_tm(h, conv[2][0][...], conv[2][1][...], 5)   # (T/2, Bb, 128)
    h = _conv_relu_tm(h, conv[3][0][...], conv[3][1][...], 5)   # (T/2, Bb, 256)
    h = _maxpool2_tm(h)                                         # (Tq, Bb, 256)
    # dropout(0.5): identity (eval mode)

    # ---- stacked LSTM (hoisted input projection + in-kernel recurrence) + FC ----
    xin = h.reshape(Tq * Bb, 256).astype(jnp.bfloat16)
    h_last = jnp.zeros((Bb, Hp), jnp.float32)
    for l in range(num_lstms):
        wih_ref, whh_ref, b_ref = lstm[l]
        if l > 0:
            xin = seq_scr[...].reshape(Tq * Bb, Hp)             # bf16
        whh = whh_ref[...]                                      # (Hp, 4*Hp) bf16
        # Input projection for ALL timesteps at once (off the serial critical path).
        gx = jnp.dot(xin, wih_ref[...], preferred_element_type=jnp.float32) + b_ref[...]
        gx_scr[...] = gx.reshape(Tq, Bb, 4 * Hp).astype(jnp.bfloat16)

        write_seq = (l != num_lstms - 1)

        def step(t, carry, whh=whh, write_seq=write_seq):
            hh, cc = carry                                      # (Bb, Hp) f32
            gates = gx_scr[t].astype(jnp.float32) + jnp.dot(
                hh.astype(jnp.bfloat16), whh, preferred_element_type=jnp.float32)
            # PyTorch gate order: i, f, g, o.  Slices are 128-lane aligned (Hp).
            i = jax.nn.sigmoid(gates[:, 0 * Hp:1 * Hp])
            f = jax.nn.sigmoid(gates[:, 1 * Hp:2 * Hp])
            g = jnp.tanh(gates[:, 2 * Hp:3 * Hp])
            o = jax.nn.sigmoid(gates[:, 3 * Hp:4 * Hp])
            cc = f * cc + i * g
            hh = o * jnp.tanh(cc)
            if write_seq:
                seq_scr[t] = hh.astype(jnp.bfloat16)
            return hh, cc

        h0 = jnp.zeros((Bb, Hp), jnp.float32)
        c0 = jnp.zeros((Bb, Hp), jnp.float32)
        h_last, _ = jax.lax.fori_loop(0, Tq, step, (h0, c0))

    # Final FC on the last hidden state only; lane-dense (Bb, NCp) output.
    out = jnp.dot(h_last.astype(jnp.bfloat16), fcw_ref[...],
                  preferred_element_type=jnp.float32) + fcb_ref[...]
    out_ref[...] = out.astype(out_ref.dtype)


def rul_fused_call(x_tm, weight_args, *, T, F, Hp, NCp, num_lstms, Bb):
    """x_tm: (T, Bp, F) time-major, Bp a multiple of Bb.  weight_args: ordered list
    of preprocessed weights.  Returns (Bp, NCp) f32."""
    Bp = x_tm.shape[1]
    Tq = T // 4
    args = [x_tm] + list(weight_args)

    def _full(a):
        return pl.BlockSpec(a.shape, lambda i, _n=a.ndim: (0,) * _n)

    in_specs = [pl.BlockSpec((T, Bb, F), lambda i: (0, i, 0))]
    in_specs += [_full(a) for a in weight_args]
    out_spec = pl.BlockSpec((Bb, NCp), lambda i: (i, 0))

    # --- VMEM budget: weights + I/O blocks (double-buffered) + scratch + temporaries ---
    w_bytes = sum(int(a.size) * a.dtype.itemsize for a in weight_args)
    io_bytes = Bb * T * F * 4 + Bb * NCp * 4
    scr_bytes = Tq * Bb * (4 * Hp + Hp) * 2                     # bf16 scratch
    tmp_bytes = (4 * T * Bb * (3 * F + 64 + 3 * 64 + 128 + 128)
                 + 4 * (T // 2) * Bb * (5 * 128 + 128 + 5 * 128 + 256 + 256)
                 + 4 * Tq * Bb * (256 + 4 * Hp))
    vmem_bytes = int(min(max(2 * (w_bytes + io_bytes) + scr_bytes + 2 * tmp_bytes
                             + (4 << 20), 16 << 20), 64 << 20))

    flops = (2 * Bp * T * (3 * F * 64 + 3 * 64 * 128)
             + 2 * Bp * (T // 2) * (5 * 128 * 128 + 5 * 128 * 256)
             + 2 * Tq * Bp * 256 * 4 * Hp
             + 2 * (num_lstms - 1) * Tq * Bp * Hp * 4 * Hp
             + 2 * num_lstms * Tq * Bp * Hp * 4 * Hp
             + 2 * Bp * Hp * NCp)
    transcend = num_lstms * Tq * Bp * 5 * Hp
    bytes_acc = int(x_tm.size) * 4 + Bp * NCp * 4 + w_bytes

    kernel = functools.partial(_fused_kernel, T=T, Bb=Bb, F=F, Hp=Hp, NCp=NCp,
                               num_lstms=num_lstms)
    return pl.pallas_call(
        kernel,
        out_shape=jax.ShapeDtypeStruct((Bp, NCp), jnp.float32),
        grid_spec=pltpu.PrefetchScalarGridSpec(
            num_scalar_prefetch=0,
            grid=(Bp // Bb,),
            in_specs=in_specs,
            out_specs=out_spec,
            scratch_shapes=[
                pltpu.VMEM((Tq, Bb, 4 * Hp), jnp.bfloat16),     # hoisted input gates
                pltpu.VMEM((Tq, Bb, Hp), jnp.bfloat16),         # inter-layer hidden seq
            ]),
        compiler_params=pltpu.CompilerParams(
            dimension_semantics=("parallel",),
            vmem_limit_bytes=vmem_bytes),
        cost_estimate=pl.CostEstimate(flops=flops, transcendentals=transcend,
                                      bytes_accessed=bytes_acc),
    )(*args)


# ---------------------------------------------------------------------------
# Parameters (PyTorch layouts), one-time weight prep (cached), forward
# ---------------------------------------------------------------------------

def init_params(key, num_features, hidden, num_lstms, num_classes=1):
    s = 0.05
    p = {}
    keys = iter(jax.random.split(key, 8 + 4 * num_lstms + 2))

    def nrm(shape):
        return s * jax.random.normal(next(keys), shape, jnp.float32)

    p['conv1_w'] = nrm((64, num_features, 3)); p['conv1_b'] = nrm((64,))
    p['conv2_w'] = nrm((128, 64, 3));          p['conv2_b'] = nrm((128,))
    p['conv3_w'] = nrm((128, 128, 5));         p['conv3_b'] = nrm((128,))
    p['conv4_w'] = nrm((256, 128, 5));         p['conv4_b'] = nrm((256,))
    for i in range(num_lstms):
        in_sz = 256 if i == 0 else hidden
        p[f'lstm{i+1}_wih'] = nrm((4 * hidden, in_sz))
        p[f'lstm{i+1}_whh'] = nrm((4 * hidden, hidden))
        p[f'lstm{i+1}_bih'] = nrm((4 * hidden,))
        p[f'lstm{i+1}_bhh'] = nrm((4 * hidden,))
    p['fc_w'] = nrm((num_classes, hidden))
    p['fc_b'] = nrm((num_classes,))
    return p


def _pad_gate_cols(w2d, H, Hp):
    """(R, 4H) -> (R, 4Hp): each gate block at a 128-lane-aligned offset, zero-padded.
    Padded lanes stay exactly zero through the recurrence (i=f=o=0.5, g=0 -> c,h = 0)."""
    R = w2d.shape[0]
    out = jnp.zeros((R, 4 * Hp), w2d.dtype)
    for g in range(4):
        out = out.at[:, g * Hp:g * Hp + H].set(w2d[:, g * H:(g + 1) * H])
    return out


def prepare_params(params, *, hidden, num_lstms, num_classes=1):
    """One-time (out-of-jit) weight preprocessing; cache the result and reuse it for
    every forward call.  Returns (ordered weight list, Hp, NCp)."""
    Hp = _round_up(hidden, _LANE)
    NCp = _round_up(num_classes, _LANE)
    args = []
    for i, k in zip(range(1, 5), (3, 3, 5, 5)):
        w = params[f'conv{i}_w']                                 # (Cout, Cin, k)
        cout, cin, _ = w.shape
        wf = jnp.transpose(w, (2, 1, 0)).reshape(k * cin, cout)  # (k*Cin, Cout)
        args.append(wf.astype(jnp.bfloat16))
        args.append(params[f'conv{i}_b'].reshape(1, -1).astype(jnp.float32))
    for i in range(num_lstms):
        wih_t = params[f'lstm{i+1}_wih'].T                       # (Cin, 4H)
        whh_t = params[f'lstm{i+1}_whh'].T                       # (H, 4H)
        bias = (params[f'lstm{i+1}_bih'] + params[f'lstm{i+1}_bhh']).reshape(1, -1)
        wih_p = _pad_gate_cols(wih_t, hidden, Hp)                # (Cin, 4Hp)
        if i > 0:
            wih_p = jnp.pad(wih_p, ((0, Hp - hidden), (0, 0)))
        whh_p = jnp.pad(_pad_gate_cols(whh_t, hidden, Hp), ((0, Hp - hidden), (0, 0)))
        b_p = _pad_gate_cols(bias, hidden, Hp)                   # (1, 4Hp)
        args.append(wih_p.astype(jnp.bfloat16))
        args.append(whh_p.astype(jnp.bfloat16))
        args.append(b_p.astype(jnp.float32))
    fcw = jnp.zeros((Hp, NCp), jnp.float32).at[:hidden, :num_classes].set(params['fc_w'].T)
    fcb = jnp.zeros((1, NCp), jnp.float32).at[0, :num_classes].set(params['fc_b'])
    args.append(fcw.astype(jnp.bfloat16))
    args.append(fcb)
    return [jnp.asarray(a) for a in args], Hp, NCp


def rul_forward(weight_args, x, *, num_classes, Hp, NCp, num_lstms, Bb=_SUBLANE):
    """x: (B, T, num_features) -- same as the PyTorch module input."""
    B, T, F = x.shape
    assert T % 4 == 0, "two MaxPool1d(2) stages require T divisible by 4"
    Bp = _round_up(max(B, Bb), Bb)
    # Pad batch to a full f32 sublane group and go time-major ONCE, on the tiny raw
    # input (F channels) -- not on the 256-channel conv output.
    x_tm = jnp.transpose(jnp.pad(x, ((0, Bp - B), (0, 0), (0, 0))), (1, 0, 2))
    out = rul_fused_call(x_tm, weight_args, T=T, F=F, Hp=Hp, NCp=NCp,
                         num_lstms=num_lstms, Bb=Bb)
    return out[:B, :num_classes]


if __name__ == "__main__":
    B, T, F = 2, 16, 4
    hidden, num_lstms, num_classes = 32, 2, 1

    key = jax.random.PRNGKey(0)
    pkey, xkey = jax.random.split(key)
    params = init_params(pkey, F, hidden, num_lstms, num_classes)
    # Weight preprocessing hoisted out of the jitted forward; done once and cached.
    weight_args, Hp, NCp = prepare_params(params, hidden=hidden, num_lstms=num_lstms,
                                          num_classes=num_classes)
    x = jax.random.normal(xkey, (B, T, F), jnp.float32)

    fwd = jax.jit(functools.partial(rul_forward, num_classes=num_classes,
                                    Hp=Hp, NCp=NCp, num_lstms=num_lstms))
    out = fwd(weight_args, x)
    jax.block_until_ready(out)
    assert out.shape == (B, num_classes) and out.dtype == jnp.float32
    print("KERNEL_OK")
</pallas_src>

<mosaic_0001>
module attributes {stable_mosaic.version = 11 : i64} {
  func.func @_fused_kernel(%arg0: i32, %arg1: memref<16x8x4xf32, #tpu.memory_space<vmem>>, %arg2: memref<12x64xbf16, #tpu.memory_space<vmem>>, %arg3: memref<1x64xf32, #tpu.memory_space<vmem>>, %arg4: memref<192x128xbf16, #tpu.memory_space<vmem>>, %arg5: memref<1x128xf32, #tpu.memory_space<vmem>>, %arg6: memref<640x128xbf16, #tpu.memory_space<vmem>>, %arg7: memref<1x128xf32, #tpu.memory_space<vmem>>, %arg8: memref<640x256xbf16, #tpu.memory_space<vmem>>, %arg9: memref<1x256xf32, #tpu.memory_space<vmem>>, %arg10: memref<256x512xbf16, #tpu.memory_space<vmem>>, %arg11: memref<128x512xbf16, #tpu.memory_space<vmem>>, %arg12: memref<1x512xf32, #tpu.memory_space<vmem>>, %arg13: memref<128x512xbf16, #tpu.memory_space<vmem>>, %arg14: memref<128x512xbf16, #tpu.memory_space<vmem>>, %arg15: memref<1x512xf32, #tpu.memory_space<vmem>>, %arg16: memref<128x128xbf16, #tpu.memory_space<vmem>>, %arg17: memref<1x128xf32, #tpu.memory_space<vmem>>, %arg18: memref<8x128xf32, #tpu.memory_space<vmem>>, %arg19: memref<4x8x512xbf16, #tpu.memory_space<vmem>>, %arg20: memref<4x8x128xbf16, #tpu.memory_space<vmem>>) attributes {dimension_semantics = [#tpu.dimension_semantics<parallel>], iteration_bounds = array<i64: 1>, scalar_prefetch = 0 : i64, scratch_operands = 2 : i64, tpu.core_type = #tpu.core_type<tc>, window_params = [{transform_indices = @transform_0, window_bounds = array<i64: 16, 8, 4>}, {pipeline_mode = #tpu.pipeline_mode<synchronous>, transform_indices = @transform_1, window_bounds = array<i64: 12, 64>}, {pipeline_mode = #tpu.pipeline_mode<synchronous>, transform_indices = @transform_2, window_bounds = array<i64: 1, 64>}, {pipeline_mode = #tpu.pipeline_mode<synchronous>, transform_indices = @transform_3, window_bounds = array<i64: 192, 128>}, {pipeline_mode = #tpu.pipeline_mode<synchronous>, transform_indices = @transform_4, window_bounds = array<i64: 1, 128>}, {pipeline_mode = #tpu.pipeline_mode<synchronous>, transform_indices = @transform_5, window_bounds = array<i64: 640, 128>}, {pipeline_mode = #tpu.pipeline_mode<synchronous>, transform_indices = @transform_6, window_bounds = array<i64: 1, 128>}, {pipeline_mode = #tpu.pipeline_mode<synchronous>, transform_indices = @transform_7, window_bounds = array<i64: 640, 256>}, {pipeline_mode = #tpu.pipeline_mode<synchronous>, transform_indices = @transform_8, window_bounds = array<i64: 1, 256>}, {pipeline_mode = #tpu.pipeline_mode<synchronous>, transform_indices = @transform_9, window_bounds = array<i64: 256, 512>}, {pipeline_mode = #tpu.pipeline_mode<synchronous>, transform_indices = @transform_10, window_bounds = array<i64: 128, 512>}, {pipeline_mode = #tpu.pipeline_mode<synchronous>, transform_indices = @transform_11, window_bounds = array<i64: 1, 512>}, {pipeline_mode = #tpu.pipeline_mode<synchronous>, transform_indices = @transform_12, window_bounds = array<i64: 128, 512>}, {pipeline_mode = #tpu.pipeline_mode<synchronous>, transform_indices = @transform_13, window_bounds = array<i64: 128, 512>}, {pipeline_mode = #tpu.pipeline_mode<synchronous>, transform_indices = @transform_14, window_bounds = array<i64: 1, 512>}, {pipeline_mode = #tpu.pipeline_mode<synchronous>, transform_indices = @transform_15, window_bounds = array<i64: 128, 128>}, {pipeline_mode = #tpu.pipeline_mode<synchronous>, transform_indices = @transform_16, window_bounds = array<i64: 1, 128>}, {transform_indices = @transform_17, window_bounds = array<i64: 8, 128>}]} {
    %c0 = arith.constant 0 : index
    %c0_0 = arith.constant 0 : index
    %c0_1 = arith.constant 0 : index
    %0 = vector.load %arg1[%c0, %c0_0, %c0_1] : memref<16x8x4xf32, #tpu.memory_space<vmem>>, vector<16x8x4xf32>
    %c0_2 = arith.constant 0 : index
    %c0_3 = arith.constant 0 : index
    %1 = vector.load %arg2[%c0_2, %c0_3] : memref<12x64xbf16, #tpu.memory_space<vmem>>, vector<12x64xbf16>
    %c0_4 = arith.constant 0 : index
    %c0_5 = arith.constant 0 : index
    %2 = vector.load %arg3[%c0_4, %c0_5] : memref<1x64xf32, #tpu.memory_space<vmem>>, vector<1x64xf32>
    %cst = arith.constant 0.000000e+00 : f32
    %3 = vector.broadcast %cst : f32 to vector<1x8x4xf32>
    %4 = tpu.concatenate %3, %0, %3 in 0 : vector<1x8x4xf32>, vector<16x8x4xf32>, vector<1x8x4xf32> -> vector<18x8x4xf32>
    %5 = vector.extract_strided_slice %4 {offsets = [0, 0, 0], sizes = [16, 8, 4], strides = [1, 1, 1]} : vector<18x8x4xf32> to vector<16x8x4xf32>
    %6 = vector.extract_strided_slice %4 {offsets = [1, 0, 0], sizes = [16, 8, 4], strides = [1, 1, 1]} : vector<18x8x4xf32> to vector<16x8x4xf32>
    %7 = vector.extract_strided_slice %4 {offsets = [2, 0, 0], sizes = [16, 8, 4], strides = [1, 1, 1]} : vector<18x8x4xf32> to vector<16x8x4xf32>
    %8 = tpu.concatenate %5, %6, %7 in 2 : vector<16x8x4xf32>, vector<16x8x4xf32>, vector<16x8x4xf32> -> vector<16x8x12xf32>
    %9 = vector.shape_cast %8 : vector<16x8x12xf32> to vector<128x12xf32>
    %10 = arith.truncf %9 : vector<128x12xf32> to vector<128x12xbf16>
    %cst_6 = arith.constant dense<0.000000e+00> : vector<128x64xf32>
    %11 = tpu.matmul %10, %1, %cst_6 {dimension_numbers = #tpu.dot_dimension_numbers<[1], [0], [0], [1], [0, 0, 1, 1], [], []>} : vector<128x12xbf16>, vector<12x64xbf16>, vector<128x64xf32> -> vector<128x64xf32>
    %12 = vector.broadcast %2 : vector<1x64xf32> to vector<128x64xf32>
    %13 = arith.addf %11, %12 : vector<128x64xf32>
    %cst_7 = arith.constant 0.000000e+00 : f32
    %14 = vector.broadcast %cst_7 : f32 to vector<128x64xf32>
    %15 = arith.maximumf %13, %14 : vector<128x64xf32>
    %16 = vector.shape_cast %15 : vector<128x64xf32> to vector<16x8x64xf32>
    %c0_8 = arith.constant 0 : index
    %c0_9 = arith.constant 0 : index
    %17 = vector.load %arg4[%c0_8, %c0_9] : memref<192x128xbf16, #tpu.memory_space<vmem>>, vector<192x128xbf16>
    %c0_10 = arith.constant 0 : index
    %c0_11 = arith.constant 0 : index
    %18 = vector.load %arg5[%c0_10, %c0_11] : memref<1x128xf32, #tpu.memory_space<vmem>>, vector<1x128xf32>
    %cst_12 = arith.constant 0.000000e+00 : f32
    %19 = vector.broadcast %cst_12 : f32 to vector<1x8x64xf32>
    %20 = tpu.concatenate %19, %16, %19 in 0 : vector<1x8x64xf32>, vector<16x8x64xf32>, vector<1x8x64xf32> -> vector<18x8x64xf32>
    %21 = vector.extract_strided_slice %20 {offsets = [0, 0, 0], sizes = [16, 8, 64], strides = [1, 1, 1]} : vector<18x8x64xf32> to vector<16x8x64xf32>
    %22 = vector.extract_strided_slice %20 {offsets = [1, 0, 0], sizes = [16, 8, 64], strides = [1, 1, 1]} : vector<18x8x64xf32> to vector<16x8x64xf32>
    %23 = vector.extract_strided_slice %20 {offsets = [2, 0, 0], sizes = [16, 8, 64], strides = [1, 1, 1]} : vector<18x8x64xf32> to vector<16x8x64xf32>
    %24 = tpu.concatenate %21, %22, %23 in 2 : vector<16x8x64xf32>, vector<16x8x64xf32>, vector<16x8x64xf32> -> vector<16x8x192xf32>
    %25 = vector.shape_cast %24 : vector<16x8x192xf32> to vector<128x192xf32>
    %26 = arith.truncf %25 : vector<128x192xf32> to vector<128x192xbf16>
    %cst_13 = arith.constant dense<0.000000e+00> : vector<128x128xf32>
    %27 = tpu.matmul %26, %17, %cst_13 {dimension_numbers = #tpu.dot_dimension_numbers<[1], [0], [0], [1], [0, 0, 1, 1], [], []>} : vector<128x192xbf16>, vector<192x128xbf16>, vector<128x128xf32> -> vector<128x128xf32>
    %28 = vector.broadcast %18 : vector<1x128xf32> to vector<128x128xf32>
    %29 = arith.addf %27, %28 : vector<128x128xf32>
    %cst_14 = arith.constant 0.000000e+00 : f32
    %30 = vector.broadcast %cst_14 : f32 to vector<128x128xf32>
    %31 = arith.maximumf %29, %30 : vector<128x128xf32>
    %32 = vector.shape_cast %31 : vector<128x128xf32> to vector<16x8x128xf32>
    %33 = vector.shape_cast %32 : vector<16x8x128xf32> to vector<8x2x8x128xf32>
    %34 = vector.extract_strided_slice %33 {offsets = [0, 0, 0, 0], sizes = [8, 1, 8, 128], strides = [1, 1, 1, 1]} : vector<8x2x8x128xf32> to vector<8x1x8x128xf32>
    %35 = vector.shape_cast %34 : vector<8x1x8x128xf32> to vector<8x8x128xf32>
    %36 = vector.extract_strided_slice %33 {offsets = [0, 1, 0, 0], sizes = [8, 1, 8, 128], strides = [1, 1, 1, 1]} : vector<8x2x8x128xf32> to vector<8x1x8x128xf32>
    %37 = vector.shape_cast %36 : vector<8x1x8x128xf32> to vector<8x8x128xf32>
    %38 = arith.maximumf %35, %37 : vector<8x8x128xf32>
    %c0_15 = arith.constant 0 : index
    %c0_16 = arith.constant 0 : index
    %39 = vector.load %arg6[%c0_15, %c0_16] : memref<640x128xbf16, #tpu.memory_space<vmem>>, vector<640x128xbf16>
    %c0_17 = arith.constant 0 : index
    %c0_18 = arith.constant 0 : index
    %40 = vector.load %arg7[%c0_17, %c0_18] : memref<1x128xf32, #tpu.memory_space<vmem>>, vector<1x128xf32>
    %cst_19 = arith.constant 0.000000e+00 : f32
    %41 = vector.broadcast %cst_19 : f32 to vector<2x8x128xf32>
    %42 = tpu.concatenate %41, %38, %41 in 0 : vector<2x8x128xf32>, vector<8x8x128xf32>, vector<2x8x128xf32> -> vector<12x8x128xf32>
    %43 = vector.extract_strided_slice %42 {offsets = [0, 0, 0], sizes = [8, 8, 128], strides = [1, 1, 1]} : vector<12x8x128xf32> to vector<8x8x128xf32>
    %44 = vector.extract_strided_slice %42 {offsets = [1, 0, 0], sizes = [8, 8, 128], strides = [1, 1, 1]} : vector<12x8x128xf32> to vector<8x8x128xf32>
    %45 = vector.extract_strided_slice %42 {offsets = [2, 0, 0], sizes = [8, 8, 128], strides = [1, 1, 1]} : vector<12x8x128xf32> to vector<8x8x128xf32>
    %46 = vector.extract_strided_slice %42 {offsets = [3, 0, 0], sizes = [8, 8, 128], strides = [1, 1, 1]} : vector<12x8x128xf32> to vector<8x8x128xf32>
    %47 = vector.extract_strided_slice %42 {offsets = [4, 0, 0], sizes = [8, 8, 128], strides = [1, 1, 1]} : vector<12x8x128xf32> to vector<8x8x128xf32>
    %48 = tpu.concatenate %43, %44, %45, %46, %47 in 2 : vector<8x8x128xf32>, vector<8x8x128xf32>, vector<8x8x128xf32>, vector<8x8x128xf32>, vector<8x8x128xf32> -> vector<8x8x640xf32>
    %49 = vector.shape_cast %48 : vector<8x8x640xf32> to vector<64x640xf32>
    %50 = arith.truncf %49 : vector<64x640xf32> to vector<64x640xbf16>
    %cst_20 = arith.constant dense<0.000000e+00> : vector<64x128xf32>
    %51 = tpu.matmul %50, %39, %cst_20 {dimension_numbers = #tpu.dot_dimension_numbers<[1], [0], [0], [1], [0, 0, 1, 1], [], []>} : vector<64x640xbf16>, vector<640x128xbf16>, vector<64x128xf32> -> vector<64x128xf32>
    %52 = vector.broadcast %40 : vector<1x128xf32> to vector<64x128xf32>
    %53 = arith.addf %51, %52 : vector<64x128xf32>
    %cst_21 = arith.constant 0.000000e+00 : f32
    %54 = vector.broadcast %cst_21 : f32 to vector<64x128xf32>
    %55 = arith.maximumf %53, %54 : vector<64x128xf32>
    %56 = vector.shape_cast %55 : vector<64x128xf32> to vector<8x8x128xf32>
    %c0_22 = arith.constant 0 : index
    %c0_23 = arith.constant 0 : index
    %57 = vector.load %arg8[%c0_22, %c0_23] : memref<640x256xbf16, #tpu.memory_space<vmem>>, vector<640x256xbf16>
    %c0_24 = arith.constant 0 : index
    %c0_25 = arith.constant 0 : index
    %58 = vector.load %arg9[%c0_24, %c0_25] : memref<1x256xf32, #tpu.memory_space<vmem>>, vector<1x256xf32>
    %cst_26 = arith.constant 0.000000e+00 : f32
    %59 = vector.broadcast %cst_26 : f32 to vector<2x8x128xf32>
    %60 = tpu.concatenate %59, %56, %59 in 0 : vector<2x8x128xf32>, vector<8x8x128xf32>, vector<2x8x128xf32> -> vector<12x8x128xf32>
    %61 = vector.extract_strided_slice %60 {offsets = [0, 0, 0], sizes = [8, 8, 128], strides = [1, 1, 1]} : vector<12x8x128xf32> to vector<8x8x128xf32>
    %62 = vector.extract_strided_slice %60 {offsets = [1, 0, 0], sizes = [8, 8, 128], strides = [1, 1, 1]} : vector<12x8x128xf32> to vector<8x8x128xf32>
    %63 = vector.extract_strided_slice %60 {offsets = [2, 0, 0], sizes = [8, 8, 128], strides = [1, 1, 1]} : vector<12x8x128xf32> to vector<8x8x128xf32>
    %64 = vector.extract_strided_slice %60 {offsets = [3, 0, 0], sizes = [8, 8, 128], strides = [1, 1, 1]} : vector<12x8x128xf32> to vector<8x8x128xf32>
    %65 = vector.extract_strided_slice %60 {offsets = [4, 0, 0], sizes = [8, 8, 128], strides = [1, 1, 1]} : vector<12x8x128xf32> to vector<8x8x128xf32>
    %66 = tpu.concatenate %61, %62, %63, %64, %65 in 2 : vector<8x8x128xf32>, vector<8x8x128xf32>, vector<8x8x128xf32>, vector<8x8x128xf32>, vector<8x8x128xf32> -> vector<8x8x640xf32>
    %67 = vector.shape_cast %66 : vector<8x8x640xf32> to vector<64x640xf32>
    %68 = arith.truncf %67 : vector<64x640xf32> to vector<64x640xbf16>
    %cst_27 = arith.constant dense<0.000000e+00> : vector<64x256xf32>
    %69 = tpu.matmul %68, %57, %cst_27 {dimension_numbers = #tpu.dot_dimension_numbers<[1], [0], [0], [1], [0, 0, 1, 1], [], []>} : vector<64x640xbf16>, vector<640x256xbf16>, vector<64x256xf32> -> vector<64x256xf32>
    %70 = vector.broadcast %58 : vector<1x256xf32> to vector<64x256xf32>
    %71 = arith.addf %69, %70 : vector<64x256xf32>
    %cst_28 = arith.constant 0.000000e+00 : f32
    %72 = vector.broadcast %cst_28 : f32 to vector<64x256xf32>
    %73 = arith.maximumf %71, %72 : vector<64x256xf32>
    %74 = vector.shape_cast %73 : vector<64x256xf32> to vector<8x8x256xf32>
    %75 = vector.shape_cast %74 : vector<8x8x256xf32> to vector<4x2x8x256xf32>
    %76 = vector.extract_strided_slice %75 {offsets = [0, 0, 0, 0], sizes = [4, 1, 8, 256], strides = [1, 1, 1, 1]} : vector<4x2x8x256xf32> to vector<4x1x8x256xf32>
    %77 = vector.shape_cast %76 : vector<4x1x8x256xf32> to vector<4x8x256xf32>
    %78 = vector.extract_strided_slice %75 {offsets = [0, 1, 0, 0], sizes = [4, 1, 8, 256], strides = [1, 1, 1, 1]} : vector<4x2x8x256xf32> to vector<4x1x8x256xf32>
    %79 = vector.shape_cast %78 : vector<4x1x8x256xf32> to vector<4x8x256xf32>
    %80 = arith.maximumf %77, %79 : vector<4x8x256xf32>
    %81 = vector.shape_cast %80 : vector<4x8x256xf32> to vector<32x256xf32>
    %82 = arith.truncf %81 : vector<32x256xf32> to vector<32x256xbf16>
    %c0_29 = arith.constant 0 : index
    %c0_30 = arith.constant 0 : index
    %83 = vector.load %arg11[%c0_29, %c0_30] : memref<128x512xbf16, #tpu.memory_space<vmem>>, vector<128x512xbf16>
    %c0_31 = arith.constant 0 : index
    %c0_32 = arith.constant 0 : index
    %84 = vector.load %arg10[%c0_31, %c0_32] : memref<256x512xbf16, #tpu.memory_space<vmem>>, vector<256x512xbf16>
    %cst_33 = arith.constant dense<0.000000e+00> : vector<32x512xf32>
    %85 = tpu.matmul %82, %84, %cst_33 {dimension_numbers = #tpu.dot_dimension_numbers<[1], [0], [0], [1], [0, 0, 1, 1], [], []>} : vector<32x256xbf16>, vector<256x512xbf16>, vector<32x512xf32> -> vector<32x512xf32>
    %c0_34 = arith.constant 0 : index
    %c0_35 = arith.constant 0 : index
    %86 = vector.load %arg12[%c0_34, %c0_35] : memref<1x512xf32, #tpu.memory_space<vmem>>, vector<1x512xf32>
    %87 = vector.broadcast %86 : vector<1x512xf32> to vector<32x512xf32>
    %88 = arith.addf %85, %87 : vector<32x512xf32>
    %89 = vector.shape_cast %88 : vector<32x512xf32> to vector<4x8x512xf32>
    %90 = arith.truncf %89 : vector<4x8x512xf32> to vector<4x8x512xbf16>
    %c0_36 = arith.constant 0 : index
    %c0_37 = arith.constant 0 : index
    %c0_38 = arith.constant 0 : index
    %91 = vector.load %arg19[%c0_36, %c0_37, %c0_38] : memref<4x8x512xbf16, #tpu.memory_space<vmem>>, vector<4x8x512xbf16>
    tpu.vector_store %arg19[%c0_36, %c0_37, %c0_38], %90 {strides = array<i32>} : memref<4x8x512xbf16, #tpu.memory_space<vmem>>, vector<4x8x512xbf16>,
    %cst_39 = arith.constant 0.000000e+00 : f32
    %92 = vector.broadcast %cst_39 : f32 to vector<8x128xf32>
    %cst_40 = arith.constant 0.000000e+00 : f32
    %93 = vector.broadcast %cst_40 : f32 to vector<8x128xf32>
    %c0_i32 = arith.constant 0 : i32
    %c4_i32 = arith.constant 4 : i32
    %94 = arith.addi %c0_i32, %c4_i32 : i32
    %c1_i32 = arith.constant 1 : i32
    %95:2 = scf.for %arg21 = %c0_i32 to %94 step %c1_i32 iter_args(%arg22 = %92, %arg23 = %93) -> (vector<8x128xf32>, vector<8x128xf32>)  : i32 {
      %118 = arith.index_cast %arg21 : i32 to index
      %c0_68 = arith.constant 0 : index
      %c0_69 = arith.constant 0 : index
      %119 = vector.load %arg19[%118, %c0_68, %c0_69] : memref<4x8x512xbf16, #tpu.memory_space<vmem>>, vector<1x8x512xbf16>
      %120 = vector.shape_cast %119 : vector<1x8x512xbf16> to vector<8x512xbf16>
      %121 = arith.extf %120 : vector<8x512xbf16> to vector<8x512xf32>
      %122 = arith.truncf %arg22 : vector<8x128xf32> to vector<8x128xbf16>
      %cst_70 = arith.constant dense<0.000000e+00> : vector<8x512xf32>
      %123 = tpu.matmul %122, %83, %cst_70 {dimension_numbers = #tpu.dot_dimension_numbers<[1], [0], [0], [1], [0, 0, 1, 1], [], []>} : vector<8x128xbf16>, vector<128x512xbf16>, vector<8x512xf32> -> vector<8x512xf32>
      %124 = arith.addf %121, %123 : vector<8x512xf32>
      %125 = vector.extract_strided_slice %124 {offsets = [0, 0], sizes = [8, 128], strides = [1, 1]} : vector<8x512xf32> to vector<8x128xf32>
      %126 = arith.negf %125 : vector<8x128xf32>
      %127 = math.exp %126 : vector<8x128xf32>
      %cst_71 = arith.constant 1.000000e+00 : f32
      %128 = vector.broadcast %cst_71 : f32 to vector<8x128xf32>
      %129 = arith.addf %128, %127 : vector<8x128xf32>
      %130 = arith.divf %128, %129 : vector<8x128xf32>
      %131 = vector.extract_strided_slice %124 {offsets = [0, 128], sizes = [8, 128], strides = [1, 1]} : vector<8x512xf32> to vector<8x128xf32>
      %132 = arith.negf %131 : vector<8x128xf32>
      %133 = math.exp %132 : vector<8x128xf32>
      %cst_72 = arith.constant 1.000000e+00 : f32
      %134 = vector.broadcast %cst_72 : f32 to vector<8x128xf32>
      %135 = arith.addf %134, %133 : vector<8x128xf32>
      %136 = arith.divf %134, %135 : vector<8x128xf32>
      %137 = vector.extract_strided_slice %124 {offsets = [0, 256], sizes = [8, 128], strides = [1, 1]} : vector<8x512xf32> to vector<8x128xf32>
      %138 = math.tanh %137 : vector<8x128xf32>
      %139 = vector.extract_strided_slice %124 {offsets = [0, 384], sizes = [8, 128], strides = [1, 1]} : vector<8x512xf32> to vector<8x128xf32>
      %140 = arith.negf %139 : vector<8x128xf32>
      %141 = math.exp %140 : vector<8x128xf32>
      %cst_73 = arith.constant 1.000000e+00 : f32
      %142 = vector.broadcast %cst_73 : f32 to vector<8x128xf32>
      %143 = arith.addf %142, %141 : vector<8x128xf32>
      %144 = arith.divf %142, %143 : vector<8x128xf32>
      %145 = arith.mulf %136, %arg23 : vector<8x128xf32>
      %146 = arith.mulf %130, %138 : vector<8x128xf32>
      %147 = arith.addf %145, %146 : vector<8x128xf32>
      %148 = math.tanh %147 : vector<8x128xf32>
      %149 = arith.mulf %144, %148 : vector<8x128xf32>
      %150 = arith.truncf %149 : vector<8x128xf32> to vector<8x128xbf16>
      %151 = arith.index_cast %arg21 : i32 to index
      %c0_74 = arith.constant 0 : index
      %c0_75 = arith.constant 0 : index
      %152 = vector.load %arg20[%151, %c0_74, %c0_75] : memref<4x8x128xbf16, #tpu.memory_space<vmem>>, vector<1x8x128xbf16>
      %153 = vector.shape_cast %152 : vector<1x8x128xbf16> to vector<8x128xbf16>
      %154 = vector.shape_cast %150 : vector<8x128xbf16> to vector<1x8x128xbf16>
      tpu.vector_store %arg20[%151, %c0_74, %c0_75], %154 {strides = array<i32>} : memref<4x8x128xbf16, #tpu.memory_space<vmem>>, vector<1x8x128xbf16>,
      scf.yield %149, %147 : vector<8x128xf32>, vector<8x128xf32>
    }
    %c4_i32_41 = arith.constant 4 : i32
    %c0_42 = arith.constant 0 : index
    %c0_43 = arith.constant 0 : index
    %c0_44 = arith.constant 0 : index
    %96 = vector.load %arg20[%c0_42, %c0_43, %c0_44] : memref<4x8x128xbf16, #tpu.memory_space<vmem>>, vector<4x8x128xbf16>
    %97 = vector.shape_cast %96 : vector<4x8x128xbf16> to vector<32x128xbf16>
    %c0_45 = arith.constant 0 : index
    %c0_46 = arith.constant 0 : index
    %98 = vector.load %arg14[%c0_45, %c0_46] : memref<128x512xbf16, #tpu.memory_space<vmem>>, vector<128x512xbf16>
    %c0_47 = arith.constant 0 : index
    %c0_48 = arith.constant 0 : index
    %99 = vector.load %arg13[%c0_47, %c0_48] : memref<128x512xbf16, #tpu.memory_space<vmem>>, vector<128x512xbf16>
    %cst_49 = arith.constant dense<0.000000e+00> : vector<32x512xf32>
    %100 = tpu.matmul %97, %99, %cst_49 {dimension_numbers = #tpu.dot_dimension_numbers<[1], [0], [0], [1], [0, 0, 1, 1], [], []>} : vector<32x128xbf16>, vector<128x512xbf16>, vector<32x512xf32> -> vector<32x512xf32>
    %c0_50 = arith.constant 0 : index
    %c0_51 = arith.constant 0 : index
    %101 = vector.load %arg15[%c0_50, %c0_51] : memref<1x512xf32, #tpu.memory_space<vmem>>, vector<1x512xf32>
    %102 = vector.broadcast %101 : vector<1x512xf32> to vector<32x512xf32>
    %103 = arith.addf %100, %102 : vector<32x512xf32>
    %104 = vector.shape_cast %103 : vector<32x512xf32> to vector<4x8x512xf32>
    %105 = arith.truncf %104 : vector<4x8x512xf32> to vector<4x8x512xbf16>
    %c0_52 = arith.constant 0 : index
    %c0_53 = arith.constant 0 : index
    %c0_54 = arith.constant 0 : index
    %106 = vector.load %arg19[%c0_52, %c0_53, %c0_54] : memref<4x8x512xbf16, #tpu.memory_space<vmem>>, vector<4x8x512xbf16>
    tpu.vector_store %arg19[%c0_52, %c0_53, %c0_54], %105 {strides = array<i32>} : memref<4x8x512xbf16, #tpu.memory_space<vmem>>, vector<4x8x512xbf16>,
    %cst_55 = arith.constant 0.000000e+00 : f32
    %107 = vector.broadcast %cst_55 : f32 to vector<8x128xf32>
    %cst_56 = arith.constant 0.000000e+00 : f32
    %108 = vector.broadcast %cst_56 : f32 to vector<8x128xf32>
    %c0_i32_57 = arith.constant 0 : i32
    %c4_i32_58 = arith.constant 4 : i32
    %109 = arith.addi %c0_i32_57, %c4_i32_58 : i32
    %c1_i32_59 = arith.constant 1 : i32
    %110:2 = scf.for %arg21 = %c0_i32_57 to %109 step %c1_i32_59 iter_args(%arg22 = %107, %arg23 = %108) -> (vector<8x128xf32>, vector<8x128xf32>)  : i32 {
      %118 = arith.index_cast %arg21 : i32 to index
      %c0_68 = arith.constant 0 : index
      %c0_69 = arith.constant 0 : index
      %119 = vector.load %arg19[%118, %c0_68, %c0_69] : memref<4x8x512xbf16, #tpu.memory_space<vmem>>, vector<1x8x512xbf16>
      %120 = vector.shape_cast %119 : vector<1x8x512xbf16> to vector<8x512xbf16>
      %121 = arith.extf %120 : vector<8x512xbf16> to vector<8x512xf32>
      %122 = arith.truncf %arg22 : vector<8x128xf32> to vector<8x128xbf16>
      %cst_70 = arith.constant dense<0.000000e+00> : vector<8x512xf32>
      %123 = tpu.matmul %122, %98, %cst_70 {dimension_numbers = #tpu.dot_dimension_numbers<[1], [0], [0], [1], [0, 0, 1, 1], [], []>} : vector<8x128xbf16>, vector<128x512xbf16>, vector<8x512xf32> -> vector<8x512xf32>
      %124 = arith.addf %121, %123 : vector<8x512xf32>
      %125 = vector.extract_strided_slice %124 {offsets = [0, 0], sizes = [8, 128], strides = [1, 1]} : vector<8x512xf32> to vector<8x128xf32>
      %126 = arith.negf %125 : vector<8x128xf32>
      %127 = math.exp %126 : vector<8x128xf32>
      %cst_71 = arith.constant 1.000000e+00 : f32
      %128 = vector.broadcast %cst_71 : f32 to vector<8x128xf32>
      %129 = arith.addf %128, %127 : vector<8x128xf32>
      %130 = arith.divf %128, %129 : vector<8x128xf32>
      %131 = vector.extract_strided_slice %124 {offsets = [0, 128], sizes = [8, 128], strides = [1, 1]} : vector<8x512xf32> to vector<8x128xf32>
      %132 = arith.negf %131 : vector<8x128xf32>
      %133 = math.exp %132 : vector<8x128xf32>
      %cst_72 = arith.constant 1.000000e+00 : f32
      %134 = vector.broadcast %cst_72 : f32 to vector<8x128xf32>
      %135 = arith.addf %134, %133 : vector<8x128xf32>
      %136 = arith.divf %134, %135 : vector<8x128xf32>
      %137 = vector.extract_strided_slice %124 {offsets = [0, 256], sizes = [8, 128], strides = [1, 1]} : vector<8x512xf32> to vector<8x128xf32>
      %138 = math.tanh %137 : vector<8x128xf32>
      %139 = vector.extract_strided_slice %124 {offsets = [0, 384], sizes = [8, 128], strides = [1, 1]} : vector<8x512xf32> to vector<8x128xf32>
      %140 = arith.negf %139 : vector<8x128xf32>
      %141 = math.exp %140 : vector<8x128xf32>
      %cst_73 = arith.constant 1.000000e+00 : f32
      %142 = vector.broadcast %cst_73 : f32 to vector<8x128xf32>
      %143 = arith.addf %142, %141 : vector<8x128xf32>
      %144 = arith.divf %142, %143 : vector<8x128xf32>
      %145 = arith.mulf %136, %arg23 : vector<8x128xf32>
      %146 = arith.mulf %130, %138 : vector<8x128xf32>
      %147 = arith.addf %145, %146 : vector<8x128xf32>
      %148 = math.tanh %147 : vector<8x128xf32>
      %149 = arith.mulf %144, %148 : vector<8x128xf32>
      scf.yield %149, %147 : vector<8x128xf32>, vector<8x128xf32>
    }
    %c4_i32_60 = arith.constant 4 : i32
    %111 = arith.truncf %110#0 : vector<8x128xf32> to vector<8x128xbf16>
    %c0_61 = arith.constant 0 : index
    %c0_62 = arith.constant 0 : index
    %112 = vector.load %arg16[%c0_61, %c0_62] : memref<128x128xbf16, #tpu.memory_space<vmem>>, vector<128x128xbf16>
    %cst_63 = arith.constant dense<0.000000e+00> : vector<8x128xf32>
    %113 = tpu.matmul %111, %112, %cst_63 {dimension_numbers = #tpu.dot_dimension_numbers<[1], [0], [0], [1], [0, 0, 1, 1], [], []>} : vector<8x128xbf16>, vector<128x128xbf16>, vector<8x128xf32> -> vector<8x128xf32>
    %c0_64 = arith.constant 0 : index
    %c0_65 = arith.constant 0 : index
    %114 = vector.load %arg17[%c0_64, %c0_65] : memref<1x128xf32, #tpu.memory_space<vmem>>, vector<1x128xf32>
    %115 = vector.broadcast %114 : vector<1x128xf32> to vector<8x128xf32>
    %116 = arith.addf %113, %115 : vector<8x128xf32>
    %c0_66 = arith.constant 0 : index
    %c0_67 = arith.constant 0 : index
    %117 = vector.load %arg18[%c0_66, %c0_67] : memref<8x128xf32, #tpu.memory_space<vmem>>, vector<8x128xf32>
    tpu.vector_store %arg18[%c0_66, %c0_67], %116 {strides = array<i32>} : memref<8x128xf32, #tpu.memory_space<vmem>>, vector<8x128xf32>,
    return
  }
  func.func @transform_0(%arg0: i32) -> (i32, i32, i32) {
    %c0_i32 = arith.constant 0 : i32
    %c0_i32_0 = arith.constant 0 : i32
    %c0_i32_1 = arith.constant 0 : i32
    return %c0_i32, %arg0, %c0_i32_0 : i32, i32, i32
  }
  func.func @transform_1(%arg0: i32) -> (i32, i32) {
    %c0_i32 = arith.constant 0 : i32
    %c0_i32_0 = arith.constant 0 : i32
    %c0_i32_1 = arith.constant 0 : i32
    return %c0_i32, %c0_i32_0 : i32, i32
  }
  func.func @transform_2(%arg0: i32) -> (i32, i32) {
    %c0_i32 = arith.constant 0 : i32
    %c0_i32_0 = arith.constant 0 : i32
    %c0_i32_1 = arith.constant 0 : i32
    return %c0_i32, %c0_i32_0 : i32, i32
  }
  func.func @transform_3(%arg0: i32) -> (i32, i32) {
    %c0_i32 = arith.constant 0 : i32
    %c0_i32_0 = arith.constant 0 : i32
    %c0_i32_1 = arith.constant 0 : i32
    return %c0_i32, %c0_i32_0 : i32, i32
  }
  func.func @transform_4(%arg0: i32) -> (i32, i32) {
    %c0_i32 = arith.constant 0 : i32
    %c0_i32_0 = arith.constant 0 : i32
    %c0_i32_1 = arith.constant 0 : i32
    return %c0_i32, %c0_i32_0 : i32, i32
  }
  func.func @transform_5(%arg0: i32) -> (i32, i32) {
    %c0_i32 = arith.constant 0 : i32
    %c0_i32_0 = arith.constant 0 : i32
    %c0_i32_1 = arith.constant 0 : i32
    return %c0_i32, %c0_i32_0 : i32, i32
  }
  func.func @transform_6(%arg0: i32) -> (i32, i32) {
    %c0_i32 = arith.constant 0 : i32
    %c0_i32_0 = arith.constant 0 : i32
    %c0_i32_1 = arith.constant 0 : i32
    return %c0_i32, %c0_i32_0 : i32, i32
  }
  func.func @transform_7(%arg0: i32) -> (i32, i32) {
    %c0_i32 = arith.constant 0 : i32
    %c0_i32_0 = arith.constant 0 : i32
    %c0_i32_1 = arith.constant 0 : i32
    return %c0_i32, %c0_i32_0 : i32, i32
  }
  func.func @transform_8(%arg0: i32) -> (i32, i32) {
    %c0_i32 = arith.constant 0 : i32
    %c0_i32_0 = arith.constant 0 : i32
    %c0_i32_1 = arith.constant 0 : i32
    return %c0_i32, %c0_i32_0 : i32, i32
  }
  func.func @transform_9(%arg0: i32) -> (i32, i32) {
    %c0_i32 = arith.constant 0 : i32
    %c0_i32_0 = arith.constant 0 : i32
    %c0_i32_1 = arith.constant 0 : i32
    return %c0_i32, %c0_i32_0 : i32, i32
  }
  func.func @transform_10(%arg0: i32) -> (i32, i32) {
    %c0_i32 = arith.constant 0 : i32
    %c0_i32_0 = arith.constant 0 : i32
    %c0_i32_1 = arith.constant 0 : i32
    return %c0_i32, %c0_i32_0 : i32, i32
  }
  func.func @transform_11(%arg0: i32) -> (i32, i32) {
    %c0_i32 = arith.constant 0 : i32
    %c0_i32_0 = arith.constant 0 : i32
    %c0_i32_1 = arith.constant 0 : i32
    return %c0_i32, %c0_i32_0 : i32, i32
  }
  func.func @transform_12(%arg0: i32) -> (i32, i32) {
    %c0_i32 = arith.constant 0 : i32
    %c0_i32_0 = arith.constant 0 : i32
    %c0_i32_1 = arith.constant 0 : i32
    return %c0_i32, %c0_i32_0 : i32, i32
  }
  func.func @transform_13(%arg0: i32) -> (i32, i32) {
    %c0_i32 = arith.constant 0 : i32
    %c0_i32_0 = arith.constant 0 : i32
    %c0_i32_1 = arith.constant 0 : i32
    return %c0_i32, %c0_i32_0 : i32, i32
  }
  func.func @transform_14(%arg0: i32) -> (i32, i32) {
    %c0_i32 = arith.constant 0 : i32
    %c0_i32_0 = arith.constant 0 : i32
    %c0_i32_1 = arith.constant 0 : i32
    return %c0_i32, %c0_i32_0 : i32, i32
  }
  func.func @transform_15(%arg0: i32) -> (i32, i32) {
    %c0_i32 = arith.constant 0 : i32
    %c0_i32_0 = arith.constant 0 : i32
    %c0_i32_1 = arith.constant 0 : i32
    return %c0_i32, %c0_i32_0 : i32, i32
  }
  func.func @transform_16(%arg0: i32) -> (i32, i32) {
    %c0_i32 = arith.constant 0 : i32
    %c0_i32_0 = arith.constant 0 : i32
    %c0_i32_1 = arith.constant 0 : i32
    return %c0_i32, %c0_i32_0 : i32, i32
  }
  func.func @transform_17(%arg0: i32) -> (i32, i32) {
    %c0_i32 = arith.constant 0 : i32
    %c0_i32_0 = arith.constant 0 : i32
    return %arg0, %c0_i32 : i32, i32
  }
}

</mosaic_0001>

<llo_original>
// kernel: rul_forward.1
$region0: #{rul_forward.1}
  #allocation0 [shape = 'u32[]', space=smem, size = 0x4, offset = 0x4, fixed_abs, tag = 'smem constant byte address 0x4 - core index']
  #allocation1 [shape = 'u32[144,128]{1,0:T(1,128)}', space=vmem, size = 0x12000, scoped, tag = 'internal scratch']
  #allocation2 [shape = 'bf16[4,8,512]{2,1,0:T(8,128)(2,1)}', space=vmem, size = 0x8000, scoped, tag = 'scratch operand']
  #allocation3 [shape = 'bf16[4,8,128]{2,1,0:T(8,128)(2,1)}', space=vmem, size = 0x2000, scoped, tag = 'scratch operand']
  %s0 = inlined_call_operand.vmem [shape: f32[16,8,4], index: 0, kind: input, shape index: {}]
  %s1 = inlined_call_operand.vmem [shape: bf16[12,64], index: 1, kind: input, shape index: {}]
  %s2 = inlined_call_operand.vmem [shape: f32[1,64], index: 2, kind: input, shape index: {}]
  %s3 = inlined_call_operand.vmem [shape: bf16[192,128], index: 3, kind: input, shape index: {}]
  %s4 = inlined_call_operand.vmem [shape: f32[1,128], index: 4, kind: input, shape index: {}]
  %s5 = inlined_call_operand.hbm [shape: bf16[640,128], index: 5, kind: input, shape index: {}]
  %s6 = inlined_call_operand.vmem [shape: f32[1,128], index: 6, kind: input, shape index: {}]
  %s7 = inlined_call_operand.hbm [shape: bf16[640,256], index: 7, kind: input, shape index: {}]
  %s8 = inlined_call_operand.vmem [shape: f32[1,256], index: 8, kind: input, shape index: {}]
  %s9 = inlined_call_operand.hbm [shape: bf16[256,512], index: 9, kind: input, shape index: {}]
  %s10 = inlined_call_operand.hbm [shape: bf16[128,512], index: 10, kind: input, shape index: {}]
  %s11 = inlined_call_operand.vmem [shape: f32[1,512], index: 11, kind: input, shape index: {}]
  %s12 = inlined_call_operand.hbm [shape: bf16[128,512], index: 12, kind: input, shape index: {}]
  %s13 = inlined_call_operand.hbm [shape: bf16[128,512], index: 13, kind: input, shape index: {}]
  %s14 = inlined_call_operand.vmem [shape: f32[1,512], index: 14, kind: input, shape index: {}]
  %s15 = inlined_call_operand.vmem [shape: bf16[128,128], index: 15, kind: input, shape index: {}]
  %s16 = inlined_call_operand.vmem [shape: f32[1,128], index: 16, kind: input, shape index: {}]
  %s17 = inlined_call_operand.vmem [shape: f32[8,128], index: 17, kind: output, shape index: {}]
  %s18 = sld [smem:[#allocation0]]
  $region116: #{rul_forward.1} parent=0
    _
  %s20 = ssub.s32 1, %s18
  %s21 = scalar_select 0, %s20, %s18
  $region1: #{rul_forward.1} parent=0
    #allocation4 [shape = 'u8[163840]{0}', space=vmem, size = 0x28000, scoped, tag = 'input window, operand 5, single buffered']
    #allocation5 [shape = 's32[1]{0}', space=sflag, size = 0x4, scoped, tag = 'scoped memory for rul_forward.1']
    #allocation6 [shape = 'u8[327680]{0}', space=vmem, size = 0x50000, scoped, tag = 'input window, operand 7, single buffered']
    #allocation7 [shape = 's32[1]{0}', space=sflag, size = 0x4, scoped, tag = 'scoped memory for rul_forward.1']
    #allocation8 [shape = 'u8[262144]{0}', space=vmem, size = 0x40000, scoped, tag = 'input window, operand 9, single buffered']
    #allocation9 [shape = 'u8[131072]{0}', space=vmem, size = 0x20000, scoped, tag = 'input window, operand 10, single buffered']
    #allocation10 [shape = 's32[1]{0}', space=sflag, size = 0x4, scoped, tag = 'scoped memory for rul_forward.1']
    #allocation11 [shape = 'u8[131072]{0}', space=vmem, size = 0x20000, scoped, tag = 'input window, operand 12, single buffered']
    #allocation12 [shape = 'u8[131072]{0}', space=vmem, size = 0x20000, scoped, tag = 'input window, operand 13, single buffered']
    #allocation13 [shape = 's32[1]{0}', space=sflag, size = 0x4, scoped, tag = 'scoped memory for rul_forward.1']
    %22 = vsyncpa [#allocation5], 0
    %23 = vsyncpa [#allocation7], 0
    %24 = vsyncpa [#allocation10], 0
    %25 = vsyncpa [#allocation13], 0
    // Predicated region
    $region2: #{rul_forward.1} parent=1 // pred_check
      _
    $region3: #{rul_forward.1} parent=1 // pred_check_branch
      %27 = sbr.rel (0) target = $region5
    $region4: #{rul_forward.1} parent=1 // pred_region
      _
    $region5: #{rul_forward.1} parent=1 // pred_fallthru
      _
    // Predicated region
    $region6: #{rul_forward.1} parent=1 // pred_check
      _
    $region7: #{rul_forward.1} parent=1 // pred_check_branch
      %29 = sbr.rel (0) target = $region9
    $region8: #{rul_forward.1} parent=1 // pred_region
      _
    $region9: #{rul_forward.1} parent=1 // pred_fallthru
      _
    // Predicated region
    $region10: #{rul_forward.1} parent=1 // pred_check
      _
    $region11: #{rul_forward.1} parent=1 // pred_check_branch
      %31 = sbr.rel (0) target = $region13
    $region12: #{rul_forward.1} parent=1 // pred_region
      _
    $region13: #{rul_forward.1} parent=1 // pred_fallthru
      _
    // Predicated region
    $region14: #{rul_forward.1} parent=1 // pred_check
      _
    $region15: #{rul_forward.1} parent=1 // pred_check_branch
      %33 = sbr.rel (0) target = $region17
    $region16: #{rul_forward.1} parent=1 // pred_region
      _
    $region17: #{rul_forward.1} parent=1 // pred_fallthru
      _
    // Predicated region
    $region18: #{rul_forward.1} parent=1 // pred_check
      _
    $region19: #{rul_forward.1} parent=1 // pred_check_branch
      %35 = sbr.rel (0) target = $region21
    $region20: #{rul_forward.1} parent=1 // pred_region
      _
    $region21: #{rul_forward.1} parent=1 // pred_fallthru
      _
    // Predicated region
    $region22: #{rul_forward.1} parent=1 // pred_check
      _
    $region23: #{rul_forward.1} parent=1 // pred_check_branch
      %37 = sbr.rel (0) target = $region25
    $region24: #{rul_forward.1} parent=1 // pred_region
      %s39 = ssub.s32 5120, 5120
      %40 = vsyncadd [#allocation5], %s39
      %s41 = sshll.u32 [#allocation4], 4
      %s42 = int_to_ptr.vmem [resolvable:$true] %s41
      %47 = dma.hbm_to_vmem [thread:$0]  %s5, 5120, %s42, [#allocation5], 64, 64, 4
    $region25: #{rul_forward.1} parent=1 // pred_fallthru
      _
    // Predicated region
    $region26: #{rul_forward.1} parent=1 // pred_check
      _
    $region27: #{rul_forward.1} parent=1 // pred_check_branch
      %49 = sbr.rel (0) target = $region29
    $region28: #{rul_forward.1} parent=1 // pred_region
      _
    $region29: #{rul_forward.1} parent=1 // pred_fallthru
      _
    // Predicated region
    $region30: #{rul_forward.1} parent=1 // pred_check
      _
    $region31: #{rul_forward.1} parent=1 // pred_check_branch
      %51 = sbr.rel (0) target = $region33
    $region32: #{rul_forward.1} parent=1 // pred_region
      %s53 = ssub.s32 10240, 10240
      %54 = vsyncadd [#allocation7], %s53
      %s55 = sshll.u32 [#allocation6], 4
      %s56 = int_to_ptr.vmem [resolvable:$true] %s55
      %61 = dma.hbm_to_vmem [thread:$0]  %s7, 10240, %s56, [#allocation7], 128, 128, 8
    $region33: #{rul_forward.1} parent=1 // pred_fallthru
      _
    // Predicated region
    $region34: #{rul_forward.1} parent=1 // pred_check
      _
    $region35: #{rul_forward.1} parent=1 // pred_check_branch
      %63 = sbr.rel (0) target = $region37
    $region36: #{rul_forward.1} parent=1 // pred_region
      _
    $region37: #{rul_forward.1} parent=1 // pred_fallthru
      _
    // Predicated region
    $region38: #{rul_forward.1} parent=1 // pred_check
      _
    $region39: #{rul_forward.1} parent=1 // pred_check_branch
      %65 = sbr.rel (0) target = $region41
    $region40: #{rul_forward.1} parent=1 // pred_region
      %s67 = ssub.s32 8192, 8192
      %68 = vsyncadd [#allocation7], %s67
      %s69 = sshll.u32 [#allocation8], 4
      %s70 = int_to_ptr.vmem [resolvable:$true] %s69
      %75 = dma.hbm_to_vmem [thread:$0]  %s9, 8192, %s70, [#allocation7], 256, 256, 16
    $region41: #{rul_forward.1} parent=1 // pred_fallthru
      _
    // Predicated region
    $region42: #{rul_forward.1} parent=1 // pred_check
      _
    $region43: #{rul_forward.1} parent=1 // pred_check_branch
      %77 = sbr.rel (0) target = $region45
    $region44: #{rul_forward.1} parent=1 // pred_region
      %s79 = ssub.s32 4096, 4096
      %80 = vsyncadd [#allocation10], %s79
      %s81 = sshll.u32 [#allocation9], 4
      %s82 = int_to_ptr.vmem [resolvable:$true] %s81
      %87 = dma.hbm_to_vmem [thread:$0]  %s10, 4096, %s82, [#allocation10], 256, 256, 16
    $region45: #{rul_forward.1} parent=1 // pred_fallthru
      _
    // Predicated region
    $region46: #{rul_forward.1} parent=1 // pred_check
      _
    $region47: #{rul_forward.1} parent=1 // pred_check_branch
      %89 = sbr.rel (0) target = $region49
    $region48: #{rul_forward.1} parent=1 // pred_region
      _
    $region49: #{rul_forward.1} parent=1 // pred_fallthru
      _
    // Predicated region
    $region50: #{rul_forward.1} parent=1 // pred_check
      _
    $region51: #{rul_forward.1} parent=1 // pred_check_branch
      %91 = sbr.rel (0) target = $region53
    $region52: #{rul_forward.1} parent=1 // pred_region
      %s93 = ssub.s32 4096, 4096
      %94 = vsyncadd [#allocation10], %s93
      %s95 = sshll.u32 [#allocation11], 4
      %s96 = int_to_ptr.vmem [resolvable:$true] %s95
      %101 = dma.hbm_to_vmem [thread:$0]  %s12, 4096, %s96, [#allocation10], 256, 256, 16
    $region53: #{rul_forward.1} parent=1 // pred_fallthru
      _
    // Predicated region
    $region54: #{rul_forward.1} parent=1 // pred_check
      _
    $region55: #{rul_forward.1} parent=1 // pred_check_branch
      %103 = sbr.rel (0) target = $region57
    $region56: #{rul_forward.1} parent=1 // pred_region
      %s105 = ssub.s32 4096, 4096
      %106 = vsyncadd [#allocation13], %s105
      %s107 = sshll.u32 [#allocation12], 4
      %s108 = int_to_ptr.vmem [resolvable:$true] %s107
      %113 = dma.hbm_to_vmem [thread:$0]  %s13, 4096, %s108, [#allocation13], 256, 256, 16
    $region57: #{rul_forward.1} parent=1 // pred_fallthru
      _
    // Predicated region
    $region58: #{rul_forward.1} parent=1 // pred_check
      _
    $region59: #{rul_forward.1} parent=1 // pred_check_branch
      %115 = sbr.rel (0) target = $region61
    $region60: #{rul_forward.1} parent=1 // pred_region
      _
    $region61: #{rul_forward.1} parent=1 // pred_fallthru
      _
    // Predicated region
    $region62: #{rul_forward.1} parent=1 // pred_check
      _
    $region63: #{rul_forward.1} parent=1 // pred_check_branch
      %117 = sbr.rel (0) target = $region65
    $region64: #{rul_forward.1} parent=1 // pred_region
      _
    $region65: #{rul_forward.1} parent=1 // pred_fallthru
      _
    // Predicated region
    $region66: #{rul_forward.1} parent=1 // pred_check
      _
    $region67: #{rul_forward.1} parent=1 // pred_check_branch
      %119 = sbr.rel (0) target = $region69
    $region68: #{rul_forward.1} parent=1 // pred_region
      _
    $region69: #{rul_forward.1} parent=1 // pred_fallthru
      _
    // Predicated region
    $region70: #{rul_forward.1} parent=1 // pred_check
      _
    $region71: #{rul_forward.1} parent=1 // pred_check_branch
      %121 = sbr.rel (0) target = $region73
    $region72: #{rul_forward.1} parent=1 // pred_region
      %122 = dma.done [#allocation5], 5120
    $region73: #{rul_forward.1} parent=1 // pred_fallthru
      _
    // Predicated region
    $region74: #{rul_forward.1} parent=1 // pred_check
      _
    $region75: #{rul_forward.1} parent=1 // pred_check_branch
      %124 = sbr.rel (0) target = $region77
    $region76: #{rul_forward.1} parent=1 // pred_region
      %125 = dma.done [#allocation7], 10240
    $region77: #{rul_forward.1} parent=1 // pred_fallthru
      _
    // Predicated region
    $region78: #{rul_forward.1} parent=1 // pred_check
      _
    $region79: #{rul_forward.1} parent=1 // pred_check_branch
      %127 = sbr.rel (0) target = $region81
    $region80: #{rul_forward.1} parent=1 // pred_region
      %128 = dma.done [#allocation7], 8192
    $region81: #{rul_forward.1} parent=1 // pred_fallthru
      _
    // Predicated region
    $region82: #{rul_forward.1} parent=1 // pred_check
      _
    $region83: #{rul_forward.1} parent=1 // pred_check_branch
      %130 = sbr.rel (0) target = $region85
    $region84: #{rul_forward.1} parent=1 // pred_region
      %131 = dma.done [#allocation10], 4096
    $region85: #{rul_forward.1} parent=1 // pred_fallthru
      _
    // Predicated region
    $region86: #{rul_forward.1} parent=1 // pred_check
      _
    $region87: #{rul_forward.1} parent=1 // pred_check_branch
      %133 = sbr.rel (0) target = $region89
    $region88: #{rul_forward.1} parent=1 // pred_region
      %134 = dma.done [#allocation10], 4096
    $region89: #{rul_forward.1} parent=1 // pred_fallthru
      _
    // Predicated region
    $region90: #{rul_forward.1} parent=1 // pred_check
      _
    $region91: #{rul_forward.1} parent=1 // pred_check_branch
      %136 = sbr.rel (0) target = $region93
    $region92: #{rul_forward.1} parent=1 // pred_region
      %137 = dma.done [#allocation13], 4096
    $region93: #{rul_forward.1} parent=1 // pred_fallthru
      _
    %v139 = vld [vmem:[%s0] sm:$0xff]
    %v140 = vld [vmem:[%s0 + $0x8] sm:$0xff]
    %v141 = vld [vmem:[%s0 + $0x10] sm:$0xff]
    %v142 = vld [vmem:[%s0 + $0x18] sm:$0xff]
    %v143 = vld [vmem:[%s0 + $0x20] sm:$0xff]
    %v144 = vld [vmem:[%s0 + $0x28] sm:$0xff]
    %v145 = vld [vmem:[%s0 + $0x30] sm:$0xff]
    %v146 = vld [vmem:[%s0 + $0x38] sm:$0xff]
    %v147 = vld [vmem:[%s0 + $0x40] sm:$0xff]
    %v148 = vld [vmem:[%s0 + $0x48] sm:$0xff]
    %v149 = vld [vmem:[%s0 + $0x50] sm:$0xff]
    %v150 = vld [vmem:[%s0 + $0x58] sm:$0xff]
    %v151 = vld [vmem:[%s0 + $0x60] sm:$0xff]
    %v152 = vld [vmem:[%s0 + $0x68] sm:$0xff]
    %v153 = vld [vmem:[%s0 + $0x70] sm:$0xff]
    %v154 = vld [vmem:[%s0 + $0x78] sm:$0xff]
    %v155 = vld [vmem:[%s1] sm:$0xf]
    %v156 = vld [vmem:[%s1 + $0x4] sm:$0x3]
    %v157 = vld [vmem:[%s2] sm:$0x1]
    %174 = vrot.lane.b32.xlu0 %v139, 4
    %v175 = vpop.permute.xlu0 %174
    %176 = vrot.lane.b32.xlu0 %v140, 4
    %v177 = vpop.permute.xlu0 %176
    %178 = vrot.lane.b32.xlu0 %v141, 4
    %v179 = vpop.permute.xlu0 %178
    %180 = vrot.lane.b32.xlu0 %v142, 4
    %v181 = vpop.permute.xlu0 %180
    %182 = vrot.lane.b32.xlu0 %v143, 4
    %v183 = vpop.permute.xlu0 %182
    %184 = vrot.lane.b32.xlu0 %v144, 4
    %v185 = vpop.permute.xlu0 %184
    %186 = vrot.lane.b32.xlu0 %v145, 4
    %v187 = vpop.permute.xlu0 %186
    %188 = vrot.lane.b32.xlu0 %v146, 4
    %v189 = vpop.permute.xlu0 %188
    %190 = vrot.lane.b32.xlu0 %v147, 4
    %v191 = vpop.permute.xlu0 %190
    %192 = vrot.lane.b32.xlu0 %v148, 4
    %v193 = vpop.permute.xlu0 %192
    %194 = vrot.lane.b32.xlu0 %v149, 4
    %v195 = vpop.permute.xlu0 %194
    %196 = vrot.lane.b32.xlu0 %v150, 4
    %v197 = vpop.permute.xlu0 %196
    %198 = vrot.lane.b32.xlu0 %v151, 4
    %v199 = vpop.permute.xlu0 %198
    %200 = vrot.lane.b32.xlu0 %v152, 4
    %v201 = vpop.permute.xlu0 %200
    %202 = vrot.lane.b32.xlu0 %v153, 4
    %v203 = vpop.permute.xlu0 %202
    %204 = vrot.lane.b32.xlu0 %v154, 4
    %v205 = vpop.permute.xlu0 %204
    %223 = vrot.lane.b32.xlu0 %v140, 8
    %v224 = vpop.permute.xlu0 %223
    %225 = vrot.lane.b32.xlu0 %v141, 8
    %v226 = vpop.permute.xlu0 %225
    %227 = vrot.lane.b32.xlu0 %v142, 8
    %v228 = vpop.permute.xlu0 %227
    %229 = vrot.lane.b32.xlu0 %v143, 8
    %v230 = vpop.permute.xlu0 %229
    %231 = vrot.lane.b32.xlu0 %v144, 8
    %v232 = vpop.permute.xlu0 %231
    %233 = vrot.lane.b32.xlu0 %v145, 8
    %v234 = vpop.permute.xlu0 %233
    %235 = vrot.lane.b32.xlu0 %v146, 8
    %v236 = vpop.permute.xlu0 %235
    %237 = vrot.lane.b32.xlu0 %v147, 8
    %v238 = vpop.permute.xlu0 %237
    %239 = vrot.lane.b32.xlu0 %v148, 8
    %v240 = vpop.permute.xlu0 %239
    %241 = vrot.lane.b32.xlu0 %v149, 8
    %v242 = vpop.permute.xlu0 %241
    %243 = vrot.lane.b32.xlu0 %v150, 8
    %v244 = vpop.permute.xlu0 %243
    %245 = vrot.lane.b32.xlu0 %v151, 8
    %v246 = vpop.permute.xlu0 %245
    %247 = vrot.lane.b32.xlu0 %v152, 8
    %v248 = vpop.permute.xlu0 %247
    %249 = vrot.lane.b32.xlu0 %v153, 8
    %v250 = vpop.permute.xlu0 %249
    %251 = vrot.lane.b32.xlu0 %v154, 8
    %v252 = vpop.permute.xlu0 %251
    %253 = vrot.lane.b32.xlu0 0.0, 8
    %v254 = vpop.permute.xlu0 %253
    %vm271 = vcmask 31744
    %v272 = vsel %vm271, 0.0, %v175
    %v273 = vsel %vm271, %v139, %v177
    %v274 = vsel %vm271, %v140, %v179
    %v275 = vsel %vm271, %v141, %v181
    %v276 = vsel %vm271, %v142, %v183
    %v277 = vsel %vm271, %v143, %v185
    %v278 = vsel %vm271, %v144, %v187
    %v279 = vsel %vm271, %v145, %v189
    %v280 = vsel %vm271, %v146, %v191
    %v281 = vsel %vm271, %v147, %v193
    %v282 = vsel %vm271, %v148, %v195
    %v283 = vsel %vm271, %v149, %v197
    %v284 = vsel %vm271, %v150, %v199
    %v285 = vsel %vm271, %v151, %v201
    %v286 = vsel %vm271, %v152, %v203
    %v287 = vsel %vm271, %v153, %v205
    %vm288 = vcmask 64512
    %v289 = vsel %vm288, %v272, %v224
    %v290 = vsel %vm288, %v273, %v226
    %v291 = vsel %vm288, %v274, %v228
    %v292 = vsel %vm288, %v275, %v230
    %v293 = vsel %vm288, %v276, %v232
    %v294 = vsel %vm288, %v277, %v234
    %v295 = vsel %vm288, %v278, %v236
    %v296 = vsel %vm288, %v279, %v238
    %v297 = vsel %vm288, %v280, %v240
    %v298 = vsel %vm288, %v281, %v242
    %v299 = vsel %vm288, %v282, %v244
    %v300 = vsel %vm288, %v283, %v246
    %v301 = vsel %vm288, %v284, %v248
    %v302 = vsel %vm288, %v285, %v250
    %v303 = vsel %vm288, %v286, %v252
    %v304 = vsel %vm288, %v287, %v254
    %v305 = vpack.c.bf16 %v290, %v289
    %v306 = vpack.c.bf16 %v292, %v291
    %v307 = vpack.c.bf16 %v294, %v293
    %v308 = vpack.c.bf16 %v296, %v295
    %v309 = vpack.c.bf16 %v298, %v297
    %v310 = vpack.c.bf16 %v300, %v299
    %v311 = vpack.c.bf16 %v302, %v301
    %v312 = vpack.c.bf16 %v304, %v303
    %v314 = vlaneseq
    %v315 = vshrl.u32 %v314, 7
    %v316 = vsub.s32 0, %v315
    %v317 = vrot.slane %v157, %v316
    %v321 = vunpack.c.l.b16 %v155
    %v322 = vunpack.c.l.b16 %v156
    %v323 = vpack.c.b16 %v322, %v321
    %vm324 = vcmask 97280
    %v326 = vsel %vm324, %v305, 0
    %v329 = vsel %vm324, %v306, 0
    %v332 = vsel %vm324, %v307, 0
    %v335 = vsel %vm324, %v308, 0
    %v338 = vsel %vm324, %v309, 0
    %v341 = vsel %vm324, %v310, 0
    %v344 = vsel %vm324, %v311, 0
    %v347 = vsel %vm324, %v312, 0
    %vm349 = vcmask 1045504
    %v351 = vsel %vm349, %v323, 0
    %353 = vmatprep.subr.bf16.mxu0 0
    %354 = vmatpush1.bf16.msra.mxu0 %v351
    %355 = vmatprep.subr.bf16.mxu0 0
    %356 = vmatpush1.bf16.msra.mxu0 0
    %357 = vmatprep.subr.bf16.mxu0 0
    %358 = vmatpush1.bf16.msra.mxu0 0
    %359 = vmatprep.subr.bf16.mxu0 0
    %360 = vmatpush1.bf16.msra.mxu0 0
    %361 = vmatprep.subr.bf16.mxu0 0
    %362 = vmatpush1.bf16.msra.mxu0 0
    %363 = vmatprep.subr.bf16.mxu0 0
    %364 = vmatpush1.bf16.msra.mxu0 0
    %365 = vmatprep.subr.bf16.mxu0 0
    %366 = vmatpush1.bf16.msra.mxu0 0
    %367 = vmatprep.subr.bf16.mxu0 0
    %368 = vmatpush1.bf16.msra.mxu0 0
    %369 = vmatprep.subr.bf16.mxu0 0
    %370 = vmatpush1.bf16.msra.mxu0 0
    %371 = vmatprep.subr.bf16.mxu0 0
    %372 = vmatpush1.bf16.msra.mxu0 0
    %373 = vmatprep.subr.bf16.mxu0 0
    %374 = vmatpush1.bf16.msra.mxu0 0
    %375 = vmatprep.subr.bf16.mxu0 0
    %376 = vmatpush1.bf16.msra.mxu0 0
    %377 = vmatprep.subr.bf16.mxu0 0
    %378 = vmatpush1.bf16.msra.mxu0 0
    %379 = vmatprep.subr.bf16.mxu0 0
    %380 = vmatpush1.bf16.msra.mxu0 0
    %381 = vmatprep.subr.bf16.mxu0 0
    %382 = vmatpush1.bf16.msra.mxu0 0
    %383 = vmatprep.subr.bf16.mxu0 0
    %384 = vmatpush1.bf16.msra.mxu0 0
    %385 = vmatprep.mubr.bf16.mxu0 0
    %386 = vmatmul.mubr.bf16.gmra.mrb[0].mxu0 %v326
    %v387 = vpop.f32.mrb[0].mxu0
    %v388 = vadd.f32 %v317, %v387
    %v389 = vpop.f32.mrb[0].mxu0
    %v390 = vpop.f32.mrb[0].mxu0
    %v391 = vadd.f32 %v317, %v390
    %v392 = vpop.f32.mrb[0].mxu0
    %393 = vmatprep.mubr.bf16.mxu0 0
    %394 = vmatmul.mubr.bf16.gmra.mrb[0].mxu0 %v329
    %v395 = vpop.f32.mrb[0].mxu0
    %v396 = vadd.f32 %v317, %v395
    %v397 = vpop.f32.mrb[0].mxu0
    %v398 = vpop.f32.mrb[0].mxu0
    %v399 = vadd.f32 %v317, %v398
    %v400 = vpop.f32.mrb[0].mxu0
    %401 = vmatprep.mubr.bf16.mxu0 0
    %402 = vmatmul.mubr.bf16.gmra.mrb[0].mxu0 %v332
    %v403 = vpop.f32.mrb[0].mxu0
    %v404 = vadd.f32 %v317, %v403
    %v405 = vpop.f32.mrb[0].mxu0
    %v406 = vpop.f32.mrb[0].mxu0
    %v407 = vadd.f32 %v317, %v406
    %v408 = vpop.f32.mrb[0].mxu0
    %409 = vmatprep.mubr.bf16.mxu0 0
    %410 = vmatmul.mubr.bf16.gmra.mrb[0].mxu0 %v335
    %v411 = vpop.f32.mrb[0].mxu0
    %v412 = vadd.f32 %v317, %v411
    %v413 = vpop.f32.mrb[0].mxu0
    %v414 = vpop.f32.mrb[0].mxu0
    %v415 = vadd.f32 %v317, %v414
    %v416 = vpop.f32.mrb[0].mxu0
    %417 = vmatprep.mubr.bf16.mxu0 0
    %418 = vmatmul.mubr.bf16.gmra.mrb[0].mxu0 %v338
    %v419 = vpop.f32.mrb[0].mxu0
    %v420 = vadd.f32 %v317, %v419
    %v421 = vpop.f32.mrb[0].mxu0
    %v422 = vpop.f32.mrb[0].mxu0
    %v423 = vadd.f32 %v317, %v422
    %v424 = vpop.f32.mrb[0].mxu0
    %425 = vmatprep.mubr.bf16.mxu0 0
    %426 = vmatmul.mubr.bf16.gmra.mrb[0].mxu0 %v341
    %v427 = vpop.f32.mrb[0].mxu0
    %v428 = vadd.f32 %v317, %v427
    %v429 = vpop.f32.mrb[0].mxu0
    %v430 = vpop.f32.mrb[0].mxu0
    %v431 = vadd.f32 %v317, %v430
    %v432 = vpop.f32.mrb[0].mxu0
    %433 = vmatprep.mubr.bf16.mxu0 0
    %434 = vmatmul.mubr.bf16.gmra.mrb[0].mxu0 %v344
    %v435 = vpop.f32.mrb[0].mxu0
    %v436 = vadd.f32 %v317, %v435
    %v437 = vpop.f32.mrb[0].mxu0
    %v438 = vpop.f32.mrb[0].mxu0
    %v439 = vadd.f32 %v317, %v438
    %v440 = vpop.f32.mrb[0].mxu0
    %441 = vmatprep.mubr.bf16.mxu0 0
    %442 = vmatmul.mubr.bf16.gmra.mrb[0].mxu0 %v347
    %v443 = vpop.f32.mrb[0].mxu0
    %v444 = vadd.f32 %v317, %v443
    %v445 = vpop.f32.mrb[0].mxu0
    %v446 = vpop.f32.mrb[0].mxu0
    %v447 = vadd.f32 %v317, %v446
    %v448 = vpop.f32.mrb[0].mxu0
    %449 = vdwg.mxu0
    %v450 = vmax.f32 %v388, 0.0
    %v451 = vmax.f32 %v391, 0.0
    %v452 = vmax.f32 %v396, 0.0
    %v453 = vmax.f32 %v399, 0.0
    %v454 = vmax.f32 %v404, 0.0
    %v455 = vmax.f32 %v407, 0.0
    %v456 = vmax.f32 %v412, 0.0
    %v457 = vmax.f32 %v415, 0.0
    %v458 = vmax.f32 %v420, 0.0
    %v459 = vmax.f32 %v423, 0.0
    %v460 = vmax.f32 %v428, 0.0
    %v461 = vmax.f32 %v431, 0.0
    %v462 = vmax.f32 %v436, 0.0
    %v463 = vmax.f32 %v439, 0.0
    %v464 = vmax.f32 %v444, 0.0
    %v465 = vmax.f32 %v447, 0.0
    %v466 = vld [vmem:[%s3] sm:$0xf]
    %v467 = vld [vmem:[%s3 + $0x4] sm:$0xf]
    %v468 = vld [vmem:[%s3 + $0x8] sm:$0xf]
    %v469 = vld [vmem:[%s3 + $0xc] sm:$0xf]
    %v470 = vld [vmem:[%s3 + $0x10] sm:$0xf]
    %v471 = vld [vmem:[%s3 + $0x14] sm:$0xf]
    %v472 = vld [vmem:[%s3 + $0x18] sm:$0xf]
    %v473 = vld [vmem:[%s3 + $0x1c] sm:$0xf]
    %v474 = vld [vmem:[%s3 + $0x20] sm:$0xf]
    %v475 = vld [vmem:[%s3 + $0x24] sm:$0xf]
    %v476 = vld [vmem:[%s3 + $0x28] sm:$0xf]
    %v477 = vld [vmem:[%s3 + $0x2c] sm:$0xf]
    %v478 = vld [vmem:[%s3 + $0x30] sm:$0xf]
    %v479 = vld [vmem:[%s3 + $0x34] sm:$0xf]
    %v480 = vld [vmem:[%s3 + $0x38] sm:$0xf]
    %v481 = vld [vmem:[%s3 + $0x3c] sm:$0xf]
    %v482 = vld [vmem:[%s3 + $0x40] sm:$0xf]
    %v483 = vld [vmem:[%s3 + $0x44] sm:$0xf]
    %v484 = vld [vmem:[%s3 + $0x48] sm:$0xf]
    %v485 = vld [vmem:[%s3 + $0x4c] sm:$0xf]
    %v486 = vld [vmem:[%s3 + $0x50] sm:$0xf]
    %v487 = vld [vmem:[%s3 + $0x54] sm:$0xf]
    %v488 = vld [vmem:[%s3 + $0x58] sm:$0xf]
    %v489 = vld [vmem:[%s3 + $0x5c] sm:$0xf]
    %v490 = vld [vmem:[%s4] sm:$0x1]
    %507 = vrot.lane.b32.xlu0 %v450, 64
    %v508 = vpop.permute.xlu0 %507
    %509 = vrot.lane.b32.xlu0 %v451, 64
    %v510 = vpop.permute.xlu0 %509
    %511 = vrot.lane.b32.xlu0 %v452, 64
    %v512 = vpop.permute.xlu0 %511
    %513 = vrot.lane.b32.xlu0 %v453, 64
    %v514 = vpop.permute.xlu0 %513
    %515 = vrot.lane.b32.xlu0 %v454, 64
    %v516 = vpop.permute.xlu0 %515
    %517 = vrot.lane.b32.xlu0 %v455, 64
    %v518 = vpop.permute.xlu0 %517
    %519 = vrot.lane.b32.xlu0 %v456, 64
    %v520 = vpop.permute.xlu0 %519
    %521 = vrot.lane.b32.xlu0 %v457, 64
    %v522 = vpop.permute.xlu0 %521
    %523 = vrot.lane.b32.xlu0 %v458, 64
    %v524 = vpop.permute.xlu0 %523
    %525 = vrot.lane.b32.xlu0 %v459, 64
    %v526 = vpop.permute.xlu0 %525
    %527 = vrot.lane.b32.xlu0 %v460, 64
    %v528 = vpop.permute.xlu0 %527
    %529 = vrot.lane.b32.xlu0 %v461, 64
    %v530 = vpop.permute.xlu0 %529
    %531 = vrot.lane.b32.xlu0 %v462, 64
    %v532 = vpop.permute.xlu0 %531
    %533 = vrot.lane.b32.xlu0 %v463, 64
    %v534 = vpop.permute.xlu0 %533
    %535 = vrot.lane.b32.xlu0 %v464, 64
    %v536 = vpop.permute.xlu0 %535
    %537 = vrot.lane.b32.xlu0 %v465, 64
    %v538 = vpop.permute.xlu0 %537
    %vm555 = vcmask 523264
    %v556 = vsel %vm555, 0.0, %v508
    %v557 = vsel %vm555, %v450, %v510
    %v558 = vsel %vm555, %v451, %v512
    %v559 = vsel %vm555, %v452, %v514
    %v560 = vsel %vm555, %v453, %v516
    %v561 = vsel %vm555, %v454, %v518
    %v562 = vsel %vm555, %v455, %v520
    %v563 = vsel %vm555, %v456, %v522
    %v564 = vsel %vm555, %v457, %v524
    %v565 = vsel %vm555, %v458, %v526
    %v566 = vsel %vm555, %v459, %v528
    %v567 = vsel %vm555, %v460, %v530
    %v568 = vsel %vm555, %v461, %v532
    %v569 = vsel %vm555, %v462, %v534
    %v570 = vsel %vm555, %v463, %v536
    %v571 = vsel %vm555, %v464, %v538
    %v572 = vpack.c.bf16 %v557, %v556
    %v573 = vpack.c.bf16 %v452, %v451
    %v574 = vpack.c.bf16 %v559, %v558
    %v575 = vpack.c.bf16 %v454, %v453
    %v576 = vpack.c.bf16 %v561, %v560
    %v577 = vpack.c.bf16 %v456, %v455
    %v578 = vpack.c.bf16 %v563, %v562
    %v579 = vpack.c.bf16 %v458, %v457
    %v580 = vpack.c.bf16 %v565, %v564
    %v581 = vpack.c.bf16 %v460, %v459
    %v582 = vpack.c.bf16 %v567, %v566
    %v583 = vpack.c.bf16 %v462, %v461
    %v584 = vpack.c.bf16 %v569, %v568
    %v585 = vpack.c.bf16 %v464, %v463
    %v586 = vpack.c.bf16 %v571, %v570
    %v587 = vpack.c.bf16 0.0, %v465
    %v589 = vlaneseq
    %v590 = vshrl.u32 %v589, 7
    %v591 = vsub.s32 0, %v590
    %v592 = vrot.slane %v490, %v591
    %v618 = vunpack.c.l.b16 %v466
    %v619 = vunpack.c.l.b16 %v467
    %v620 = vunpack.c.l.b16 %v468
    %v621 = vunpack.c.l.b16 %v469
    %v622 = vunpack.c.l.b16 %v470
    %v623 = vunpack.c.l.b16 %v471
    %v624 = vunpack.c.l.b16 %v472
    %v625 = vunpack.c.l.b16 %v473
    %v626 = vunpack.c.l.b16 %v474
    %v627 = vunpack.c.l.b16 %v475
    %v628 = vunpack.c.l.b16 %v476
    %v629 = vunpack.c.l.b16 %v477
    %v630 = vunpack.c.l.b16 %v478
    %v631 = vunpack.c.l.b16 %v479
    %v632 = vunpack.c.l.b16 %v480
    %v633 = vunpack.c.l.b16 %v481
    %v634 = vunpack.c.l.b16 %v482
    %v635 = vunpack.c.l.b16 %v483
    %v636 = vunpack.c.l.b16 %v484
    %v637 = vunpack.c.l.b16 %v485
    %v638 = vunpack.c.l.b16 %v486
    %v639 = vunpack.c.l.b16 %v487
    %v640 = vunpack.c.l.b16 %v488
    %v641 = vunpack.c.l.b16 %v489
    %v642 = vpack.c.b16 %v619, %v618
    %v643 = vpack.c.b16 %v621, %v620
    %v644 = vpack.c.b16 %v623, %v622
    %v645 = vpack.c.b16 %v625, %v624
    %v646 = vpack.c.b16 %v627, %v626
    %v647 = vpack.c.b16 %v629, %v628
    %v648 = vpack.c.b16 %v631, %v630
    %v649 = vpack.c.b16 %v633, %v632
    %v650 = vpack.c.b16 %v635, %v634
    %v651 = vpack.c.b16 %v637, %v636
    %v652 = vpack.c.b16 %v639, %v638
    %v653 = vpack.c.b16 %v641, %v640
    %v667 = vsel %vm555, %v573, 0
    %v670 = vsel %vm555, %v575, 0
    %v673 = vsel %vm555, %v577, 0
    %v676 = vsel %vm555, %v579, 0
    %v679 = vsel %vm555, %v581, 0
    %v682 = vsel %vm555, %v583, 0
    %v685 = vsel %vm555, %v585, 0
    %v688 = vsel %vm555, %v587, 0
    %690 = vmatprep.subr.bf16.mxu0 0
    %691 = vmatpush1.bf16.msra.mxu0 %v642
    %692 = vmatprep.subr.bf16.mxu0 0
    %693 = vmatpush1.bf16.msra.mxu0 %v643
    %694 = vmatprep.subr.bf16.mxu0 0
    %695 = vmatpush1.bf16.msra.mxu0 %v644
    %696 = vmatprep.subr.bf16.mxu0 0
    %697 = vmatpush1.bf16.msra.mxu0 %v645
    %698 = vmatprep.subr.bf16.mxu0 0
    %699 = vmatpush1.bf16.msra.mxu0 %v646
    %700 = vmatprep.subr.bf16.mxu0 0
    %701 = vmatpush1.bf16.msra.mxu0 %v647
    %702 = vmatprep.subr.bf16.mxu0 0
    %703 = vmatpush1.bf16.msra.mxu0 %v648
    %704 = vmatprep.subr.bf16.mxu0 0
    %705 = vmatpush1.bf16.msra.mxu0 %v649
    %706 = vmatprep.subr.bf16.mxu0 0
    %707 = vmatpush1.bf16.msra.mxu0 %v650
    %708 = vmatprep.subr.bf16.mxu0 0
    %709 = vmatpush1.bf16.msra.mxu0 %v651
    %710 = vmatprep.subr.bf16.mxu0 0
    %711 = vmatpush1.bf16.msra.mxu0 %v652
    %712 = vmatprep.subr.bf16.mxu0 0
    %713 = vmatpush1.bf16.msra.mxu0 %v653
    %714 = vmatprep.subr.bf16.mxu0 0
    %715 = vmatpush1.bf16.msra.mxu0 0
    %716 = vmatprep.subr.bf16.mxu0 0
    %717 = vmatpush1.bf16.msra.mxu0 0
    %718 = vmatprep.subr.bf16.mxu0 0
    %719 = vmatpush1.bf16.msra.mxu0 0
    %720 = vmatprep.subr.bf16.mxu0 0
    %721 = vmatpush1.bf16.msra.mxu0 0
    %722 = vmatprep.mubr.bf16.mxu0 %v667
    %723 = vmatmul.mubr.bf16.gmra.mrb[0].mxu0 %v572
    %v724 = vpop.f32.mrb[0].mxu0
    %v725 = vadd.f32 %v592, %v724
    %v726 = vpop.f32.mrb[0].mxu0
    %v727 = vpop.f32.mrb[0].mxu0
    %v728 = vadd.f32 %v592, %v727
    %v729 = vpop.f32.mrb[0].mxu0
    %730 = vmatprep.mubr.bf16.mxu0 %v670
    %731 = vmatmul.mubr.bf16.gmra.mrb[0].mxu0 %v574
    %v732 = vpop.f32.mrb[0].mxu0
    %v733 = vadd.f32 %v592, %v732
    %v734 = vpop.f32.mrb[0].mxu0
    %v735 = vpop.f32.mrb[0].mxu0
    %v736 = vadd.f32 %v592, %v735
    %v737 = vpop.f32.mrb[0].mxu0
    %738 = vmatprep.mubr.bf16.mxu0 %v673
    %739 = vmatmul.mubr.bf16.gmra.mrb[0].mxu0 %v576
    %v740 = vpop.f32.mrb[0].mxu0
    %v741 = vadd.f32 %v592, %v740
    %v742 = vpop.f32.mrb[0].mxu0
    %v743 = vpop.f32.mrb[0].mxu0
    %v744 = vadd.f32 %v592, %v743
    %v745 = vpop.f32.mrb[0].mxu0
    %746 = vmatprep.mubr.bf16.mxu0 %v676
    %747 = vmatmul.mubr.bf16.gmra.mrb[0].mxu0 %v578
    %v748 = vpop.f32.mrb[0].mxu0
    %v749 = vadd.f32 %v592, %v748
    %v750 = vpop.f32.mrb[0].mxu0
    %v751 = vpop.f32.mrb[0].mxu0
    %v752 = vadd.f32 %v592, %v751
    %v753 = vpop.f32.mrb[0].mxu0
    %754 = vmatprep.mubr.bf16.mxu0 %v679
    %755 = vmatmul.mubr.bf16.gmra.mrb[0].mxu0 %v580
    %v756 = vpop.f32.mrb[0].mxu0
    %v757 = vadd.f32 %v592, %v756
    %v758 = vpop.f32.mrb[0].mxu0
    %v759 = vpop.f32.mrb[0].mxu0
    %v760 = vadd.f32 %v592, %v759
    %v761 = vpop.f32.mrb[0].mxu0
    %762 = vmatprep.mubr.bf16.mxu0 %v682
    %763 = vmatmul.mubr.bf16.gmra.mrb[0].mxu0 %v582
    %v764 = vpop.f32.mrb[0].mxu0
    %v765 = vadd.f32 %v592, %v764
    %v766 = vpop.f32.mrb[0].mxu0
    %v767 = vpop.f32.mrb[0].mxu0
    %v768 = vadd.f32 %v592, %v767
    %v769 = vpop.f32.mrb[0].mxu0
    %770 = vmatprep.mubr.bf16.mxu0 %v685
    %771 = vmatmul.mubr.bf16.gmra.mrb[0].mxu0 %v584
    %v772 = vpop.f32.mrb[0].mxu0
    %v773 = vadd.f32 %v592, %v772
    %v774 = vpop.f32.mrb[0].mxu0
    %v775 = vpop.f32.mrb[0].mxu0
    %v776 = vadd.f32 %v592, %v775
    %v777 = vpop.f32.mrb[0].mxu0
    %778 = vmatprep.mubr.bf16.mxu0 %v688
    %779 = vmatmul.mubr.bf16.gmra.mrb[0].mxu0 %v586
    %v780 = vpop.f32.mrb[0].mxu0
    %v781 = vadd.f32 %v592, %v780
    %v782 = vpop.f32.mrb[0].mxu0
    %v783 = vpop.f32.mrb[0].mxu0
    %v784 = vadd.f32 %v592, %v783
    %v785 = vpop.f32.mrb[0].mxu0
    %786 = vdwg.mxu0
    %v787 = vmax.f32 %v725, 0.0
    %v788 = vmax.f32 %v728, 0.0
    %v789 = vmax.f32 %v733, 0.0
    %v790 = vmax.f32 %v736, 0.0
    %v791 = vmax.f32 %v741, 0.0
    %v792 = vmax.f32 %v744, 0.0
    %v793 = vmax.f32 %v749, 0.0
    %v794 = vmax.f32 %v752, 0.0
    %v795 = vmax.f32 %v757, 0.0
    %v796 = vmax.f32 %v760, 0.0
    %v797 = vmax.f32 %v765, 0.0
    %v798 = vmax.f32 %v768, 0.0
    %v799 = vmax.f32 %v773, 0.0
    %v800 = vmax.f32 %v776, 0.0
    %v801 = vmax.f32 %v781, 0.0
    %v802 = vmax.f32 %v784, 0.0
    %v803 = vmax.f32 %v787, %v788
    %v804 = vmax.f32 %v789, %v790
    %v805 = vmax.f32 %v791, %v792
    %v806 = vmax.f32 %v793, %v794
    %v807 = vmax.f32 %v795, %v796
    %v808 = vmax.f32 %v797, %v798
    %v809 = vmax.f32 %v799, %v800
    %v810 = vmax.f32 %v801, %v802
    %v811 = vld [vmem:[#allocation4] sm:$0xf]
    %v812 = vld [vmem:[#allocation4 + $0x4] sm:$0xf]
    %v813 = vld [vmem:[#allocation4 + $0x8] sm:$0xf]
    %v814 = vld [vmem:[#allocation4 + $0xc] sm:$0xf]
    %v815 = vld [vmem:[#allocation4 + $0x10] sm:$0xf]
    %v816 = vld [vmem:[#allocation4 + $0x14] sm:$0xf]
    %v817 = vld [vmem:[#allocation4 + $0x18] sm:$0xf]
    %v818 = vld [vmem:[#allocation4 + $0x1c] sm:$0xf]
    %v819 = vld [vmem:[#allocation4 + $0x20] sm:$0xf]
    %v820 = vld [vmem:[#allocation4 + $0x24] sm:$0xf]
    %v821 = vld [vmem:[#allocation4 + $0x28] sm:$0xf]
    %v822 = vld [vmem:[#allocation4 + $0x2c] sm:$0xf]
    %v823 = vld [vmem:[#allocation4 + $0x30] sm:$0xf]
    %v824 = vld [vmem:[#allocation4 + $0x34] sm:$0xf]
    %v825 = vld [vmem:[#allocation4 + $0x38] sm:$0xf]
    %v826 = vld [vmem:[#allocation4 + $0x3c] sm:$0xf]
    %v827 = vld [vmem:[#allocation4 + $0x40] sm:$0xf]
    %v828 = vld [vmem:[#allocation4 + $0x44] sm:$0xf]
    %v829 = vld [vmem:[#allocation4 + $0x48] sm:$0xf]
    %v830 = vld [vmem:[#allocation4 + $0x4c] sm:$0xf]
    %v831 = vld [vmem:[#allocation4 + $0x50] sm:$0xf]
    %v832 = vld [vmem:[#allocation4 + $0x54] sm:$0xf]
    %v833 = vld [vmem:[#allocation4 + $0x58] sm:$0xf]
    %v834 = vld [vmem:[#allocation4 + $0x5c] sm:$0xf]
    %v835 = vld [vmem:[#allocation4 + $0x60] sm:$0xf]
    %v836 = vld [vmem:[#allocation4 + $0x64] sm:$0xf]
    %v837 = vld [vmem:[#allocation4 + $0x68] sm:$0xf]
    %v838 = vld [vmem:[#allocation4 + $0x6c] sm:$0xf]
    %v839 = vld [vmem:[#allocation4 + $0x70] sm:$0xf]
    %v840 = vld [vmem:[#allocation4 + $0x74] sm:$0xf]
    %v841 = vld [vmem:[#allocation4 + $0x78] sm:$0xf]
    %v842 = vld [vmem:[#allocation4 + $0x7c] sm:$0xf]
    %v843 = vld [vmem:[#allocation4 + $0x80] sm:$0xf]
    %v844 = vld [vmem:[#allocation4 + $0x84] sm:$0xf]
    %v845 = vld [vmem:[#allocation4 + $0x88] sm:$0xf]
    %v846 = vld [vmem:[#allocation4 + $0x8c] sm:$0xf]
    %v847 = vld [vmem:[#allocation4 + $0x90] sm:$0xf]
    %v848 = vld [vmem:[#allocation4 + $0x94] sm:$0xf]
    %v849 = vld [vmem:[#allocation4 + $0x98] sm:$0xf]
    %v850 = vld [vmem:[#allocation4 + $0x9c] sm:$0xf]
    %v851 = vld [vmem:[#allocation4 + $0xa0] sm:$0xf]
    %v852 = vld [vmem:[#allocation4 + $0xa4] sm:$0xf]
    %v853 = vld [vmem:[#allocation4 + $0xa8] sm:$0xf]
    %v854 = vld [vmem:[#allocation4 + $0xac] sm:$0xf]
    %v855 = vld [vmem:[#allocation4 + $0xb0] sm:$0xf]
    %v856 = vld [vmem:[#allocation4 + $0xb4] sm:$0xf]
    %v857 = vld [vmem:[#allocation4 + $0xb8] sm:$0xf]
    %v858 = vld [vmem:[#allocation4 + $0xbc] sm:$0xf]
    %v859 = vld [vmem:[#allocation4 + $0xc0] sm:$0xf]
    %v860 = vld [vmem:[#allocation4 + $0xc4] sm:$0xf]
    %v861 = vld [vmem:[#allocation4 + $0xc8] sm:$0xf]
    %v862 = vld [vmem:[#allocation4 + $0xcc] sm:$0xf]
    %v863 = vld [vmem:[#allocation4 + $0xd0] sm:$0xf]
    %v864 = vld [vmem:[#allocation4 + $0xd4] sm:$0xf]
    %v865 = vld [vmem:[#allocation4 + $0xd8] sm:$0xf]
    %v866 = vld [vmem:[#allocation4 + $0xdc] sm:$0xf]
    %v867 = vld [vmem:[#allocation4 + $0xe0] sm:$0xf]
    %v868 = vld [vmem:[#allocation4 + $0xe4] sm:$0xf]
    %v869 = vld [vmem:[#allocation4 + $0xe8] sm:$0xf]
    %v870 = vld [vmem:[#allocation4 + $0xec] sm:$0xf]
    %v871 = vld [vmem:[#allocation4 + $0xf0] sm:$0xf]
    %v872 = vld [vmem:[#allocation4 + $0xf4] sm:$0xf]
    %v873 = vld [vmem:[#allocation4 + $0xf8] sm:$0xf]
    %v874 = vld [vmem:[#allocation4 + $0xfc] sm:$0xf]
    %v875 = vld [vmem:[#allocation4 + $0x100] sm:$0xf]
    %v876 = vld [vmem:[#allocation4 + $0x104] sm:$0xf]
    %v877 = vld [vmem:[#allocation4 + $0x108] sm:$0xf]
    %v878 = vld [vmem:[#allocation4 + $0x10c] sm:$0xf]
    %v879 = vld [vmem:[#allocation4 + $0x110] sm:$0xf]
    %v880 = vld [vmem:[#allocation4 + $0x114] sm:$0xf]
    %v881 = vld [vmem:[#allocation4 + $0x118] sm:$0xf]
    %v882 = vld [vmem:[#allocation4 + $0x11c] sm:$0xf]
    %v883 = vld [vmem:[#allocation4 + $0x120] sm:$0xf]
    %v884 = vld [vmem:[#allocation4 + $0x124] sm:$0xf]
    %v885 = vld [vmem:[#allocation4 + $0x128] sm:$0xf]
    %v886 = vld [vmem:[#allocation4 + $0x12c] sm:$0xf]
    %v887 = vld [vmem:[#allocation4 + $0x130] sm:$0xf]
    %v888 = vld [vmem:[#allocation4 + $0x134] sm:$0xf]
    %v889 = vld [vmem:[#allocation4 + $0x138] sm:$0xf]
    %v890 = vld [vmem:[#allocation4 + $0x13c] sm:$0xf]
    %v891 = vld [vmem:[%s6] sm:$0x1]
    %v892 = vpack.c.bf16 0.0, 0.0
    %v893 = vpack.c.bf16 %v803, 0.0
    %v894 = vpack.c.bf16 %v804, %v803
    %v895 = vpack.c.bf16 %v805, %v804
    %v896 = vpack.c.bf16 %v806, %v805
    %v897 = vpack.c.bf16 %v807, %v806
    %v898 = vpack.c.bf16 %v808, %v807
    %v899 = vpack.c.bf16 %v809, %v808
    %v900 = vpack.c.bf16 %v810, %v809
    %v901 = vpack.c.bf16 0.0, %v810
    %v903 = vlaneseq
    %v904 = vshrl.u32 %v903, 7
    %v905 = vsub.s32 0, %v904
    %v906 = vrot.slane %v891, %v905
    %v988 = vunpack.c.l.b16 %v811
    %v989 = vunpack.c.l.b16 %v812
    %v990 = vunpack.c.l.b16 %v813
    %v991 = vunpack.c.l.b16 %v814
    %v992 = vunpack.c.l.b16 %v815
    %v993 = vunpack.c.l.b16 %v816
    %v994 = vunpack.c.l.b16 %v817
    %v995 = vunpack.c.l.b16 %v818
    %v996 = vunpack.c.l.b16 %v819
    %v997 = vunpack.c.l.b16 %v820
    %v998 = vunpack.c.l.b16 %v821
    %v999 = vunpack.c.l.b16 %v822
    %v1000 = vunpack.c.l.b16 %v823
    %v1001 = vunpack.c.l.b16 %v824
    %v1002 = vunpack.c.l.b16 %v825
    %v1003 = vunpack.c.l.b16 %v826
    %v1004 = vunpack.c.l.b16 %v827
    %v1005 = vunpack.c.l.b16 %v828
    %v1006 = vunpack.c.l.b16 %v829
    %v1007 = vunpack.c.l.b16 %v830
    %v1008 = vunpack.c.l.b16 %v831
    %v1009 = vunpack.c.l.b16 %v832
    %v1010 = vunpack.c.l.b16 %v833
    %v1011 = vunpack.c.l.b16 %v834
    %v1012 = vunpack.c.l.b16 %v835
    %v1013 = vunpack.c.l.b16 %v836
    %v1014 = vunpack.c.l.b16 %v837
    %v1015 = vunpack.c.l.b16 %v838
    %v1016 = vunpack.c.l.b16 %v839
    %v1017 = vunpack.c.l.b16 %v840
    %v1018 = vunpack.c.l.b16 %v841
    %v1019 = vunpack.c.l.b16 %v842
    %v1020 = vunpack.c.l.b16 %v843
    %v1021 = vunpack.c.l.b16 %v844
    %v1022 = vunpack.c.l.b16 %v845
    %v1023 = vunpack.c.l.b16 %v846
    %v1024 = vunpack.c.l.b16 %v847
    %v1025 = vunpack.c.l.b16 %v848
    %v1026 = vunpack.c.l.b16 %v849
    %v1027 = vunpack.c.l.b16 %v850
    %v1028 = vunpack.c.l.b16 %v851
    %v1029 = vunpack.c.l.b16 %v852
    %v1030 = vunpack.c.l.b16 %v853
    %v1031 = vunpack.c.l.b16 %v854
    %v1032 = vunpack.c.l.b16 %v855
    %v1033 = vunpack.c.l.b16 %v856
    %v1034 = vunpack.c.l.b16 %v857
    %v1035 = vunpack.c.l.b16 %v858
    %v1036 = vunpack.c.l.b16 %v859
    %v1037 = vunpack.c.l.b16 %v860
    %v1038 = vunpack.c.l.b16 %v861
    %v1039 = vunpack.c.l.b16 %v862
    %v1040 = vunpack.c.l.b16 %v863
    %v1041 = vunpack.c.l.b16 %v864
    %v1042 = vunpack.c.l.b16 %v865
    %v1043 = vunpack.c.l.b16 %v866
    %v1044 = vunpack.c.l.b16 %v867
    %v1045 = vunpack.c.l.b16 %v868
    %v1046 = vunpack.c.l.b16 %v869
    %v1047 = vunpack.c.l.b16 %v870
    %v1048 = vunpack.c.l.b16 %v871
    %v1049 = vunpack.c.l.b16 %v872
    %v1050 = vunpack.c.l.b16 %v873
    %v1051 = vunpack.c.l.b16 %v874
    %v1052 = vunpack.c.l.b16 %v875
    %v1053 = vunpack.c.l.b16 %v876
    %v1054 = vunpack.c.l.b16 %v877
    %v1055 = vunpack.c.l.b16 %v878
    %v1056 = vunpack.c.l.b16 %v879
    %v1057 = vunpack.c.l.b16 %v880
    %v1058 = vunpack.c.l.b16 %v881
    %v1059 = vunpack.c.l.b16 %v882
    %v1060 = vunpack.c.l.b16 %v883
    %v1061 = vunpack.c.l.b16 %v884
    %v1062 = vunpack.c.l.b16 %v885
    %v1063 = vunpack.c.l.b16 %v886
    %v1064 = vunpack.c.l.b16 %v887
    %v1065 = vunpack.c.l.b16 %v888
    %v1066 = vunpack.c.l.b16 %v889
    %v1067 = vunpack.c.l.b16 %v890
    %v1068 = vpack.c.b16 %v989, %v988
    %v1069 = vpack.c.b16 %v991, %v990
    %v1070 = vpack.c.b16 %v993, %v992
    %v1071 = vpack.c.b16 %v995, %v994
    %v1072 = vpack.c.b16 %v997, %v996
    %v1073 = vpack.c.b16 %v999, %v998
    %v1074 = vpack.c.b16 %v1001, %v1000
    %v1075 = vpack.c.b16 %v1003, %v1002
    %v1076 = vpack.c.b16 %v1005, %v1004
    %v1077 = vpack.c.b16 %v1007, %v1006
    %v1078 = vpack.c.b16 %v1009, %v1008
    %v1079 = vpack.c.b16 %v1011, %v1010
    %v1080 = vpack.c.b16 %v1013, %v1012
    %v1081 = vpack.c.b16 %v1015, %v1014
    %v1082 = vpack.c.b16 %v1017, %v1016
    %v1083 = vpack.c.b16 %v1019, %v1018
    %v1084 = vpack.c.b16 %v1021, %v1020
    %v1085 = vpack.c.b16 %v1023, %v1022
    %v1086 = vpack.c.b16 %v1025, %v1024
    %v1087 = vpack.c.b16 %v1027, %v1026
    %v1088 = vpack.c.b16 %v1029, %v1028
    %v1089 = vpack.c.b16 %v1031, %v1030
    %v1090 = vpack.c.b16 %v1033, %v1032
    %v1091 = vpack.c.b16 %v1035, %v1034
    %v1092 = vpack.c.b16 %v1037, %v1036
    %v1093 = vpack.c.b16 %v1039, %v1038
    %v1094 = vpack.c.b16 %v1041, %v1040
    %v1095 = vpack.c.b16 %v1043, %v1042
    %v1096 = vpack.c.b16 %v1045, %v1044
    %v1097 = vpack.c.b16 %v1047, %v1046
    %v1098 = vpack.c.b16 %v1049, %v1048
    %v1099 = vpack.c.b16 %v1051, %v1050
    %v1100 = vpack.c.b16 %v1053, %v1052
    %v1101 = vpack.c.b16 %v1055, %v1054
    %v1102 = vpack.c.b16 %v1057, %v1056
    %v1103 = vpack.c.b16 %v1059, %v1058
    %v1104 = vpack.c.b16 %v1061, %v1060
    %v1105 = vpack.c.b16 %v1063, %v1062
    %v1106 = vpack.c.b16 %v1065, %v1064
    %v1107 = vpack.c.b16 %v1067, %v1066
    %1148 = vmatprep.subr.bf16.mxu0 0
    %1149 = vmatpush1.bf16.msra.mxu0 %v1068
    %1150 = vmatprep.subr.bf16.mxu0 0
    %1151 = vmatpush1.bf16.msra.mxu0 %v1069
    %1152 = vmatprep.subr.bf16.mxu0 0
    %1153 = vmatpush1.bf16.msra.mxu0 %v1070
    %1154 = vmatprep.subr.bf16.mxu0 0
    %1155 = vmatpush1.bf16.msra.mxu0 %v1071
    %1156 = vmatprep.subr.bf16.mxu0 0
    %1157 = vmatpush1.bf16.msra.mxu0 %v1072
    %1158 = vmatprep.subr.bf16.mxu0 0
    %1159 = vmatpush1.bf16.msra.mxu0 %v1073
    %1160 = vmatprep.subr.bf16.mxu0 0
    %1161 = vmatpush1.bf16.msra.mxu0 %v1074
    %1162 = vmatprep.subr.bf16.mxu0 0
    %1163 = vmatpush1.bf16.msra.mxu0 %v1075
    %1164 = vmatprep.subr.bf16.mxu0 0
    %1165 = vmatpush1.bf16.msra.mxu0 %v1076
    %1166 = vmatprep.subr.bf16.mxu0 0
    %1167 = vmatpush1.bf16.msra.mxu0 %v1077
    %1168 = vmatprep.subr.bf16.mxu0 0
    %1169 = vmatpush1.bf16.msra.mxu0 %v1078
    %1170 = vmatprep.subr.bf16.mxu0 0
    %1171 = vmatpush1.bf16.msra.mxu0 %v1079
    %1172 = vmatprep.subr.bf16.mxu0 0
    %1173 = vmatpush1.bf16.msra.mxu0 %v1080
    %1174 = vmatprep.subr.bf16.mxu0 0
    %1175 = vmatpush1.bf16.msra.mxu0 %v1081
    %1176 = vmatprep.subr.bf16.mxu0 0
    %1177 = vmatpush1.bf16.msra.mxu0 %v1082
    %1178 = vmatprep.subr.bf16.mxu0 0
    %1179 = vmatpush1.bf16.msra.mxu0 %v1083
    %1180 = vmatprep.mubr.bf16.mxu0 %v893
    %1181 = vmatmul.mubr.bf16.gmra.mrb[0].mxu0 %v892
    %v1182 = vpop.f32.mrb[0].mxu0
    %v1183 = vadd.f32 %v906, %v1182
    %v1184 = vpop.f32.mrb[0].mxu0
    %v1185 = vpop.f32.mrb[0].mxu0
    %v1186 = vadd.f32 %v906, %v1185
    %v1187 = vpop.f32.mrb[0].mxu0
    %1188 = vmatprep.mubr.bf16.mxu0 %v895
    %1189 = vmatmul.mubr.bf16.gmra.mrb[0].mxu0 %v894
    %v1190 = vpop.f32.mrb[0].mxu0
    %v1191 = vadd.f32 %v906, %v1190
    %v1192 = vpop.f32.mrb[0].mxu0
    %v1193 = vpop.f32.mrb[0].mxu0
    %v1194 = vadd.f32 %v906, %v1193
    %v1195 = vpop.f32.mrb[0].mxu0
    %1196 = vmatprep.mubr.bf16.mxu0 %v897
    %1197 = vmatmul.mubr.bf16.gmra.mrb[0].mxu0 %v896
    %v1198 = vpop.f32.mrb[0].mxu0
    %v1199 = vadd.f32 %v906, %v1198
    %v1200 = vpop.f32.mrb[0].mxu0
    %v1201 = vpop.f32.mrb[0].mxu0
    %v1202 = vadd.f32 %v906, %v1201
    %v1203 = vpop.f32.mrb[0].mxu0
    %1204 = vmatprep.mubr.bf16.mxu0 %v899
    %1205 = vmatmul.mubr.bf16.gmra.mrb[0].mxu0 %v898
    %v1206 = vpop.f32.mrb[0].mxu0
    %v1207 = vadd.f32 %v906, %v1206
    %v1208 = vpop.f32.mrb[0].mxu0
    %v1209 = vpop.f32.mrb[0].mxu0
    %v1210 = vadd.f32 %v906, %v1209
    %v1211 = vpop.f32.mrb[0].mxu0
    %1212 = vdwg.mxu0
    %1213 = vmatprep.subr.bf16.mxu0 0
    %1214 = vmatpush1.bf16.msra.mxu0 %v1084
    %1215 = vmatprep.subr.bf16.mxu0 0
    %1216 = vmatpush1.bf16.msra.mxu0 %v1085
    %1217 = vmatprep.subr.bf16.mxu0 0
    %1218 = vmatpush1.bf16.msra.mxu0 %v1086
    %1219 = vmatprep.subr.bf16.mxu0 0
    %1220 = vmatpush1.bf16.msra.mxu0 %v1087
    %1221 = vmatprep.subr.bf16.mxu0 0
    %1222 = vmatpush1.bf16.msra.mxu0 %v1088
    %1223 = vmatprep.subr.bf16.mxu0 0
    %1224 = vmatpush1.bf16.msra.mxu0 %v1089
    %1225 = vmatprep.subr.bf16.mxu0 0
    %1226 = vmatpush1.bf16.msra.mxu0 %v1090
    %1227 = vmatprep.subr.bf16.mxu0 0
    %1228 = vmatpush1.bf16.msra.mxu0 %v1091
    %1229 = vmatprep.subr.bf16.mxu0 0
    %1230 = vmatpush1.bf16.msra.mxu0 %v1092
    %1231 = vmatprep.subr.bf16.mxu0 0
    %1232 = vmatpush1.bf16.msra.mxu0 %v1093
    %1233 = vmatprep.subr.bf16.mxu0 0
    %1234 = vmatpush1.bf16.msra.mxu0 %v1094
    %1235 = vmatprep.subr.bf16.mxu0 0
    %1236 = vmatpush1.bf16.msra.mxu0 %v1095
    %1237 = vmatprep.subr.bf16.mxu0 0
    %1238 = vmatpush1.bf16.msra.mxu0 %v1096
    %1239 = vmatprep.subr.bf16.mxu0 0
    %1240 = vmatpush1.bf16.msra.mxu0 %v1097
    %1241 = vmatprep.subr.bf16.mxu0 0
    %1242 = vmatpush1.bf16.msra.mxu0 %v1098
    %1243 = vmatprep.subr.bf16.mxu0 0
    %1244 = vmatpush1.bf16.msra.mxu0 %v1099
    %1245 = vmatprep.mubr.bf16.mxu0 %v895
    %1246 = vmatmul.mubr.bf16.gmra.mrb[0].mxu0 %v894
    %v1247 = vpop.f32.mrb[0].mxu0
    %v1248 = vadd.f32 %v1183, %v1247
    %v1249 = vpop.f32.mrb[0].mxu0
    %v1250 = vpop.f32.mrb[0].mxu0
    %v1251 = vadd.f32 %v1186, %v1250
    %v1252 = vpop.f32.mrb[0].mxu0
    %1253 = vmatprep.mubr.bf16.mxu0 %v897
    %1254 = vmatmul.mubr.bf16.gmra.mrb[0].mxu0 %v896
    %v1255 = vpop.f32.mrb[0].mxu0
    %v1256 = vadd.f32 %v1191, %v1255
    %v1257 = vpop.f32.mrb[0].mxu0
    %v1258 = vpop.f32.mrb[0].mxu0
    %v1259 = vadd.f32 %v1194, %v1258
    %v1260 = vpop.f32.mrb[0].mxu0
    %1261 = vmatprep.mubr.bf16.mxu0 %v899
    %1262 = vmatmul.mubr.bf16.gmra.mrb[0].mxu0 %v898
    %v1263 = vpop.f32.mrb[0].mxu0
    %v1264 = vadd.f32 %v1199, %v1263
    %v1265 = vpop.f32.mrb[0].mxu0
    %v1266 = vpop.f32.mrb[0].mxu0
    %v1267 = vadd.f32 %v1202, %v1266
    %v1268 = vpop.f32.mrb[0].mxu0
    %1269 = vmatprep.mubr.bf16.mxu0 %v901
    %1270 = vmatmul.mubr.bf16.gmra.mrb[0].mxu0 %v900
    %v1271 = vpop.f32.mrb[0].mxu0
    %v1272 = vadd.f32 %v1207, %v1271
    %v1273 = vpop.f32.mrb[0].mxu0
    %v1274 = vpop.f32.mrb[0].mxu0
    %v1275 = vadd.f32 %v1210, %v1274
    %v1276 = vpop.f32.mrb[0].mxu0
    %1277 = vdwg.mxu0
    %1278 = vmatprep.subr.bf16.mxu0 0
    %1279 = vmatpush1.bf16.msra.mxu0 %v1100
    %1280 = vmatprep.subr.bf16.mxu0 0
    %1281 = vmatpush1.bf16.msra.mxu0 %v1101
    %1282 = vmatprep.subr.bf16.mxu0 0
    %1283 = vmatpush1.bf16.msra.mxu0 %v1102
    %1284 = vmatprep.subr.bf16.mxu0 0
    %1285 = vmatpush1.bf16.msra.mxu0 %v1103
    %1286 = vmatprep.subr.bf16.mxu0 0
    %1287 = vmatpush1.bf16.msra.mxu0 %v1104
    %1288 = vmatprep.subr.bf16.mxu0 0
    %1289 = vmatpush1.bf16.msra.mxu0 %v1105
    %1290 = vmatprep.subr.bf16.mxu0 0
    %1291 = vmatpush1.bf16.msra.mxu0 %v1106
    %1292 = vmatprep.subr.bf16.mxu0 0
    %1293 = vmatpush1.bf16.msra.mxu0 %v1107
    %1294 = vmatprep.subr.bf16.mxu0 0
    %1295 = vmatpush1.bf16.msra.mxu0 0
    %1296 = vmatprep.subr.bf16.mxu0 0
    %1297 = vmatpush1.bf16.msra.mxu0 0
    %1298 = vmatprep.subr.bf16.mxu0 0
    %1299 = vmatpush1.bf16.msra.mxu0 0
    %1300 = vmatprep.subr.bf16.mxu0 0
    %1301 = vmatpush1.bf16.msra.mxu0 0
    %1302 = vmatprep.subr.bf16.mxu0 0
    %1303 = vmatpush1.bf16.msra.mxu0 0
    %1304 = vmatprep.subr.bf16.mxu0 0
    %1305 = vmatpush1.bf16.msra.mxu0 0
    %1306 = vmatprep.subr.bf16.mxu0 0
    %1307 = vmatpush1.bf16.msra.mxu0 0
    %1308 = vmatprep.subr.bf16.mxu0 0
    %1309 = vmatpush1.bf16.msra.mxu0 0
    %1310 = vmatprep.mubr.bf16.mxu0 0
    %1311 = vmatmul.mubr.bf16.gmra.mrb[0].mxu0 %v896
    %v1312 = vpop.f32.mrb[0].mxu0
    %v1313 = vadd.f32 %v1248, %v1312
    %v1314 = vpop.f32.mrb[0].mxu0
    %v1315 = vpop.f32.mrb[0].mxu0
    %v1316 = vadd.f32 %v1251, %v1315
    %v1317 = vpop.f32.mrb[0].mxu0
    %1318 = vmatprep.mubr.bf16.mxu0 0
    %1319 = vmatmul.mubr.bf16.gmra.mrb[0].mxu0 %v898
    %v1320 = vpop.f32.mrb[0].mxu0
    %v1321 = vadd.f32 %v1256, %v1320
    %v1322 = vpop.f32.mrb[0].mxu0
    %v1323 = vpop.f32.mrb[0].mxu0
    %v1324 = vadd.f32 %v1259, %v1323
    %v1325 = vpop.f32.mrb[0].mxu0
    %1326 = vmatprep.mubr.bf16.mxu0 0
    %1327 = vmatmul.mubr.bf16.gmra.mrb[0].mxu0 %v900
    %v1328 = vpop.f32.mrb[0].mxu0
    %v1329 = vadd.f32 %v1264, %v1328
    %v1330 = vpop.f32.mrb[0].mxu0
    %v1331 = vpop.f32.mrb[0].mxu0
    %v1332 = vadd.f32 %v1267, %v1331
    %v1333 = vpop.f32.mrb[0].mxu0
    %1334 = vmatprep.mubr.bf16.mxu0 0
    %1335 = vmatmul.mubr.bf16.gmra.mrb[0].mxu0 %v892
    %v1336 = vpop.f32.mrb[0].mxu0
    %v1337 = vadd.f32 %v1272, %v1336
    %v1338 = vpop.f32.mrb[0].mxu0
    %v1339 = vpop.f32.mrb[0].mxu0
    %v1340 = vadd.f32 %v1275, %v1339
    %v1341 = vpop.f32.mrb[0].mxu0
    %1342 = vdwg.mxu0
    %v1343 = vmax.f32 %v1313, 0.0
    %v1344 = vmax.f32 %v1316, 0.0
    %v1345 = vmax.f32 %v1321, 0.0
    %v1346 = vmax.f32 %v1324, 0.0
    %v1347 = vmax.f32 %v1329, 0.0
    %v1348 = vmax.f32 %v1332, 0.0
    %v1349 = vmax.f32 %v1337, 0.0
    %v1350 = vmax.f32 %v1340, 0.0
    %v1351 = vld [vmem:[#allocation6] sm:$0xff]
    %v1352 = vld [vmem:[#allocation6 + $0x8] sm:$0xff]
    %v1353 = vld [vmem:[#allocation6 + $0x10] sm:$0xff]
    %v1354 = vld [vmem:[#allocation6 + $0x18] sm:$0xff]
    %v1355 = vld [vmem:[#allocation6 + $0x20] sm:$0xff]
    %v1356 = vld [vmem:[#allocation6 + $0x28] sm:$0xff]
    %v1357 = vld [vmem:[#allocation6 + $0x30] sm:$0xff]
    %v1358 = vld [vmem:[#allocation6 + $0x38] sm:$0xff]
    %v1359 = vld [vmem:[#allocation6 + $0x40] sm:$0xff]
    %v1360 = vld [vmem:[#allocation6 + $0x48] sm:$0xff]
    %v1361 = vld [vmem:[#allocation6 + $0x50] sm:$0xff]
    %v1362 = vld [vmem:[#allocation6 + $0x58] sm:$0xff]
    %v1363 = vld [vmem:[#allocation6 + $0x60] sm:$0xff]
    %v1364 = vld [vmem:[#allocation6 + $0x68] sm:$0xff]
    %v1365 = vld [vmem:[#allocation6 + $0x70] sm:$0xff]
    %v1366 = vld [vmem:[#allocation6 + $0x78] sm:$0xff]
    %v1367 = vld [vmem:[#allocation6 + $0x80] sm:$0xff]
    %v1368 = vld [vmem:[#allocation6 + $0x88] sm:$0xff]
    %v1369 = vld [vmem:[#allocation6 + $0x90] sm:$0xff]
    %v1370 = vld [vmem:[#allocation6 + $0x98] sm:$0xff]
    %v1371 = vld [vmem:[#allocation6 + $0xa0] sm:$0xff]
    %v1372 = vld [vmem:[#allocation6 + $0xa8] sm:$0xff]
    %v1373 = vld [vmem:[#allocation6 + $0xb0] sm:$0xff]
    %v1374 = vld [vmem:[#allocation6 + $0xb8] sm:$0xff]
    %v1375 = vld [vmem:[#allocation6 + $0xc0] sm:$0xff]
    %v1376 = vld [vmem:[#allocation6 + $0xc8] sm:$0xff]
    %v1377 = vld [vmem:[#allocation6 + $0xd0] sm:$0xff]
    %v1378 = vld [vmem:[#allocation6 + $0xd8] sm:$0xff]
    %v1379 = vld [vmem:[#allocation6 + $0xe0] sm:$0xff]
    %v1380 = vld [vmem:[#allocation6 + $0xe8] sm:$0xff]
    %v1381 = vld [vmem:[#allocation6 + $0xf0] sm:$0xff]
    %v1382 = vld [vmem:[#allocation6 + $0xf8] sm:$0xff]
    %v1383 = vld [vmem:[#allocation6 + $0x100] sm:$0xff]
    %v1384 = vld [vmem:[#allocation6 + $0x108] sm:$0xff]
    %v1385 = vld [vmem:[#allocation6 + $0x110] sm:$0xff]
    %v1386 = vld [vmem:[#allocation6 + $0x118] sm:$0xff]
    %v1387 = vld [vmem:[#allocation6 + $0x120] sm:$0xff]
    %v1388 = vld [vmem:[#allocation6 + $0x128] sm:$0xff]
    %v1389 = vld [vmem:[#allocation6 + $0x130] sm:$0xff]
    %v1390 = vld [vmem:[#allocation6 + $0x138] sm:$0xff]
    %v1391 = vld [vmem:[#allocation6 + $0x140] sm:$0xff]
    %v1392 = vld [vmem:[#allocation6 + $0x148] sm:$0xff]
    %v1393 = vld [vmem:[#allocation6 + $0x150] sm:$0xff]
    %v1394 = vld [vmem:[#allocation6 + $0x158] sm:$0xff]
    %v1395 = vld [vmem:[#allocation6 + $0x160] sm:$0xff]
    %v1396 = vld [vmem:[#allocation6 + $0x168] sm:$0xff]
    %v1397 = vld [vmem:[#allocation6 + $0x170] sm:$0xff]
    %v1398 = vld [vmem:[#allocation6 + $0x178] sm:$0xff]
    %v1399 = vld [vmem:[#allocation6 + $0x180] sm:$0xff]
    %v1400 = vld [vmem:[#allocation6 + $0x188] sm:$0xff]
    %v1401 = vld [vmem:[#allocation6 + $0x190] sm:$0xff]
    %v1402 = vld [vmem:[#allocation6 + $0x198] sm:$0xff]
    %v1403 = vld [vmem:[#allocation6 + $0x1a0] sm:$0xff]
    %v1404 = vld [vmem:[#allocation6 + $0x1a8] sm:$0xff]
    %v1405 = vld [vmem:[#allocation6 + $0x1b0] sm:$0xff]
    %v1406 = vld [vmem:[#allocation6 + $0x1b8] sm:$0xff]
    %v1407 = vld [vmem:[#allocation6 + $0x1c0] sm:$0xff]
    %v1408 = vld [vmem:[#allocation6 + $0x1c8] sm:$0xff]
    %v1409 = vld [vmem:[#allocation6 + $0x1d0] sm:$0xff]
    %v1410 = vld [vmem:[#allocation6 + $0x1d8] sm:$0xff]
    %v1411 = vld [vmem:[#allocation6 + $0x1e0] sm:$0xff]
    %v1412 = vld [vmem:[#allocation6 + $0x1e8] sm:$0xff]
    %v1413 = vld [vmem:[#allocation6 + $0x1f0] sm:$0xff]
    %v1414 = vld [vmem:[#allocation6 + $0x1f8] sm:$0xff]
    %v1415 = vld [vmem:[#allocation6 + $0x200] sm:$0xff]
    %v1416 = vld [vmem:[#allocation6 + $0x208] sm:$0xff]
    %v1417 = vld [vmem:[#allocation6 + $0x210] sm:$0xff]
    %v1418 = vld [vmem:[#allocation6 + $0x218] sm:$0xff]
    %v1419 = vld [vmem:[#allocation6 + $0x220] sm:$0xff]
    %v1420 = vld [vmem:[#allocation6 + $0x228] sm:$0xff]
    %v1421 = vld [vmem:[#allocation6 + $0x230] sm:$0xff]
    %v1422 = vld [vmem:[#allocation6 + $0x238] sm:$0xff]
    %v1423 = vld [vmem:[#allocation6 + $0x240] sm:$0xff]
    %v1424 = vld [vmem:[#allocation6 + $0x248] sm:$0xff]
    %v1425 = vld [vmem:[#allocation6 + $0x250] sm:$0xff]
    %v1426 = vld [vmem:[#allocation6 + $0x258] sm:$0xff]
    %v1427 = vld [vmem:[#allocation6 + $0x260] sm:$0xff]
    %v1428 = vld [vmem:[#allocation6 + $0x268] sm:$0xff]
    %v1429 = vld [vmem:[#allocation6 + $0x270] sm:$0xff]
    %v1430 = vld [vmem:[#allocation6 + $0x278] sm:$0xff]
    %v1431 = vld [vmem:[%s8] sm:$0x3]
    %v1432 = vpack.c.bf16 %v1343, 0.0
    %v1433 = vpack.c.bf16 %v1344, %v1343
    %v1434 = vpack.c.bf16 %v1345, %v1344
    %v1435 = vpack.c.bf16 %v1346, %v1345
    %v1436 = vpack.c.bf16 %v1347, %v1346
    %v1437 = vpack.c.bf16 %v1348, %v1347
    %v1438 = vpack.c.bf16 %v1349, %v1348
    %v1439 = vpack.c.bf16 %v1350, %v1349
    %v1440 = vpack.c.bf16 0.0, %v1350
    %v1442 = vlaneseq
    %v1443 = vshrl.u32 %v1442, 7
    %v1444 = vsub.s32 0, %v1443
    %v1445 = vrot.slane %v1431, %v1444
    %v1446 = vlaneseq
    %v1447 = vshrl.u32 %v1446, 7
    %v1448 = vsub.s32 1, %v1447
    %v1449 = vrot.slane %v1431, %v1448
    %v1532 = vunpack.c.l.b16 %v1351
    %v1533 = vunpack.c.h.b16 %v1351
    %v1534 = vunpack.c.l.b16 %v1352
    %v1535 = vunpack.c.h.b16 %v1352
    %v1536 = vunpack.c.l.b16 %v1353
    %v1537 = vunpack.c.h.b16 %v1353
    %v1538 = vunpack.c.l.b16 %v1354
    %v1539 = vunpack.c.h.b16 %v1354
    %v1540 = vunpack.c.l.b16 %v1355
    %v1541 = vunpack.c.h.b16 %v1355
    %v1542 = vunpack.c.l.b16 %v1356
    %v1543 = vunpack.c.h.b16 %v1356
    %v1544 = vunpack.c.l.b16 %v1357
    %v1545 = vunpack.c.h.b16 %v1357
    %v1546 = vunpack.c.l.b16 %v1358
    %v1547 = vunpack.c.h.b16 %v1358
    %v1548 = vunpack.c.l.b16 %v1359
    %v1549 = vunpack.c.h.b16 %v1359
    %v1550 = vunpack.c.l.b16 %v1360
    %v1551 = vunpack.c.h.b16 %v1360
    %v1552 = vunpack.c.l.b16 %v1361
    %v1553 = vunpack.c.h.b16 %v1361
    %v1554 = vunpack.c.l.b16 %v1362
    %v1555 = vunpack.c.h.b16 %v1362
    %v1556 = vunpack.c.l.b16 %v1363
    %v1557 = vunpack.c.h.b16 %v1363
    %v1558 = vunpack.c.l.b16 %v1364
    %v1559 = vunpack.c.h.b16 %v1364
    %v1560 = vunpack.c.l.b16 %v1365
    %v1561 = vunpack.c.h.b16 %v1365
    %v1562 = vunpack.c.l.b16 %v1366
    %v1563 = vunpack.c.h.b16 %v1366
    %v1564 = vunpack.c.l.b16 %v1367
    %v1565 = vunpack.c.h.b16 %v1367
    %v1566 = vunpack.c.l.b16 %v1368
    %v1567 = vunpack.c.h.b16 %v1368
    %v1568 = vunpack.c.l.b16 %v1369
    %v1569 = vunpack.c.h.b16 %v1369
    %v1570 = vunpack.c.l.b16 %v1370
    %v1571 = vunpack.c.h.b16 %v1370
    %v1572 = vunpack.c.l.b16 %v1371
    %v1573 = vunpack.c.h.b16 %v1371
    %v1574 = vunpack.c.l.b16 %v1372
    %v1575 = vunpack.c.h.b16 %v1372
    %v1576 = vunpack.c.l.b16 %v1373
    %v1577 = vunpack.c.h.b16 %v1373
    %v1578 = vunpack.c.l.b16 %v1374
    %v1579 = vunpack.c.h.b16 %v1374
    %v1580 = vunpack.c.l.b16 %v1375
    %v1581 = vunpack.c.h.b16 %v1375
    %v1582 = vunpack.c.l.b16 %v1376
    %v1583 = vunpack.c.h.b16 %v1376
    %v1584 = vunpack.c.l.b16 %v1377
    %v1585 = vunpack.c.h.b16 %v1377
    %v1586 = vunpack.c.l.b16 %v1378
    %v1587 = vunpack.c.h.b16 %v1378
    %v1588 = vunpack.c.l.b16 %v1379
    %v1589 = vunpack.c.h.b16 %v1379
    %v1590 = vunpack.c.l.b16 %v1380
    %v1591 = vunpack.c.h.b16 %v1380
    %v1592 = vunpack.c.l.b16 %v1381
    %v1593 = vunpack.c.h.b16 %v1381
    %v1594 = vunpack.c.l.b16 %v1382
    %v1595 = vunpack.c.h.b16 %v1382
    %v1596 = vunpack.c.l.b16 %v1383
    %v1597 = vunpack.c.h.b16 %v1383
    %v1598 = vunpack.c.l.b16 %v1384
    %v1599 = vunpack.c.h.b16 %v1384
    %v1600 = vunpack.c.l.b16 %v1385
    %v1601 = vunpack.c.h.b16 %v1385
    %v1602 = vunpack.c.l.b16 %v1386
    %v1603 = vunpack.c.h.b16 %v1386
    %v1604 = vunpack.c.l.b16 %v1387
    %v1605 = vunpack.c.h.b16 %v1387
    %v1606 = vunpack.c.l.b16 %v1388
    %v1607 = vunpack.c.h.b16 %v1388
    %v1608 = vunpack.c.l.b16 %v1389
    %v1609 = vunpack.c.h.b16 %v1389
    %v1610 = vunpack.c.l.b16 %v1390
    %v1611 = vunpack.c.h.b16 %v1390
    %v1612 = vunpack.c.l.b16 %v1391
    %v1613 = vunpack.c.h.b16 %v1391
    %v1614 = vunpack.c.l.b16 %v1392
    %v1615 = vunpack.c.h.b16 %v1392
    %v1616 = vunpack.c.l.b16 %v1393
    %v1617 = vunpack.c.h.b16 %v1393
    %v1618 = vunpack.c.l.b16 %v1394
    %v1619 = vunpack.c.h.b16 %v1394
    %v1620 = vunpack.c.l.b16 %v1395
    %v1621 = vunpack.c.h.b16 %v1395
    %v1622 = vunpack.c.l.b16 %v1396
    %v1623 = vunpack.c.h.b16 %v1396
    %v1624 = vunpack.c.l.b16 %v1397
    %v1625 = vunpack.c.h.b16 %v1397
    %v1626 = vunpack.c.l.b16 %v1398
    %v1627 = vunpack.c.h.b16 %v1398
    %v1628 = vunpack.c.l.b16 %v1399
    %v1629 = vunpack.c.h.b16 %v1399
    %v1630 = vunpack.c.l.b16 %v1400
    %v1631 = vunpack.c.h.b16 %v1400
    %v1632 = vunpack.c.l.b16 %v1401
    %v1633 = vunpack.c.h.b16 %v1401
    %v1634 = vunpack.c.l.b16 %v1402
    %v1635 = vunpack.c.h.b16 %v1402
    %v1636 = vunpack.c.l.b16 %v1403
    %v1637 = vunpack.c.h.b16 %v1403
    %v1638 = vunpack.c.l.b16 %v1404
    %v1639 = vunpack.c.h.b16 %v1404
    %v1640 = vunpack.c.l.b16 %v1405
    %v1641 = vunpack.c.h.b16 %v1405
    %v1642 = vunpack.c.l.b16 %v1406
    %v1643 = vunpack.c.h.b16 %v1406
    %v1644 = vunpack.c.l.b16 %v1407
    %v1645 = vunpack.c.h.b16 %v1407
    %v1646 = vunpack.c.l.b16 %v1408
    %v1647 = vunpack.c.h.b16 %v1408
    %v1648 = vunpack.c.l.b16 %v1409
    %v1649 = vunpack.c.h.b16 %v1409
    %v1650 = vunpack.c.l.b16 %v1410
    %v1651 = vunpack.c.h.b16 %v1410
    %v1652 = vunpack.c.l.b16 %v1411
    %v1653 = vunpack.c.h.b16 %v1411
    %v1654 = vunpack.c.l.b16 %v1412
    %v1655 = vunpack.c.h.b16 %v1412
    %v1656 = vunpack.c.l.b16 %v1413
    %v1657 = vunpack.c.h.b16 %v1413
    %v1658 = vunpack.c.l.b16 %v1414
    %v1659 = vunpack.c.h.b16 %v1414
    %v1660 = vunpack.c.l.b16 %v1415
    %v1661 = vunpack.c.h.b16 %v1415
    %v1662 = vunpack.c.l.b16 %v1416
    %v1663 = vunpack.c.h.b16 %v1416
    %v1664 = vunpack.c.l.b16 %v1417
    %v1665 = vunpack.c.h.b16 %v1417
    %v1666 = vunpack.c.l.b16 %v1418
    %v1667 = vunpack.c.h.b16 %v1418
    %v1668 = vunpack.c.l.b16 %v1419
    %v1669 = vunpack.c.h.b16 %v1419
    %v1670 = vunpack.c.l.b16 %v1420
    %v1671 = vunpack.c.h.b16 %v1420
    %v1672 = vunpack.c.l.b16 %v1421
    %v1673 = vunpack.c.h.b16 %v1421
    %v1674 = vunpack.c.l.b16 %v1422
    %v1675 = vunpack.c.h.b16 %v1422
    %v1676 = vunpack.c.l.b16 %v1423
    %v1677 = vunpack.c.h.b16 %v1423
    %v1678 = vunpack.c.l.b16 %v1424
    %v1679 = vunpack.c.h.b16 %v1424
    %v1680 = vunpack.c.l.b16 %v1425
    %v1681 = vunpack.c.h.b16 %v1425
    %v1682 = vunpack.c.l.b16 %v1426
    %v1683 = vunpack.c.h.b16 %v1426
    %v1684 = vunpack.c.l.b16 %v1427
    %v1685 = vunpack.c.h.b16 %v1427
    %v1686 = vunpack.c.l.b16 %v1428
    %v1687 = vunpack.c.h.b16 %v1428
    %v1688 = vunpack.c.l.b16 %v1429
    %v1689 = vunpack.c.h.b16 %v1429
    %v1690 = vunpack.c.l.b16 %v1430
    %v1691 = vunpack.c.h.b16 %v1430
    %v1692 = vpack.c.b16 %v1534, %v1532
    %v1693 = vpack.c.b16 %v1535, %v1533
    %v1694 = vpack.c.b16 %v1538, %v1536
    %v1695 = vpack.c.b16 %v1539, %v1537
    %v1696 = vpack.c.b16 %v1542, %v1540
    %v1697 = vpack.c.b16 %v1543, %v1541
    %v1698 = vpack.c.b16 %v1546, %v1544
    %v1699 = vpack.c.b16 %v1547, %v1545
    %v1700 = vpack.c.b16 %v1550, %v1548
    %v1701 = vpack.c.b16 %v1551, %v1549
    %v1702 = vpack.c.b16 %v1554, %v1552
    %v1703 = vpack.c.b16 %v1555, %v1553
    %v1704 = vpack.c.b16 %v1558, %v1556
    %v1705 = vpack.c.b16 %v1559, %v1557
    %v1706 = vpack.c.b16 %v1562, %v1560
    %v1707 = vpack.c.b16 %v1563, %v1561
    %v1708 = vpack.c.b16 %v1566, %v1564
    %v1709 = vpack.c.b16 %v1567, %v1565
    %v1710 = vpack.c.b16 %v1570, %v1568
    %v1711 = vpack.c.b16 %v1571, %v1569
    %v1712 = vpack.c.b16 %v1574, %v1572
    %v1713 = vpack.c.b16 %v1575, %v1573
    %v1714 = vpack.c.b16 %v1578, %v1576
    %v1715 = vpack.c.b16 %v1579, %v1577
    %v1716 = vpack.c.b16 %v1582, %v1580
    %v1717 = vpack.c.b16 %v1583, %v1581
    %v1718 = vpack.c.b16 %v1586, %v1584
    %v1719 = vpack.c.b16 %v1587, %v1585
    %v1720 = vpack.c.b16 %v1590, %v1588
    %v1721 = vpack.c.b16 %v1591, %v1589
    %v1722 = vpack.c.b16 %v1594, %v1592
    %v1723 = vpack.c.b16 %v1595, %v1593
    %v1724 = vpack.c.b16 %v1598, %v1596
    %v1725 = vpack.c.b16 %v1599, %v1597
    %v1726 = vpack.c.b16 %v1602, %v1600
    %v1727 = vpack.c.b16 %v1603, %v1601
    %v1728 = vpack.c.b16 %v1606, %v1604
    %v1729 = vpack.c.b16 %v1607, %v1605
    %v1730 = vpack.c.b16 %v1610, %v1608
    %v1731 = vpack.c.b16 %v1611, %v1609
    %v1732 = vpack.c.b16 %v1614, %v1612
    %v1733 = vpack.c.b16 %v1615, %v1613
    %v1734 = vpack.c.b16 %v1618, %v1616
    %v1735 = vpack.c.b16 %v1619, %v1617
    %v1736 = vpack.c.b16 %v1622, %v1620
    %v1737 = vpack.c.b16 %v1623, %v1621
    %v1738 = vpack.c.b16 %v1626, %v1624
    %v1739 = vpack.c.b16 %v1627, %v1625
    %v1740 = vpack.c.b16 %v1630, %v1628
    %v1741 = vpack.c.b16 %v1631, %v1629
    %v1742 = vpack.c.b16 %v1634, %v1632
    %v1743 = vpack.c.b16 %v1635, %v1633
    %v1744 = vpack.c.b16 %v1638, %v1636
    %v1745 = vpack.c.b16 %v1639, %v1637
    %v1746 = vpack.c.b16 %v1642, %v1640
    %v1747 = vpack.c.b16 %v1643, %v1641
    %v1748 = vpack.c.b16 %v1646, %v1644
    %v1749 = vpack.c.b16 %v1647, %v1645
    %v1750 = vpack.c.b16 %v1650, %v1648
    %v1751 = vpack.c.b16 %v1651, %v1649
    %v1752 = vpack.c.b16 %v1654, %v1652
    %v1753 = vpack.c.b16 %v1655, %v1653
    %v1754 = vpack.c.b16 %v1658, %v1656
    %v1755 = vpack.c.b16 %v1659, %v1657
    %v1756 = vpack.c.b16 %v1662, %v1660
    %v1757 = vpack.c.b16 %v1663, %v1661
    %v1758 = vpack.c.b16 %v1666, %v1664
    %v1759 = vpack.c.b16 %v1667, %v1665
    %v1760 = vpack.c.b16 %v1670, %v1668
    %v1761 = vpack.c.b16 %v1671, %v1669
    %v1762 = vpack.c.b16 %v1674, %v1672
    %v1763 = vpack.c.b16 %v1675, %v1673
    %v1764 = vpack.c.b16 %v1678, %v1676
    %v1765 = vpack.c.b16 %v1679, %v1677
    %v1766 = vpack.c.b16 %v1682, %v1680
    %v1767 = vpack.c.b16 %v1683, %v1681
    %v1768 = vpack.c.b16 %v1686, %v1684
    %v1769 = vpack.c.b16 %v1687, %v1685
    %v1770 = vpack.c.b16 %v1690, %v1688
    %v1771 = vpack.c.b16 %v1691, %v1689
    %1852 = vmatprep.subr.bf16.mxu0 %v1693
    %1853 = vmatpush1.bf16.msra.mxu0 %v1692
    %1854 = vmatprep.subr.bf16.mxu0 %v1695
    %1855 = vmatpush1.bf16.msra.mxu0 %v1694
    %1856 = vmatprep.subr.bf16.mxu0 %v1697
    %1857 = vmatpush1.bf16.msra.mxu0 %v1696
    %1858 = vmatprep.subr.bf16.mxu0 %v1699
    %1859 = vmatpush1.bf16.msra.mxu0 %v1698
    %1860 = vmatprep.subr.bf16.mxu0 %v1701
    %1861 = vmatpush1.bf16.msra.mxu0 %v1700
    %1862 = vmatprep.subr.bf16.mxu0 %v1703
    %1863 = vmatpush1.bf16.msra.mxu0 %v1702
    %1864 = vmatprep.subr.bf16.mxu0 %v1705
    %1865 = vmatpush1.bf16.msra.mxu0 %v1704
    %1866 = vmatprep.subr.bf16.mxu0 %v1707
    %1867 = vmatpush1.bf16.msra.mxu0 %v1706
    %1868 = vmatprep.subr.bf16.mxu0 %v1709
    %1869 = vmatpush1.bf16.msra.mxu0 %v1708
    %1870 = vmatprep.subr.bf16.mxu0 %v1711
    %1871 = vmatpush1.bf16.msra.mxu0 %v1710
    %1872 = vmatprep.subr.bf16.mxu0 %v1713
    %1873 = vmatpush1.bf16.msra.mxu0 %v1712
    %1874 = vmatprep.subr.bf16.mxu0 %v1715
    %1875 = vmatpush1.bf16.msra.mxu0 %v1714
    %1876 = vmatprep.subr.bf16.mxu0 %v1717
    %1877 = vmatpush1.bf16.msra.mxu0 %v1716
    %1878 = vmatprep.subr.bf16.mxu0 %v1719
    %1879 = vmatpush1.bf16.msra.mxu0 %v1718
    %1880 = vmatprep.subr.bf16.mxu0 %v1721
    %1881 = vmatpush1.bf16.msra.mxu0 %v1720
    %1882 = vmatprep.subr.bf16.mxu0 %v1723
    %1883 = vmatpush1.bf16.msra.mxu0 %v1722
    %1884 = vmatprep.mubr.bf16.mxu0 %v1432
    %1885 = vmatmul.mubr.bf16.gmra.mrb[0].mxu0 %v892
    %v1886 = vpop.f32.mrb[0].mxu0
    %v1887 = vadd.f32 %v1445, %v1886
    %v1888 = vpop.f32.mrb[0].mxu0
    %v1889 = vadd.f32 %v1449, %v1888
    %v1890 = vpop.f32.mrb[0].mxu0
    %v1891 = vadd.f32 %v1445, %v1890
    %v1892 = vpop.f32.mrb[0].mxu0
    %v1893 = vadd.f32 %v1449, %v1892
    %1894 = vmatprep.mubr.bf16.mxu0 %v1434
    %1895 = vmatmul.mubr.bf16.gmra.mrb[0].mxu0 %v1433
    %v1896 = vpop.f32.mrb[0].mxu0
    %v1897 = vadd.f32 %v1445, %v1896
    %v1898 = vpop.f32.mrb[0].mxu0
    %v1899 = vadd.f32 %v1449, %v1898
    %v1900 = vpop.f32.mrb[0].mxu0
    %v1901 = vadd.f32 %v1445, %v1900
    %v1902 = vpop.f32.mrb[0].mxu0
    %v1903 = vadd.f32 %v1449, %v1902
    %1904 = vmatprep.mubr.bf16.mxu0 %v1436
    %1905 = vmatmul.mubr.bf16.gmra.mrb[0].mxu0 %v1435
    %v1906 = vpop.f32.mrb[0].mxu0
    %v1907 = vadd.f32 %v1445, %v1906
    %v1908 = vpop.f32.mrb[0].mxu0
    %v1909 = vadd.f32 %v1449, %v1908
    %v1910 = vpop.f32.mrb[0].mxu0
    %v1911 = vadd.f32 %v1445, %v1910
    %v1912 = vpop.f32.mrb[0].mxu0
    %v1913 = vadd.f32 %v1449, %v1912
    %1914 = vmatprep.mubr.bf16.mxu0 %v1438
    %1915 = vmatmul.mubr.bf16.gmra.mrb[0].mxu0 %v1437
    %v1916 = vpop.f32.mrb[0].mxu0
    %v1917 = vadd.f32 %v1445, %v1916
    %v1918 = vpop.f32.mrb[0].mxu0
    %v1919 = vadd.f32 %v1449, %v1918
    %v1920 = vpop.f32.mrb[0].mxu0
    %v1921 = vadd.f32 %v1445, %v1920
    %v1922 = vpop.f32.mrb[0].mxu0
    %v1923 = vadd.f32 %v1449, %v1922
    %1924 = vdwg.mxu0
    %1925 = vmatprep.subr.bf16.mxu0 %v1725
    %1926 = vmatpush1.bf16.msra.mxu0 %v1724
    %1927 = vmatprep.subr.bf16.mxu0 %v1727
    %1928 = vmatpush1.bf16.msra.mxu0 %v1726
    %1929 = vmatprep.subr.bf16.mxu0 %v1729
    %1930 = vmatpush1.bf16.msra.mxu0 %v1728
    %1931 = vmatprep.subr.bf16.mxu0 %v1731
    %1932 = vmatpush1.bf16.msra.mxu0 %v1730
    %1933 = vmatprep.subr.bf16.mxu0 %v1733
    %1934 = vmatpush1.bf16.msra.mxu0 %v1732
    %1935 = vmatprep.subr.bf16.mxu0 %v1735
    %1936 = vmatpush1.bf16.msra.mxu0 %v1734
    %1937 = vmatprep.subr.bf16.mxu0 %v1737
    %1938 = vmatpush1.bf16.msra.mxu0 %v1736
    %1939 = vmatprep.subr.bf16.mxu0 %v1739
    %1940 = vmatpush1.bf16.msra.mxu0 %v1738
    %1941 = vmatprep.subr.bf16.mxu0 %v1741
    %1942 = vmatpush1.bf16.msra.mxu0 %v1740
    %1943 = vmatprep.subr.bf16.mxu0 %v1743
    %1944 = vmatpush1.bf16.msra.mxu0 %v1742
    %1945 = vmatprep.subr.bf16.mxu0 %v1745
    %1946 = vmatpush1.bf16.msra.mxu0 %v1744
    %1947 = vmatprep.subr.bf16.mxu0 %v1747
    %1948 = vmatpush1.bf16.msra.mxu0 %v1746
    %1949 = vmatprep.subr.bf16.mxu0 %v1749
    %1950 = vmatpush1.bf16.msra.mxu0 %v1748
    %1951 = vmatprep.subr.bf16.mxu0 %v1751
    %1952 = vmatpush1.bf16.msra.mxu0 %v1750
    %1953 = vmatprep.subr.bf16.mxu0 %v1753
    %1954 = vmatpush1.bf16.msra.mxu0 %v1752
    %1955 = vmatprep.subr.bf16.mxu0 %v1755
    %1956 = vmatpush1.bf16.msra.mxu0 %v1754
    %1957 = vmatprep.mubr.bf16.mxu0 %v1434
    %1958 = vmatmul.mubr.bf16.gmra.mrb[0].mxu0 %v1433
    %v1959 = vpop.f32.mrb[0].mxu0
    %v1960 = vadd.f32 %v1887, %v1959
    %v1961 = vpop.f32.mrb[0].mxu0
    %v1962 = vadd.f32 %v1889, %v1961
    %v1963 = vpop.f32.mrb[0].mxu0
    %v1964 = vadd.f32 %v1891, %v1963
    %v1965 = vpop.f32.mrb[0].mxu0
    %v1966 = vadd.f32 %v1893, %v1965
    %1967 = vmatprep.mubr.bf16.mxu0 %v1436
    %1968 = vmatmul.mubr.bf16.gmra.mrb[0].mxu0 %v1435
    %v1969 = vpop.f32.mrb[0].mxu0
    %v1970 = vadd.f32 %v1897, %v1969
    %v1971 = vpop.f32.mrb[0].mxu0
    %v1972 = vadd.f32 %v1899, %v1971
    %v1973 = vpop.f32.mrb[0].mxu0
    %v1974 = vadd.f32 %v1901, %v1973
    %v1975 = vpop.f32.mrb[0].mxu0
    %v1976 = vadd.f32 %v1903, %v1975
    %1977 = vmatprep.mubr.bf16.mxu0 %v1438
    %1978 = vmatmul.mubr.bf16.gmra.mrb[0].mxu0 %v1437
    %v1979 = vpop.f32.mrb[0].mxu0
    %v1980 = vadd.f32 %v1907, %v1979
    %v1981 = vpop.f32.mrb[0].mxu0
    %v1982 = vadd.f32 %v1909, %v1981
    %v1983 = vpop.f32.mrb[0].mxu0
    %v1984 = vadd.f32 %v1911, %v1983
    %v1985 = vpop.f32.mrb[0].mxu0
    %v1986 = vadd.f32 %v1913, %v1985
    %1987 = vmatprep.mubr.bf16.mxu0 %v1440
    %1988 = vmatmul.mubr.bf16.gmra.mrb[0].mxu0 %v1439
    %v1989 = vpop.f32.mrb[0].mxu0
    %v1990 = vadd.f32 %v1917, %v1989
    %v1991 = vpop.f32.mrb[0].mxu0
    %v1992 = vadd.f32 %v1919, %v1991
    %v1993 = vpop.f32.mrb[0].mxu0
    %v1994 = vadd.f32 %v1921, %v1993
    %v1995 = vpop.f32.mrb[0].mxu0
    %v1996 = vadd.f32 %v1923, %v1995
    %1997 = vdwg.mxu0
    %1998 = vmatprep.subr.bf16.mxu0 %v1757
    %1999 = vmatpush1.bf16.msra.mxu0 %v1756
    %2000 = vmatprep.subr.bf16.mxu0 %v1759
    %2001 = vmatpush1.bf16.msra.mxu0 %v1758
    %2002 = vmatprep.subr.bf16.mxu0 %v1761
    %2003 = vmatpush1.bf16.msra.mxu0 %v1760
    %2004 = vmatprep.subr.bf16.mxu0 %v1763
    %2005 = vmatpush1.bf16.msra.mxu0 %v1762
    %2006 = vmatprep.subr.bf16.mxu0 %v1765
    %2007 = vmatpush1.bf16.msra.mxu0 %v1764
    %2008 = vmatprep.subr.bf16.mxu0 %v1767
    %2009 = vmatpush1.bf16.msra.mxu0 %v1766
    %2010 = vmatprep.subr.bf16.mxu0 %v1769
    %2011 = vmatpush1.bf16.msra.mxu0 %v1768
    %2012 = vmatprep.subr.bf16.mxu0 %v1771
    %2013 = vmatpush1.bf16.msra.mxu0 %v1770
    %2014 = vmatprep.subr.bf16.mxu0 0
    %2015 = vmatpush1.bf16.msra.mxu0 0
    %2016 = vmatprep.subr.bf16.mxu0 0
    %2017 = vmatpush1.bf16.msra.mxu0 0
    %2018 = vmatprep.subr.bf16.mxu0 0
    %2019 = vmatpush1.bf16.msra.mxu0 0
    %2020 = vmatprep.subr.bf16.mxu0 0
    %2021 = vmatpush1.bf16.msra.mxu0 0
    %2022 = vmatprep.subr.bf16.mxu0 0
    %2023 = vmatpush1.bf16.msra.mxu0 0
    %2024 = vmatprep.subr.bf16.mxu0 0
    %2025 = vmatpush1.bf16.msra.mxu0 0
    %2026 = vmatprep.subr.bf16.mxu0 0
    %2027 = vmatpush1.bf16.msra.mxu0 0
    %2028 = vmatprep.subr.bf16.mxu0 0
    %2029 = vmatpush1.bf16.msra.mxu0 0
    %2030 = vmatprep.mubr.bf16.mxu0 0
    %2031 = vmatmul.mubr.bf16.gmra.mrb[0].mxu0 %v1435
    %v2032 = vpop.f32.mrb[0].mxu0
    %v2033 = vadd.f32 %v1960, %v2032
    %v2034 = vpop.f32.mrb[0].mxu0
    %v2035 = vadd.f32 %v1962, %v2034
    %v2036 = vpop.f32.mrb[0].mxu0
    %v2037 = vadd.f32 %v1964, %v2036
    %v2038 = vpop.f32.mrb[0].mxu0
    %v2039 = vadd.f32 %v1966, %v2038
    %2040 = vmatprep.mubr.bf16.mxu0 0
    %2041 = vmatmul.mubr.bf16.gmra.mrb[0].mxu0 %v1437
    %v2042 = vpop.f32.mrb[0].mxu0
    %v2043 = vadd.f32 %v1970, %v2042
    %v2044 = vpop.f32.mrb[0].mxu0
    %v2045 = vadd.f32 %v1972, %v2044
    %v2046 = vpop.f32.mrb[0].mxu0
    %v2047 = vadd.f32 %v1974, %v2046
    %v2048 = vpop.f32.mrb[0].mxu0
    %v2049 = vadd.f32 %v1976, %v2048
    %2050 = vmatprep.mubr.bf16.mxu0 0
    %2051 = vmatmul.mubr.bf16.gmra.mrb[0].mxu0 %v1439
    %v2052 = vpop.f32.mrb[0].mxu0
    %v2053 = vadd.f32 %v1980, %v2052
    %v2054 = vpop.f32.mrb[0].mxu0
    %v2055 = vadd.f32 %v1982, %v2054
    %v2056 = vpop.f32.mrb[0].mxu0
    %v2057 = vadd.f32 %v1984, %v2056
    %v2058 = vpop.f32.mrb[0].mxu0
    %v2059 = vadd.f32 %v1986, %v2058
    %2060 = vmatprep.mubr.bf16.mxu0 0
    %2061 = vmatmul.mubr.bf16.gmra.mrb[0].mxu0 %v892
    %v2062 = vpop.f32.mrb[0].mxu0
    %v2063 = vadd.f32 %v1990, %v2062
    %v2064 = vpop.f32.mrb[0].mxu0
    %v2065 = vadd.f32 %v1992, %v2064
    %v2066 = vpop.f32.mrb[0].mxu0
    %v2067 = vadd.f32 %v1994, %v2066
    %v2068 = vpop.f32.mrb[0].mxu0
    %v2069 = vadd.f32 %v1996, %v2068
    %2070 = vdwg.mxu0
    %v2071 = vmax.f32 %v2033, 0.0
    %v2072 = vmax.f32 %v2035, 0.0
    %v2073 = vmax.f32 %v2037, 0.0
    %v2074 = vmax.f32 %v2039, 0.0
    %v2075 = vmax.f32 %v2043, 0.0
    %v2076 = vmax.f32 %v2045, 0.0
    %v2077 = vmax.f32 %v2047, 0.0
    %v2078 = vmax.f32 %v2049, 0.0
    %v2079 = vmax.f32 %v2053, 0.0
    %v2080 = vmax.f32 %v2055, 0.0
    %v2081 = vmax.f32 %v2057, 0.0
    %v2082 = vmax.f32 %v2059, 0.0
    %v2083 = vmax.f32 %v2063, 0.0
    %v2084 = vmax.f32 %v2065, 0.0
    %v2085 = vmax.f32 %v2067, 0.0
    %v2086 = vmax.f32 %v2069, 0.0
    %v2087 = vmax.f32 %v2071, %v2073
    %v2088 = vmax.f32 %v2072, %v2074
    %v2089 = vmax.f32 %v2075, %v2077
    %v2090 = vmax.f32 %v2076, %v2078
    %v2091 = vmax.f32 %v2079, %v2081
    %v2092 = vmax.f32 %v2080, %v2082
    %v2093 = vmax.f32 %v2083, %v2085
    %v2094 = vmax.f32 %v2084, %v2086
    %v2095 = vpack.c.bf16 %v2089, %v2087
    %v2096 = vpack.c.bf16 %v2090, %v2088
    %v2097 = vpack.c.bf16 %v2093, %v2091
    %v2098 = vpack.c.bf16 %v2094, %v2092
    %v2099 = vld [vmem:[#allocation9] sm:$0xff]
    %v2100 = vld [vmem:[#allocation9 + $0x8] sm:$0xff]
    %v2101 = vld [vmem:[#allocation9 + $0x10] sm:$0xff]
    %v2102 = vld [vmem:[#allocation9 + $0x18] sm:$0xff]
    %v2103 = vld [vmem:[#allocation9 + $0x20] sm:$0xff]
    %v2104 = vld [vmem:[#allocation9 + $0x28] sm:$0xff]
    %v2105 = vld [vmem:[#allocation9 + $0x30] sm:$0xff]
    %v2106 = vld [vmem:[#allocation9 + $0x38] sm:$0xff]
    %v2107 = vld [vmem:[#allocation9 + $0x40] sm:$0xff]
    %v2108 = vld [vmem:[#allocation9 + $0x48] sm:$0xff]
    %v2109 = vld [vmem:[#allocation9 + $0x50] sm:$0xff]
    %v2110 = vld [vmem:[#allocation9 + $0x58] sm:$0xff]
    %v2111 = vld [vmem:[#allocation9 + $0x60] sm:$0xff]
    %v2112 = vld [vmem:[#allocation9 + $0x68] sm:$0xff]
    %v2113 = vld [vmem:[#allocation9 + $0x70] sm:$0xff]
    %v2114 = vld [vmem:[#allocation9 + $0x78] sm:$0xff]
    %v2115 = vld [vmem:[#allocation9 + $0x80] sm:$0xff]
    %v2116 = vld [vmem:[#allocation9 + $0x88] sm:$0xff]
    %v2117 = vld [vmem:[#allocation9 + $0x90] sm:$0xff]
    %v2118 = vld [vmem:[#allocation9 + $0x98] sm:$0xff]
    %v2119 = vld [vmem:[#allocation9 + $0xa0] sm:$0xff]
    %v2120 = vld [vmem:[#allocation9 + $0xa8] sm:$0xff]
    %v2121 = vld [vmem:[#allocation9 + $0xb0] sm:$0xff]
    %v2122 = vld [vmem:[#allocation9 + $0xb8] sm:$0xff]
    %v2123 = vld [vmem:[#allocation9 + $0xc0] sm:$0xff]
    %v2124 = vld [vmem:[#allocation9 + $0xc8] sm:$0xff]
    %v2125 = vld [vmem:[#allocation9 + $0xd0] sm:$0xff]
    %v2126 = vld [vmem:[#allocation9 + $0xd8] sm:$0xff]
    %v2127 = vld [vmem:[#allocation9 + $0xe0] sm:$0xff]
    %v2128 = vld [vmem:[#allocation9 + $0xe8] sm:$0xff]
    %v2129 = vld [vmem:[#allocation9 + $0xf0] sm:$0xff]
    %v2130 = vld [vmem:[#allocation9 + $0xf8] sm:$0xff]
    %v2131 = vld [vmem:[#allocation8] sm:$0xff]
    %v2132 = vld [vmem:[#allocation8 + $0x8] sm:$0xff]
    %v2133 = vld [vmem:[#allocation8 + $0x10] sm:$0xff]
    %v2134 = vld [vmem:[#allocation8 + $0x18] sm:$0xff]
    %v2135 = vld [vmem:[#allocation8 + $0x20] sm:$0xff]
    %v2136 = vld [vmem:[#allocation8 + $0x28] sm:$0xff]
    %v2137 = vld [vmem:[#allocation8 + $0x30] sm:$0xff]
    %v2138 = vld [vmem:[#allocation8 + $0x38] sm:$0xff]
    %v2139 = vld [vmem:[#allocation8 + $0x40] sm:$0xff]
    %v2140 = vld [vmem:[#allocation8 + $0x48] sm:$0xff]
    %v2141 = vld [vmem:[#allocation8 + $0x50] sm:$0xff]
    %v2142 = vld [vmem:[#allocation8 + $0x58] sm:$0xff]
    %v2143 = vld [vmem:[#allocation8 + $0x60] sm:$0xff]
    %v2144 = vld [vmem:[#allocation8 + $0x68] sm:$0xff]
    %v2145 = vld [vmem:[#allocation8 + $0x70] sm:$0xff]
    %v2146 = vld [vmem:[#allocation8 + $0x78] sm:$0xff]
    %v2147 = vld [vmem:[#allocation8 + $0x80] sm:$0xff]
    %v2148 = vld [vmem:[#allocation8 + $0x88] sm:$0xff]
    %v2149 = vld [vmem:[#allocation8 + $0x90] sm:$0xff]
    %v2150 = vld [vmem:[#allocation8 + $0x98] sm:$0xff]
    %v2151 = vld [vmem:[#allocation8 + $0xa0] sm:$0xff]
    %v2152 = vld [vmem:[#allocation8 + $0xa8] sm:$0xff]
    %v2153 = vld [vmem:[#allocation8 + $0xb0] sm:$0xff]
    %v2154 = vld [vmem:[#allocation8 + $0xb8] sm:$0xff]
    %v2155 = vld [vmem:[#allocation8 + $0xc0] sm:$0xff]
    %v2156 = vld [vmem:[#allocation8 + $0xc8] sm:$0xff]
    %v2157 = vld [vmem:[#allocation8 + $0xd0] sm:$0xff]
    %v2158 = vld [vmem:[#allocation8 + $0xd8] sm:$0xff]
    %v2159 = vld [vmem:[#allocation8 + $0xe0] sm:$0xff]
    %v2160 = vld [vmem:[#allocation8 + $0xe8] sm:$0xff]
    %v2161 = vld [vmem:[#allocation8 + $0xf0] sm:$0xff]
    %v2162 = vld [vmem:[#allocation8 + $0xf8] sm:$0xff]
    %v2163 = vld [vmem:[#allocation8 + $0x100] sm:$0xff]
    %v2164 = vld [vmem:[#allocation8 + $0x108] sm:$0xff]
    %v2165 = vld [vmem:[#allocation8 + $0x110] sm:$0xff]
    %v2166 = vld [vmem:[#allocation8 + $0x118] sm:$0xff]
    %v2167 = vld [vmem:[#allocation8 + $0x120] sm:$0xff]
    %v2168 = vld [vmem:[#allocation8 + $0x128] sm:$0xff]
    %v2169 = vld [vmem:[#allocation8 + $0x130] sm:$0xff]
    %v2170 = vld [vmem:[#allocation8 + $0x138] sm:$0xff]
    %v2171 = vld [vmem:[#allocation8 + $0x140] sm:$0xff]
    %v2172 = vld [vmem:[#allocation8 + $0x148] sm:$0xff]
    %v2173 = vld [vmem:[#allocation8 + $0x150] sm:$0xff]
    %v2174 = vld [vmem:[#allocation8 + $0x158] sm:$0xff]
    %v2175 = vld [vmem:[#allocation8 + $0x160] sm:$0xff]
    %v2176 = vld [vmem:[#allocation8 + $0x168] sm:$0xff]
    %v2177 = vld [vmem:[#allocation8 + $0x170] sm:$0xff]
    %v2178 = vld [vmem:[#allocation8 + $0x178] sm:$0xff]
    %v2179 = vld [vmem:[#allocation8 + $0x180] sm:$0xff]
    %v2180 = vld [vmem:[#allocation8 + $0x188] sm:$0xff]
    %v2181 = vld [vmem:[#allocation8 + $0x190] sm:$0xff]
    %v2182 = vld [vmem:[#allocation8 + $0x198] sm:$0xff]
    %v2183 = vld [vmem:[#allocation8 + $0x1a0] sm:$0xff]
    %v2184 = vld [vmem:[#allocation8 + $0x1a8] sm:$0xff]
    %v2185 = vld [vmem:[#allocation8 + $0x1b0] sm:$0xff]
    %v2186 = vld [vmem:[#allocation8 + $0x1b8] sm:$0xff]
    %v2187 = vld [vmem:[#allocation8 + $0x1c0] sm:$0xff]
    %v2188 = vld [vmem:[#allocation8 + $0x1c8] sm:$0xff]
    %v2189 = vld [vmem:[#allocation8 + $0x1d0] sm:$0xff]
    %v2190 = vld [vmem:[#allocation8 + $0x1d8] sm:$0xff]
    %v2191 = vld [vmem:[#allocation8 + $0x1e0] sm:$0xff]
    %v2192 = vld [vmem:[#allocation8 + $0x1e8] sm:$0xff]
    %v2193 = vld [vmem:[#allocation8 + $0x1f0] sm:$0xff]
    %v2194 = vld [vmem:[#allocation8 + $0x1f8] sm:$0xff]
    %v2195 = vld [vmem:[%s11] sm:$0xf]
    %v2197 = vlaneseq
    %v2198 = vshrl.u32 %v2197, 7
    %v2199 = vsub.s32 0, %v2198
    %v2200 = vrot.slane %v2195, %v2199
    %v2201 = vlaneseq
    %v2202 = vshrl.u32 %v2201, 7
    %v2203 = vsub.s32 1, %v2202
    %v2204 = vrot.slane %v2195, %v2203
    %v2205 = vlaneseq
    %v2206 = vshrl.u32 %v2205, 7
    %v2207 = vsub.s32 2, %v2206
    %v2208 = vrot.slane %v2195, %v2207
    %v2209 = vlaneseq
    %v2210 = vshrl.u32 %v2209, 7
    %v2211 = vsub.s32 3, %v2210
    %v2212 = vrot.slane %v2195, %v2211
    %v2281 = vunpack.c.l.b16 %v2131
    %v2282 = vunpack.c.h.b16 %v2131
    %v2283 = vunpack.c.l.b16 %v2132
    %v2284 = vunpack.c.h.b16 %v2132
    %v2285 = vunpack.c.l.b16 %v2133
    %v2286 = vunpack.c.h.b16 %v2133
    %v2287 = vunpack.c.l.b16 %v2134
    %v2288 = vunpack.c.h.b16 %v2134
    %v2289 = vunpack.c.l.b16 %v2135
    %v2290 = vunpack.c.h.b16 %v2135
    %v2291 = vunpack.c.l.b16 %v2136
    %v2292 = vunpack.c.h.b16 %v2136
    %v2293 = vunpack.c.l.b16 %v2137
    %v2294 = vunpack.c.h.b16 %v2137
    %v2295 = vunpack.c.l.b16 %v2138
    %v2296 = vunpack.c.h.b16 %v2138
    %v2297 = vunpack.c.l.b16 %v2139
    %v2298 = vunpack.c.h.b16 %v2139
    %v2299 = vunpack.c.l.b16 %v2140
    %v2300 = vunpack.c.h.b16 %v2140
    %v2301 = vunpack.c.l.b16 %v2141
    %v2302 = vunpack.c.h.b16 %v2141
    %v2303 = vunpack.c.l.b16 %v2142
    %v2304 = vunpack.c.h.b16 %v2142
    %v2305 = vunpack.c.l.b16 %v2143
    %v2306 = vunpack.c.h.b16 %v2143
    %v2307 = vunpack.c.l.b16 %v2144
    %v2308 = vunpack.c.h.b16 %v2144
    %v2309 = vunpack.c.l.b16 %v2145
    %v2310 = vunpack.c.h.b16 %v2145
    %v2311 = vunpack.c.l.b16 %v2146
    %v2312 = vunpack.c.h.b16 %v2146
    %v2313 = vunpack.c.l.b16 %v2147
    %v2314 = vunpack.c.h.b16 %v2147
    %v2315 = vunpack.c.l.b16 %v2148
    %v2316 = vunpack.c.h.b16 %v2148
    %v2317 = vunpack.c.l.b16 %v2149
    %v2318 = vunpack.c.h.b16 %v2149
    %v2319 = vunpack.c.l.b16 %v2150
    %v2320 = vunpack.c.h.b16 %v2150
    %v2321 = vunpack.c.l.b16 %v2151
    %v2322 = vunpack.c.h.b16 %v2151
    %v2323 = vunpack.c.l.b16 %v2152
    %v2324 = vunpack.c.h.b16 %v2152
    %v2325 = vunpack.c.l.b16 %v2153
    %v2326 = vunpack.c.h.b16 %v2153
    %v2327 = vunpack.c.l.b16 %v2154
    %v2328 = vunpack.c.h.b16 %v2154
    %v2329 = vunpack.c.l.b16 %v2155
    %v2330 = vunpack.c.h.b16 %v2155
    %v2331 = vunpack.c.l.b16 %v2156
    %v2332 = vunpack.c.h.b16 %v2156
    %v2333 = vunpack.c.l.b16 %v2157
    %v2334 = vunpack.c.h.b16 %v2157
    %v2335 = vunpack.c.l.b16 %v2158
    %v2336 = vunpack.c.h.b16 %v2158
    %v2337 = vunpack.c.l.b16 %v2159
    %v2338 = vunpack.c.h.b16 %v2159
    %v2339 = vunpack.c.l.b16 %v2160
    %v2340 = vunpack.c.h.b16 %v2160
    %v2341 = vunpack.c.l.b16 %v2161
    %v2342 = vunpack.c.h.b16 %v2161
    %v2343 = vunpack.c.l.b16 %v2162
    %v2344 = vunpack.c.h.b16 %v2162
    %v2345 = vunpack.c.l.b16 %v2163
    %v2346 = vunpack.c.h.b16 %v2163
    %v2347 = vunpack.c.l.b16 %v2164
    %v2348 = vunpack.c.h.b16 %v2164
    %v2349 = vunpack.c.l.b16 %v2165
    %v2350 = vunpack.c.h.b16 %v2165
    %v2351 = vunpack.c.l.b16 %v2166
    %v2352 = vunpack.c.h.b16 %v2166
    %v2353 = vunpack.c.l.b16 %v2167
    %v2354 = vunpack.c.h.b16 %v2167
    %v2355 = vunpack.c.l.b16 %v2168
    %v2356 = vunpack.c.h.b16 %v2168
    %v2357 = vunpack.c.l.b16 %v2169
    %v2358 = vunpack.c.h.b16 %v2169
    %v2359 = vunpack.c.l.b16 %v2170
    %v2360 = vunpack.c.h.b16 %v2170
    %v2361 = vunpack.c.l.b16 %v2171
    %v2362 = vunpack.c.h.b16 %v2171
    %v2363 = vunpack.c.l.b16 %v2172
    %v2364 = vunpack.c.h.b16 %v2172
    %v2365 = vunpack.c.l.b16 %v2173
    %v2366 = vunpack.c.h.b16 %v2173
    %v2367 = vunpack.c.l.b16 %v2174
    %v2368 = vunpack.c.h.b16 %v2174
    %v2369 = vunpack.c.l.b16 %v2175
    %v2370 = vunpack.c.h.b16 %v2175
    %v2371 = vunpack.c.l.b16 %v2176
    %v2372 = vunpack.c.h.b16 %v2176
    %v2373 = vunpack.c.l.b16 %v2177
    %v2374 = vunpack.c.h.b16 %v2177
    %v2375 = vunpack.c.l.b16 %v2178
    %v2376 = vunpack.c.h.b16 %v2178
    %v2377 = vunpack.c.l.b16 %v2179
    %v2378 = vunpack.c.h.b16 %v2179
    %v2379 = vunpack.c.l.b16 %v2180
    %v2380 = vunpack.c.h.b16 %v2180
    %v2381 = vunpack.c.l.b16 %v2181
    %v2382 = vunpack.c.h.b16 %v2181
    %v2383 = vunpack.c.l.b16 %v2182
    %v2384 = vunpack.c.h.b16 %v2182
    %v2385 = vunpack.c.l.b16 %v2183
    %v2386 = vunpack.c.h.b16 %v2183
    %v2387 = vunpack.c.l.b16 %v2184
    %v2388 = vunpack.c.h.b16 %v2184
    %v2389 = vunpack.c.l.b16 %v2185
    %v2390 = vunpack.c.h.b16 %v2185
    %v2391 = vunpack.c.l.b16 %v2186
    %v2392 = vunpack.c.h.b16 %v2186
    %v2393 = vunpack.c.l.b16 %v2187
    %v2394 = vunpack.c.h.b16 %v2187
    %v2395 = vunpack.c.l.b16 %v2188
    %v2396 = vunpack.c.h.b16 %v2188
    %v2397 = vunpack.c.l.b16 %v2189
    %v2398 = vunpack.c.h.b16 %v2189
    %v2399 = vunpack.c.l.b16 %v2190
    %v2400 = vunpack.c.h.b16 %v2190
    %v2401 = vunpack.c.l.b16 %v2191
    %v2402 = vunpack.c.h.b16 %v2191
    %v2403 = vunpack.c.l.b16 %v2192
    %v2404 = vunpack.c.h.b16 %v2192
    %v2405 = vunpack.c.l.b16 %v2193
    %v2406 = vunpack.c.h.b16 %v2193
    %v2407 = vunpack.c.l.b16 %v2194
    %v2408 = vunpack.c.h.b16 %v2194
    %v2409 = vpack.c.b16 %v2285, %v2281
    %v2410 = vpack.c.b16 %v2286, %v2282
    %v2411 = vpack.c.b16 %v2287, %v2283
    %v2412 = vpack.c.b16 %v2288, %v2284
    %v2413 = vpack.c.b16 %v2293, %v2289
    %v2414 = vpack.c.b16 %v2294, %v2290
    %v2415 = vpack.c.b16 %v2295, %v2291
    %v2416 = vpack.c.b16 %v2296, %v2292
    %v2417 = vpack.c.b16 %v2301, %v2297
    %v2418 = vpack.c.b16 %v2302, %v2298
    %v2419 = vpack.c.b16 %v2303, %v2299
    %v2420 = vpack.c.b16 %v2304, %v2300
    %v2421 = vpack.c.b16 %v2309, %v2305
    %v2422 = vpack.c.b16 %v2310, %v2306
    %v2423 = vpack.c.b16 %v2311, %v2307
    %v2424 = vpack.c.b16 %v2312, %v2308
    %v2425 = vpack.c.b16 %v2317, %v2313
    %v2426 = vpack.c.b16 %v2318, %v2314
    %v2427 = vpack.c.b16 %v2319, %v2315
    %v2428 = vpack.c.b16 %v2320, %v2316
    %v2429 = vpack.c.b16 %v2325, %v2321
    %v2430 = vpack.c.b16 %v2326, %v2322
    %v2431 = vpack.c.b16 %v2327, %v2323
    %v2432 = vpack.c.b16 %v2328, %v2324
    %v2433 = vpack.c.b16 %v2333, %v2329
    %v2434 = vpack.c.b16 %v2334, %v2330
    %v2435 = vpack.c.b16 %v2335, %v2331
    %v2436 = vpack.c.b16 %v2336, %v2332
    %v2437 = vpack.c.b16 %v2341, %v2337
    %v2438 = vpack.c.b16 %v2342, %v2338
    %v2439 = vpack.c.b16 %v2343, %v2339
    %v2440 = vpack.c.b16 %v2344, %v2340
    %v2441 = vpack.c.b16 %v2349, %v2345
    %v2442 = vpack.c.b16 %v2350, %v2346
    %v2443 = vpack.c.b16 %v2351, %v2347
    %v2444 = vpack.c.b16 %v2352, %v2348
    %v2445 = vpack.c.b16 %v2357, %v2353
    %v2446 = vpack.c.b16 %v2358, %v2354
    %v2447 = vpack.c.b16 %v2359, %v2355
    %v2448 = vpack.c.b16 %v2360, %v2356
    %v2449 = vpack.c.b16 %v2365, %v2361
    %v2450 = vpack.c.b16 %v2366, %v2362
    %v2451 = vpack.c.b16 %v2367, %v2363
    %v2452 = vpack.c.b16 %v2368, %v2364
    %v2453 = vpack.c.b16 %v2373, %v2369
    %v2454 = vpack.c.b16 %v2374, %v2370
    %v2455 = vpack.c.b16 %v2375, %v2371
    %v2456 = vpack.c.b16 %v2376, %v2372
    %v2457 = vpack.c.b16 %v2381, %v2377
    %v2458 = vpack.c.b16 %v2382, %v2378
    %v2459 = vpack.c.b16 %v2383, %v2379
    %v2460 = vpack.c.b16 %v2384, %v2380
    %v2461 = vpack.c.b16 %v2389, %v2385
    %v2462 = vpack.c.b16 %v2390, %v2386
    %v2463 = vpack.c.b16 %v2391, %v2387
    %v2464 = vpack.c.b16 %v2392, %v2388
    %v2465 = vpack.c.b16 %v2397, %v2393
    %v2466 = vpack.c.b16 %v2398, %v2394
    %v2467 = vpack.c.b16 %v2399, %v2395
    %v2468 = vpack.c.b16 %v2400, %v2396
    %v2469 = vpack.c.b16 %v2405, %v2401
    %v2470 = vpack.c.b16 %v2406, %v2402
    %v2471 = vpack.c.b16 %v2407, %v2403
    %v2472 = vpack.c.b16 %v2408, %v2404
    %2537 = vmatprep.subr.bf16.mxu0 %v2410
    %2538 = vmatpush1.bf16.msra.mxu0 %v2409
    %2539 = vmatprep.subr.bf16.mxu0 %v2414
    %2540 = vmatpush1.bf16.msra.mxu0 %v2413
    %2541 = vmatprep.subr.bf16.mxu0 %v2418
    %2542 = vmatpush1.bf16.msra.mxu0 %v2417
    %2543 = vmatprep.subr.bf16.mxu0 %v2422
    %2544 = vmatpush1.bf16.msra.mxu0 %v2421
    %2545 = vmatprep.subr.bf16.mxu0 %v2426
    %2546 = vmatpush1.bf16.msra.mxu0 %v2425
    %2547 = vmatprep.subr.bf16.mxu0 %v2430
    %2548 = vmatpush1.bf16.msra.mxu0 %v2429
    %2549 = vmatprep.subr.bf16.mxu0 %v2434
    %2550 = vmatpush1.bf16.msra.mxu0 %v2433
    %2551 = vmatprep.subr.bf16.mxu0 %v2438
    %2552 = vmatpush1.bf16.msra.mxu0 %v2437
    %2553 = vmatprep.subr.bf16.mxu0 %v2442
    %2554 = vmatpush1.bf16.msra.mxu0 %v2441
    %2555 = vmatprep.subr.bf16.mxu0 %v2446
    %2556 = vmatpush1.bf16.msra.mxu0 %v2445
    %2557 = vmatprep.subr.bf16.mxu0 %v2450
    %2558 = vmatpush1.bf16.msra.mxu0 %v2449
    %2559 = vmatprep.subr.bf16.mxu0 %v2454
    %2560 = vmatpush1.bf16.msra.mxu0 %v2453
    %2561 = vmatprep.subr.bf16.mxu0 %v2458
    %2562 = vmatpush1.bf16.msra.mxu0 %v2457
    %2563 = vmatprep.subr.bf16.mxu0 %v2462
    %2564 = vmatpush1.bf16.msra.mxu0 %v2461
    %2565 = vmatprep.subr.bf16.mxu0 %v2466
    %2566 = vmatpush1.bf16.msra.mxu0 %v2465
    %2567 = vmatprep.subr.bf16.mxu0 %v2470
    %2568 = vmatpush1.bf16.msra.mxu0 %v2469
    %2569 = vmatprep.mubr.bf16.mxu0 %v2096
    %2570 = vmatmul.mubr.bf16.gmra.mrb[0].mxu0 %v2095
    %v2571 = vpop.f32.mrb[0].mxu0
    %v2572 = vadd.f32 %v2200, %v2571
    %v2573 = vpop.f32.mrb[0].mxu0
    %v2574 = vadd.f32 %v2204, %v2573
    %v2575 = vpop.f32.mrb[0].mxu0
    %v2576 = vadd.f32 %v2200, %v2575
    %v2577 = vpop.f32.mrb[0].mxu0
    %v2578 = vadd.f32 %v2204, %v2577
    %2579 = vmatprep.mubr.bf16.mxu0 %v2098
    %2580 = vmatmul.mubr.bf16.gmra.mrb[0].mxu0 %v2097
    %v2581 = vpop.f32.mrb[0].mxu0
    %v2582 = vadd.f32 %v2200, %v2581
    %v2583 = vpop.f32.mrb[0].mxu0
    %v2584 = vadd.f32 %v2204, %v2583
    %v2585 = vpop.f32.mrb[0].mxu0
    %v2586 = vadd.f32 %v2200, %v2585
    %v2587 = vpop.f32.mrb[0].mxu0
    %v2588 = vadd.f32 %v2204, %v2587
    %2589 = vdwg.mxu0
    %2590 = vmatprep.subr.bf16.mxu0 %v2412
    %2591 = vmatpush1.bf16.msra.mxu0 %v2411
    %2592 = vmatprep.subr.bf16.mxu0 %v2416
    %2593 = vmatpush1.bf16.msra.mxu0 %v2415
    %2594 = vmatprep.subr.bf16.mxu0 %v2420
    %2595 = vmatpush1.bf16.msra.mxu0 %v2419
    %2596 = vmatprep.subr.bf16.mxu0 %v2424
    %2597 = vmatpush1.bf16.msra.mxu0 %v2423
    %2598 = vmatprep.subr.bf16.mxu0 %v2428
    %2599 = vmatpush1.bf16.msra.mxu0 %v2427
    %2600 = vmatprep.subr.bf16.mxu0 %v2432
    %2601 = vmatpush1.bf16.msra.mxu0 %v2431
    %2602 = vmatprep.subr.bf16.mxu0 %v2436
    %2603 = vmatpush1.bf16.msra.mxu0 %v2435
    %2604 = vmatprep.subr.bf16.mxu0 %v2440
    %2605 = vmatpush1.bf16.msra.mxu0 %v2439
    %2606 = vmatprep.subr.bf16.mxu0 %v2444
    %2607 = vmatpush1.bf16.msra.mxu0 %v2443
    %2608 = vmatprep.subr.bf16.mxu0 %v2448
    %2609 = vmatpush1.bf16.msra.mxu0 %v2447
    %2610 = vmatprep.subr.bf16.mxu0 %v2452
    %2611 = vmatpush1.bf16.msra.mxu0 %v2451
    %2612 = vmatprep.subr.bf16.mxu0 %v2456
    %2613 = vmatpush1.bf16.msra.mxu0 %v2455
    %2614 = vmatprep.subr.bf16.mxu0 %v2460
    %2615 = vmatpush1.bf16.msra.mxu0 %v2459
    %2616 = vmatprep.subr.bf16.mxu0 %v2464
    %2617 = vmatpush1.bf16.msra.mxu0 %v2463
    %2618 = vmatprep.subr.bf16.mxu0 %v2468
    %2619 = vmatpush1.bf16.msra.mxu0 %v2467
    %2620 = vmatprep.subr.bf16.mxu0 %v2472
    %2621 = vmatpush1.bf16.msra.mxu0 %v2471
    %2622 = vmatprep.mubr.bf16.mxu0 %v2096
    %2623 = vmatmul.mubr.bf16.gmra.mrb[0].mxu0 %v2095
    %v2624 = vpop.f32.mrb[0].mxu0
    %v2625 = vadd.f32 %v2208, %v2624
    %v2626 = vpop.f32.mrb[0].mxu0
    %v2627 = vadd.f32 %v2212, %v2626
    %v2628 = vpop.f32.mrb[0].mxu0
    %v2629 = vadd.f32 %v2208, %v2628
    %v2630 = vpop.f32.mrb[0].mxu0
    %v2631 = vadd.f32 %v2212, %v2630
    %2632 = vmatprep.mubr.bf16.mxu0 %v2098
    %2633 = vmatmul.mubr.bf16.gmra.mrb[0].mxu0 %v2097
    %v2634 = vpop.f32.mrb[0].mxu0
    %v2635 = vadd.f32 %v2208, %v2634
    %v2636 = vpop.f32.mrb[0].mxu0
    %v2637 = vadd.f32 %v2212, %v2636
    %v2638 = vpop.f32.mrb[0].mxu0
    %v2639 = vadd.f32 %v2208, %v2638
    %v2640 = vpop.f32.mrb[0].mxu0
    %v2641 = vadd.f32 %v2212, %v2640
    %2642 = vdwg.mxu0
    %v2643 = vpack.c.bf16 %v2572, %v2572
    %v2644 = vpack.c.bf16 %v2574, %v2574
    %v2645 = vpack.c.bf16 %v2625, %v2625
    %v2646 = vpack.c.bf16 %v2627, %v2627
    %v2647 = vpack.c.bf16 %v2576, %v2576
    %v2648 = vpack.c.bf16 %v2578, %v2578
    %v2649 = vpack.c.bf16 %v2629, %v2629
    %v2650 = vpack.c.bf16 %v2631, %v2631
    %v2651 = vpack.c.bf16 %v2582, %v2582
    %v2652 = vpack.c.bf16 %v2584, %v2584
    %v2653 = vpack.c.bf16 %v2635, %v2635
    %v2654 = vpack.c.bf16 %v2637, %v2637
    %v2655 = vpack.c.bf16 %v2586, %v2586
    %v2656 = vpack.c.bf16 %v2588, %v2588
    %v2657 = vpack.c.bf16 %v2639, %v2639
    %v2658 = vpack.c.bf16 %v2641, %v2641
    %v2675 = vunpack.c.l.b16 %v2643
    %v2676 = vunpack.c.l.b16 %v2644
    %v2677 = vunpack.c.l.b16 %v2645
    %v2678 = vunpack.c.l.b16 %v2646
    %v2679 = vunpack.c.l.b16 %v2647
    %v2680 = vunpack.c.l.b16 %v2648
    %v2681 = vunpack.c.l.b16 %v2649
    %v2682 = vunpack.c.l.b16 %v2650
    %v2683 = vunpack.c.l.b16 %v2651
    %v2684 = vunpack.c.l.b16 %v2652
    %v2685 = vunpack.c.l.b16 %v2653
    %v2686 = vunpack.c.l.b16 %v2654
    %v2687 = vunpack.c.l.b16 %v2655
    %v2688 = vunpack.c.l.b16 %v2656
    %v2689 = vunpack.c.l.b16 %v2657
    %v2690 = vunpack.c.l.b16 %v2658
    %v2691 = vpack.c.b16 %v2676, %v2675
    %v2692 = vpack.c.b16 %v2678, %v2677
    %v2693 = vpack.c.b16 %v2680, %v2679
    %v2694 = vpack.c.b16 %v2682, %v2681
    %v2695 = vpack.c.b16 %v2684, %v2683
    %v2696 = vpack.c.b16 %v2686, %v2685
    %v2697 = vpack.c.b16 %v2688, %v2687
    %v2698 = vpack.c.b16 %v2690, %v2689
    %2707 = vst [vmem:[#allocation2] sm:$0xff] %v2691
    %2708 = vst [vmem:[#allocation2 + $0x8] sm:$0xff] %v2692
    %2709 = vst [vmem:[#allocation2 + $0x10] sm:$0xff] %v2693
    %2710 = vst [vmem:[#allocation2 + $0x18] sm:$0xff] %v2694
    %2711 = vst [vmem:[#allocation2 + $0x20] sm:$0xff] %v2695
    %2712 = vst [vmem:[#allocation2 + $0x28] sm:$0xff] %v2696
    %2713 = vst [vmem:[#allocation2 + $0x30] sm:$0xff] %v2697
    %2714 = vst [vmem:[#allocation2 + $0x38] sm:$0xff] %v2698
    loop: start=0, step=1, limit=4
    $region94: #{rul_forward.1} parent=1 // loop_pre_header
      _
    $region95: #{rul_forward.1} parent=1 // loop_header
      %s2716 = sphi 0, %s2720
      %p2717 = scmp.ge.s32.totalorder %s2716, 4
      %v2721 = vphi 0.0, %v3002
      %v2722 = vphi 0.0, %v3000
    $region96: #{rul_forward.1} parent=1 // loop_header_branch
      %2719 = sbr.rel (%p2717) target = $region100
    $region97: #{rul_forward.1} parent=1 // loop_body
      %s2723 = smul.u32 %s2716, 4
      %s2724 = smul.addr %s2723, 4
      %s2725 = scalar_lea.vmem [#allocation2], %s2724
      %v2726 = vld [vmem:[%s2725] sm:$0xff]
      %v2727 = vld [vmem:[%s2725 + $0x8] sm:$0xff]
      %v2728 = vunpack.c.l.bf16 %v2726
      %v2729 = vunpack.c.h.bf16 %v2726
      %v2730 = vunpack.c.l.bf16 %v2727
      %v2731 = vunpack.c.h.bf16 %v2727
      %v2732 = vpack.c.bf16 %v2721, %v2721
      %v2765 = vunpack.c.l.b16 %v2099
      %v2766 = vunpack.c.h.b16 %v2099
      %v2767 = vunpack.c.l.b16 %v2100
      %v2768 = vunpack.c.h.b16 %v2100
      %v2769 = vunpack.c.l.b16 %v2101
      %v2770 = vunpack.c.h.b16 %v2101
      %v2771 = vunpack.c.l.b16 %v2102
      %v2772 = vunpack.c.h.b16 %v2102
      %v2773 = vunpack.c.l.b16 %v2103
      %v2774 = vunpack.c.h.b16 %v2103
      %v2775 = vunpack.c.l.b16 %v2104
      %v2776 = vunpack.c.h.b16 %v2104
      %v2777 = vunpack.c.l.b16 %v2105
      %v2778 = vunpack.c.h.b16 %v2105
      %v2779 = vunpack.c.l.b16 %v2106
      %v2780 = vunpack.c.h.b16 %v2106
      %v2781 = vunpack.c.l.b16 %v2107
      %v2782 = vunpack.c.h.b16 %v2107
      %v2783 = vunpack.c.l.b16 %v2108
      %v2784 = vunpack.c.h.b16 %v2108
      %v2785 = vunpack.c.l.b16 %v2109
      %v2786 = vunpack.c.h.b16 %v2109
      %v2787 = vunpack.c.l.b16 %v2110
      %v2788 = vunpack.c.h.b16 %v2110
      %v2789 = vunpack.c.l.b16 %v2111
      %v2790 = vunpack.c.h.b16 %v2111
      %v2791 = vunpack.c.l.b16 %v2112
      %v2792 = vunpack.c.h.b16 %v2112
      %v2793 = vunpack.c.l.b16 %v2113
      %v2794 = vunpack.c.h.b16 %v2113
      %v2795 = vunpack.c.l.b16 %v2114
      %v2796 = vunpack.c.h.b16 %v2114
      %v2797 = vunpack.c.l.b16 %v2115
      %v2798 = vunpack.c.h.b16 %v2115
      %v2799 = vunpack.c.l.b16 %v2116
      %v2800 = vunpack.c.h.b16 %v2116
      %v2801 = vunpack.c.l.b16 %v2117
      %v2802 = vunpack.c.h.b16 %v2117
      %v2803 = vunpack.c.l.b16 %v2118
      %v2804 = vunpack.c.h.b16 %v2118
      %v2805 = vunpack.c.l.b16 %v2119
      %v2806 = vunpack.c.h.b16 %v2119
      %v2807 = vunpack.c.l.b16 %v2120
      %v2808 = vunpack.c.h.b16 %v2120
      %v2809 = vunpack.c.l.b16 %v2121
      %v2810 = vunpack.c.h.b16 %v2121
      %v2811 = vunpack.c.l.b16 %v2122
      %v2812 = vunpack.c.h.b16 %v2122
      %v2813 = vunpack.c.l.b16 %v2123
      %v2814 = vunpack.c.h.b16 %v2123
      %v2815 = vunpack.c.l.b16 %v2124
      %v2816 = vunpack.c.h.b16 %v2124
      %v2817 = vunpack.c.l.b16 %v2125
      %v2818 = vunpack.c.h.b16 %v2125
      %v2819 = vunpack.c.l.b16 %v2126
      %v2820 = vunpack.c.h.b16 %v2126
      %v2821 = vunpack.c.l.b16 %v2127
      %v2822 = vunpack.c.h.b16 %v2127
      %v2823 = vunpack.c.l.b16 %v2128
      %v2824 = vunpack.c.h.b16 %v2128
      %v2825 = vunpack.c.l.b16 %v2129
      %v2826 = vunpack.c.h.b16 %v2129
      %v2827 = vunpack.c.l.b16 %v2130
      %v2828 = vunpack.c.h.b16 %v2130
      %v2829 = vpack.c.b16 %v2769, %v2765
      %v2830 = vpack.c.b16 %v2770, %v2766
      %v2831 = vpack.c.b16 %v2771, %v2767
      %v2832 = vpack.c.b16 %v2772, %v2768
      %v2833 = vpack.c.b16 %v2777, %v2773
      %v2834 = vpack.c.b16 %v2778, %v2774
      %v2835 = vpack.c.b16 %v2779, %v2775
      %v2836 = vpack.c.b16 %v2780, %v2776
      %v2837 = vpack.c.b16 %v2785, %v2781
      %v2838 = vpack.c.b16 %v2786, %v2782
      %v2839 = vpack.c.b16 %v2787, %v2783
      %v2840 = vpack.c.b16 %v2788, %v2784
      %v2841 = vpack.c.b16 %v2793, %v2789
      %v2842 = vpack.c.b16 %v2794, %v2790
      %v2843 = vpack.c.b16 %v2795, %v2791
      %v2844 = vpack.c.b16 %v2796, %v2792
      %v2845 = vpack.c.b16 %v2801, %v2797
      %v2846 = vpack.c.b16 %v2802, %v2798
      %v2847 = vpack.c.b16 %v2803, %v2799
      %v2848 = vpack.c.b16 %v2804, %v2800
      %v2849 = vpack.c.b16 %v2809, %v2805
      %v2850 = vpack.c.b16 %v2810, %v2806
      %v2851 = vpack.c.b16 %v2811, %v2807
      %v2852 = vpack.c.b16 %v2812, %v2808
      %v2853 = vpack.c.b16 %v2817, %v2813
      %v2854 = vpack.c.b16 %v2818, %v2814
      %v2855 = vpack.c.b16 %v2819, %v2815
      %v2856 = vpack.c.b16 %v2820, %v2816
      %v2857 = vpack.c.b16 %v2825, %v2821
      %v2858 = vpack.c.b16 %v2826, %v2822
      %v2859 = vpack.c.b16 %v2827, %v2823
      %v2860 = vpack.c.b16 %v2828, %v2824
      %2893 = vmatprep.subr.bf16.mxu0 %v2830
      %2894 = vmatpush1.bf16.msra.mxu0 %v2829
      %2895 = vmatprep.subr.bf16.mxu0 %v2834
      %2896 = vmatpush1.bf16.msra.mxu0 %v2833
      %2897 = vmatprep.subr.bf16.mxu0 %v2838
      %2898 = vmatpush1.bf16.msra.mxu0 %v2837
      %2899 = vmatprep.subr.bf16.mxu0 %v2842
      %2900 = vmatpush1.bf16.msra.mxu0 %v2841
      %2901 = vmatprep.subr.bf16.mxu0 %v2846
      %2902 = vmatpush1.bf16.msra.mxu0 %v2845
      %2903 = vmatprep.subr.bf16.mxu0 %v2850
      %2904 = vmatpush1.bf16.msra.mxu0 %v2849
      %2905 = vmatprep.subr.bf16.mxu0 %v2854
      %2906 = vmatpush1.bf16.msra.mxu0 %v2853
      %2907 = vmatprep.subr.bf16.mxu0 %v2858
      %2908 = vmatpush1.bf16.msra.mxu0 %v2857
      %2909 = vmatprep.subr.bf16.mxu0 0
      %2910 = vmatpush1.bf16.msra.mxu0 0
      %2911 = vmatprep.subr.bf16.mxu0 0
      %2912 = vmatpush1.bf16.msra.mxu0 0
      %2913 = vmatprep.subr.bf16.mxu0 0
      %2914 = vmatpush1.bf16.msra.mxu0 0
      %2915 = vmatprep.subr.bf16.mxu0 0
      %2916 = vmatpush1.bf16.msra.mxu0 0
      %2917 = vmatprep.subr.bf16.mxu0 0
      %2918 = vmatpush1.bf16.msra.mxu0 0
      %2919 = vmatprep.subr.bf16.mxu0 0
      %2920 = vmatpush1.bf16.msra.mxu0 0
      %2921 = vmatprep.subr.bf16.mxu0 0
      %2922 = vmatpush1.bf16.msra.mxu0 0
      %2923 = vmatprep.subr.bf16.mxu0 0
      %2924 = vmatpush1.bf16.msra.mxu0 0
      %2925 = vmatprep.mubr.bf16.mxu0 0
      %2926 = vmatmul.mubr.bf16.gmra.mrb[0].mxu0 %v2732
      %v2927 = vpop.f32.mrb[0].mxu0
      %v2928 = vadd.f32 0.0, %v2927
      %v2929 = vpop.f32.mrb[0].mxu0
      %v2930 = vadd.f32 0.0, %v2929
      %v2931 = vpop.f32.mrb[0].mxu0
      %v2932 = vpop.f32.mrb[0].mxu0
      %2933 = vdwg.mxu0
      %2934 = vmatprep.subr.bf16.mxu0 %v2832
      %2935 = vmatpush1.bf16.msra.mxu0 %v2831
      %2936 = vmatprep.subr.bf16.mxu0 %v2836
      %2937 = vmatpush1.bf16.msra.mxu0 %v2835
      %2938 = vmatprep.subr.bf16.mxu0 %v2840
      %2939 = vmatpush1.bf16.msra.mxu0 %v2839
      %2940 = vmatprep.subr.bf16.mxu0 %v2844
      %2941 = vmatpush1.bf16.msra.mxu0 %v2843
      %2942 = vmatprep.subr.bf16.mxu0 %v2848
      %2943 = vmatpush1.bf16.msra.mxu0 %v2847
      %2944 = vmatprep.subr.bf16.mxu0 %v2852
      %2945 = vmatpush1.bf16.msra.mxu0 %v2851
      %2946 = vmatprep.subr.bf16.mxu0 %v2856
      %2947 = vmatpush1.bf16.msra.mxu0 %v2855
      %2948 = vmatprep.subr.bf16.mxu0 %v2860
      %2949 = vmatpush1.bf16.msra.mxu0 %v2859
      %2950 = vmatprep.subr.bf16.mxu0 0
      %2951 = vmatpush1.bf16.msra.mxu0 0
      %2952 = vmatprep.subr.bf16.mxu0 0
      %2953 = vmatpush1.bf16.msra.mxu0 0
      %2954 = vmatprep.subr.bf16.mxu0 0
      %2955 = vmatpush1.bf16.msra.mxu0 0
      %2956 = vmatprep.subr.bf16.mxu0 0
      %2957 = vmatpush1.bf16.msra.mxu0 0
      %2958 = vmatprep.subr.bf16.mxu0 0
      %2959 = vmatpush1.bf16.msra.mxu0 0
      %2960 = vmatprep.subr.bf16.mxu0 0
      %2961 = vmatpush1.bf16.msra.mxu0 0
      %2962 = vmatprep.subr.bf16.mxu0 0
      %2963 = vmatpush1.bf16.msra.mxu0 0
      %2964 = vmatprep.subr.bf16.mxu0 0
      %2965 = vmatpush1.bf16.msra.mxu0 0
      %2966 = vmatprep.mubr.bf16.mxu0 0
      %2967 = vmatmul.mubr.bf16.gmra.mrb[0].mxu0 %v2732
      %v2968 = vpop.f32.mrb[0].mxu0
      %v2969 = vadd.f32 0.0, %v2968
      %v2970 = vpop.f32.mrb[0].mxu0
      %v2971 = vadd.f32 0.0, %v2970
      %v2972 = vpop.f32.mrb[0].mxu0
      %v2973 = vpop.f32.mrb[0].mxu0
      %2974 = vdwg.mxu0
      %v2975 = vadd.f32 %v2728, %v2928
      %v2976 = vadd.f32 %v2729, %v2930
      %v2977 = vadd.f32 %v2730, %v2969
      %v2978 = vadd.f32 %v2731, %v2971
      %v2979 = vxor.u32 %v2975, 2147483648
      %v2980 = vmul.f32 %v2979, 1.442695
      %v2981 = vpow.pop %v2980
      %v2982 = vadd.f32 %v2981, 1.0
      %v2983 = vrcp.pop %v2982
      %v2984 = vmul.f32 1.0, %v2983
      %v2985 = vxor.u32 %v2976, 2147483648
      %v2986 = vmul.f32 %v2985, 1.442695
      %v2987 = vpow.pop %v2986
      %v2988 = vadd.f32 %v2987, 1.0
      %v2989 = vrcp.pop %v2988
      %v2990 = vmul.f32 1.0, %v2989
      %v2991 = vtanh.pop %v2977
      %v2992 = vxor.u32 %v2978, 2147483648
      %v2993 = vmul.f32 %v2992, 1.442695
      %v2994 = vpow.pop %v2993
      %v2995 = vadd.f32 %v2994, 1.0
      %v2996 = vrcp.pop %v2995
      %v2997 = vmul.f32 1.0, %v2996
      %v2998 = vmul.f32 %v2990, %v2722
      %v2999 = vmul.f32 %v2984, %v2991
      %v3000 = vadd.f32 %v2998, %v2999
      %v3001 = vtanh.pop %v3000
      %v3002 = vmul.f32 %v2997, %v3001
      %v3003 = vpack.c.bf16 %v3002, %v3002
      %s3004 = smul.addr %s2716, 4
      %s3005 = scalar_lea.vmem [#allocation3], %s3004
      %3006 = vst [vmem:[%s3005] sm:$0xf] %v3003
    $region98: #{rul_forward.1} parent=1 // loop_footer
      %s2720 = sadd.s32 1, %s2716
    $region99: #{rul_forward.1} parent=1 // loop_footer_branch
      %2715 = sbr.rel target = $region95
    $region100: #{rul_forward.1} parent=1 // loop_exit
      _
    %v3007 = vld [vmem:[#allocation3] sm:$0xf]
    %v3008 = vld [vmem:[#allocation3 + $0x4] sm:$0xf]
    %v3009 = vld [vmem:[#allocation3 + $0x8] sm:$0xf]
    %v3010 = vld [vmem:[#allocation3 + $0xc] sm:$0xf]
    %v3011 = vld [vmem:[#allocation12] sm:$0xff]
    %v3012 = vld [vmem:[#allocation12 + $0x8] sm:$0xff]
    %v3013 = vld [vmem:[#allocation12 + $0x10] sm:$0xff]
    %v3014 = vld [vmem:[#allocation12 + $0x18] sm:$0xff]
    %v3015 = vld [vmem:[#allocation12 + $0x20] sm:$0xff]
    %v3016 = vld [vmem:[#allocation12 + $0x28] sm:$0xff]
    %v3017 = vld [vmem:[#allocation12 + $0x30] sm:$0xff]
    %v3018 = vld [vmem:[#allocation12 + $0x38] sm:$0xff]
    %v3019 = vld [vmem:[#allocation12 + $0x40] sm:$0xff]
    %v3020 = vld [vmem:[#allocation12 + $0x48] sm:$0xff]
    %v3021 = vld [vmem:[#allocation12 + $0x50] sm:$0xff]
    %v3022 = vld [vmem:[#allocation12 + $0x58] sm:$0xff]
    %v3023 = vld [vmem:[#allocation12 + $0x60] sm:$0xff]
    %v3024 = vld [vmem:[#allocation12 + $0x68] sm:$0xff]
    %v3025 = vld [vmem:[#allocation12 + $0x70] sm:$0xff]
    %v3026 = vld [vmem:[#allocation12 + $0x78] sm:$0xff]
    %v3027 = vld [vmem:[#allocation12 + $0x80] sm:$0xff]
    %v3028 = vld [vmem:[#allocation12 + $0x88] sm:$0xff]
    %v3029 = vld [vmem:[#allocation12 + $0x90] sm:$0xff]
    %v3030 = vld [vmem:[#allocation12 + $0x98] sm:$0xff]
    %v3031 = vld [vmem:[#allocation12 + $0xa0] sm:$0xff]
    %v3032 = vld [vmem:[#allocation12 + $0xa8] sm:$0xff]
    %v3033 = vld [vmem:[#allocation12 + $0xb0] sm:$0xff]
    %v3034 = vld [vmem:[#allocation12 + $0xb8] sm:$0xff]
    %v3035 = vld [vmem:[#allocation12 + $0xc0] sm:$0xff]
    %v3036 = vld [vmem:[#allocation12 + $0xc8] sm:$0xff]
    %v3037 = vld [vmem:[#allocation12 + $0xd0] sm:$0xff]
    %v3038 = vld [vmem:[#allocation12 + $0xd8] sm:$0xff]
    %v3039 = vld [vmem:[#allocation12 + $0xe0] sm:$0xff]
    %v3040 = vld [vmem:[#allocation12 + $0xe8] sm:$0xff]
    %v3041 = vld [vmem:[#allocation12 + $0xf0] sm:$0xff]
    %v3042 = vld [vmem:[#allocation12 + $0xf8] sm:$0xff]
    %v3043 = vld [vmem:[#allocation11] sm:$0xff]
    %v3044 = vld [vmem:[#allocation11 + $0x8] sm:$0xff]
    %v3045 = vld [vmem:[#allocation11 + $0x10] sm:$0xff]
    %v3046 = vld [vmem:[#allocation11 + $0x18] sm:$0xff]
    %v3047 = vld [vmem:[#allocation11 + $0x20] sm:$0xff]
    %v3048 = vld [vmem:[#allocation11 + $0x28] sm:$0xff]
    %v3049 = vld [vmem:[#allocation11 + $0x30] sm:$0xff]
    %v3050 = vld [vmem:[#allocation11 + $0x38] sm:$0xff]
    %v3051 = vld [vmem:[#allocation11 + $0x40] sm:$0xff]
    %v3052 = vld [vmem:[#allocation11 + $0x48] sm:$0xff]
    %v3053 = vld [vmem:[#allocation11 + $0x50] sm:$0xff]
    %v3054 = vld [vmem:[#allocation11 + $0x58] sm:$0xff]
    %v3055 = vld [vmem:[#allocation11 + $0x60] sm:$0xff]
    %v3056 = vld [vmem:[#allocation11 + $0x68] sm:$0xff]
    %v3057 = vld [vmem:[#allocation11 + $0x70] sm:$0xff]
    %v3058 = vld [vmem:[#allocation11 + $0x78] sm:$0xff]
    %v3059 = vld [vmem:[#allocation11 + $0x80] sm:$0xff]
    %v3060 = vld [vmem:[#allocation11 + $0x88] sm:$0xff]
    %v3061 = vld [vmem:[#allocation11 + $0x90] sm:$0xff]
    %v3062 = vld [vmem:[#allocation11 + $0x98] sm:$0xff]
    %v3063 = vld [vmem:[#allocation11 + $0xa0] sm:$0xff]
    %v3064 = vld [vmem:[#allocation11 + $0xa8] sm:$0xff]
    %v3065 = vld [vmem:[#allocation11 + $0xb0] sm:$0xff]
    %v3066 = vld [vmem:[#allocation11 + $0xb8] sm:$0xff]
    %v3067 = vld [vmem:[#allocation11 + $0xc0] sm:$0xff]
    %v3068 = vld [vmem:[#allocation11 + $0xc8] sm:$0xff]
    %v3069 = vld [vmem:[#allocation11 + $0xd0] sm:$0xff]
    %v3070 = vld [vmem:[#allocation11 + $0xd8] sm:$0xff]
    %v3071 = vld [vmem:[#allocation11 + $0xe0] sm:$0xff]
    %v3072 = vld [vmem:[#allocation11 + $0xe8] sm:$0xff]
    %v3073 = vld [vmem:[#allocation11 + $0xf0] sm:$0xff]
    %v3074 = vld [vmem:[#allocation11 + $0xf8] sm:$0xff]
    %v3075 = vld [vmem:[%s14] sm:$0xf]
    %v3077 = vlaneseq
    %v3078 = vshrl.u32 %v3077, 7
    %v3079 = vsub.s32 0, %v3078
    %v3080 = vrot.slane %v3075, %v3079
    %v3081 = vlaneseq
    %v3082 = vshrl.u32 %v3081, 7
    %v3083 = vsub.s32 1, %v3082
    %v3084 = vrot.slane %v3075, %v3083
    %v3085 = vlaneseq
    %v3086 = vshrl.u32 %v3085, 7
    %v3087 = vsub.s32 2, %v3086
    %v3088 = vrot.slane %v3075, %v3087
    %v3089 = vlaneseq
    %v3090 = vshrl.u32 %v3089, 7
    %v3091 = vsub.s32 3, %v3090
    %v3092 = vrot.slane %v3075, %v3091
    %v3101 = vunpack.c.l.b16 %v3007
    %v3102 = vunpack.c.l.b16 %v3008
    %v3103 = vunpack.c.l.b16 %v3009
    %v3104 = vunpack.c.l.b16 %v3010
    %v3105 = vpack.c.b16 %v3102, %v3101
    %v3106 = vpack.c.b16 %v3104, %v3103
    %v3141 = vunpack.c.l.b16 %v3043
    %v3142 = vunpack.c.h.b16 %v3043
    %v3143 = vunpack.c.l.b16 %v3044
    %v3144 = vunpack.c.h.b16 %v3044
    %v3145 = vunpack.c.l.b16 %v3045
    %v3146 = vunpack.c.h.b16 %v3045
    %v3147 = vunpack.c.l.b16 %v3046
    %v3148 = vunpack.c.h.b16 %v3046
    %v3149 = vunpack.c.l.b16 %v3047
    %v3150 = vunpack.c.h.b16 %v3047
    %v3151 = vunpack.c.l.b16 %v3048
    %v3152 = vunpack.c.h.b16 %v3048
    %v3153 = vunpack.c.l.b16 %v3049
    %v3154 = vunpack.c.h.b16 %v3049
    %v3155 = vunpack.c.l.b16 %v3050
    %v3156 = vunpack.c.h.b16 %v3050
    %v3157 = vunpack.c.l.b16 %v3051
    %v3158 = vunpack.c.h.b16 %v3051
    %v3159 = vunpack.c.l.b16 %v3052
    %v3160 = vunpack.c.h.b16 %v3052
    %v3161 = vunpack.c.l.b16 %v3053
    %v3162 = vunpack.c.h.b16 %v3053
    %v3163 = vunpack.c.l.b16 %v3054
    %v3164 = vunpack.c.h.b16 %v3054
    %v3165 = vunpack.c.l.b16 %v3055
    %v3166 = vunpack.c.h.b16 %v3055
    %v3167 = vunpack.c.l.b16 %v3056
    %v3168 = vunpack.c.h.b16 %v3056
    %v3169 = vunpack.c.l.b16 %v3057
    %v3170 = vunpack.c.h.b16 %v3057
    %v3171 = vunpack.c.l.b16 %v3058
    %v3172 = vunpack.c.h.b16 %v3058
    %v3173 = vunpack.c.l.b16 %v3059
    %v3174 = vunpack.c.h.b16 %v3059
    %v3175 = vunpack.c.l.b16 %v3060
    %v3176 = vunpack.c.h.b16 %v3060
    %v3177 = vunpack.c.l.b16 %v3061
    %v3178 = vunpack.c.h.b16 %v3061
    %v3179 = vunpack.c.l.b16 %v3062
    %v3180 = vunpack.c.h.b16 %v3062
    %v3181 = vunpack.c.l.b16 %v3063
    %v3182 = vunpack.c.h.b16 %v3063
    %v3183 = vunpack.c.l.b16 %v3064
    %v3184 = vunpack.c.h.b16 %v3064
    %v3185 = vunpack.c.l.b16 %v3065
    %v3186 = vunpack.c.h.b16 %v3065
    %v3187 = vunpack.c.l.b16 %v3066
    %v3188 = vunpack.c.h.b16 %v3066
    %v3189 = vunpack.c.l.b16 %v3067
    %v3190 = vunpack.c.h.b16 %v3067
    %v3191 = vunpack.c.l.b16 %v3068
    %v3192 = vunpack.c.h.b16 %v3068
    %v3193 = vunpack.c.l.b16 %v3069
    %v3194 = vunpack.c.h.b16 %v3069
    %v3195 = vunpack.c.l.b16 %v3070
    %v3196 = vunpack.c.h.b16 %v3070
    %v3197 = vunpack.c.l.b16 %v3071
    %v3198 = vunpack.c.h.b16 %v3071
    %v3199 = vunpack.c.l.b16 %v3072
    %v3200 = vunpack.c.h.b16 %v3072
    %v3201 = vunpack.c.l.b16 %v3073
    %v3202 = vunpack.c.h.b16 %v3073
    %v3203 = vunpack.c.l.b16 %v3074
    %v3204 = vunpack.c.h.b16 %v3074
    %v3205 = vpack.c.b16 %v3145, %v3141
    %v3206 = vpack.c.b16 %v3146, %v3142
    %v3207 = vpack.c.b16 %v3147, %v3143
    %v3208 = vpack.c.b16 %v3148, %v3144
    %v3209 = vpack.c.b16 %v3153, %v3149
    %v3210 = vpack.c.b16 %v3154, %v3150
    %v3211 = vpack.c.b16 %v3155, %v3151
    %v3212 = vpack.c.b16 %v3156, %v3152
    %v3213 = vpack.c.b16 %v3161, %v3157
    %v3214 = vpack.c.b16 %v3162, %v3158
    %v3215 = vpack.c.b16 %v3163, %v3159
    %v3216 = vpack.c.b16 %v3164, %v3160
    %v3217 = vpack.c.b16 %v3169, %v3165
    %v3218 = vpack.c.b16 %v3170, %v3166
    %v3219 = vpack.c.b16 %v3171, %v3167
    %v3220 = vpack.c.b16 %v3172, %v3168
    %v3221 = vpack.c.b16 %v3177, %v3173
    %v3222 = vpack.c.b16 %v3178, %v3174
    %v3223 = vpack.c.b16 %v3179, %v3175
    %v3224 = vpack.c.b16 %v3180, %v3176
    %v3225 = vpack.c.b16 %v3185, %v3181
    %v3226 = vpack.c.b16 %v3186, %v3182
    %v3227 = vpack.c.b16 %v3187, %v3183
    %v3228 = vpack.c.b16 %v3188, %v3184
    %v3229 = vpack.c.b16 %v3193, %v3189
    %v3230 = vpack.c.b16 %v3194, %v3190
    %v3231 = vpack.c.b16 %v3195, %v3191
    %v3232 = vpack.c.b16 %v3196, %v3192
    %v3233 = vpack.c.b16 %v3201, %v3197
    %v3234 = vpack.c.b16 %v3202, %v3198
    %v3235 = vpack.c.b16 %v3203, %v3199
    %v3236 = vpack.c.b16 %v3204, %v3200
    %3269 = vmatprep.subr.bf16.mxu0 %v3206
    %3270 = vmatpush1.bf16.msra.mxu0 %v3205
    %3271 = vmatprep.subr.bf16.mxu0 %v3210
    %3272 = vmatpush1.bf16.msra.mxu0 %v3209
    %3273 = vmatprep.subr.bf16.mxu0 %v3214
    %3274 = vmatpush1.bf16.msra.mxu0 %v3213
    %3275 = vmatprep.subr.bf16.mxu0 %v3218
    %3276 = vmatpush1.bf16.msra.mxu0 %v3217
    %3277 = vmatprep.subr.bf16.mxu0 %v3222
    %3278 = vmatpush1.bf16.msra.mxu0 %v3221
    %3279 = vmatprep.subr.bf16.mxu0 %v3226
    %3280 = vmatpush1.bf16.msra.mxu0 %v3225
    %3281 = vmatprep.subr.bf16.mxu0 %v3230
    %3282 = vmatpush1.bf16.msra.mxu0 %v3229
    %3283 = vmatprep.subr.bf16.mxu0 %v3234
    %3284 = vmatpush1.bf16.msra.mxu0 %v3233
    %3285 = vmatprep.subr.bf16.mxu0 0
    %3286 = vmatpush1.bf16.msra.mxu0 0
    %3287 = vmatprep.subr.bf16.mxu0 0
    %3288 = vmatpush1.bf16.msra.mxu0 0
    %3289 = vmatprep.subr.bf16.mxu0 0
    %3290 = vmatpush1.bf16.msra.mxu0 0
    %3291 = vmatprep.subr.bf16.mxu0 0
    %3292 = vmatpush1.bf16.msra.mxu0 0
    %3293 = vmatprep.subr.bf16.mxu0 0
    %3294 = vmatpush1.bf16.msra.mxu0 0
    %3295 = vmatprep.subr.bf16.mxu0 0
    %3296 = vmatpush1.bf16.msra.mxu0 0
    %3297 = vmatprep.subr.bf16.mxu0 0
    %3298 = vmatpush1.bf16.msra.mxu0 0
    %3299 = vmatprep.subr.bf16.mxu0 0
    %3300 = vmatpush1.bf16.msra.mxu0 0
    %3301 = vmatprep.mubr.bf16.mxu0 0
    %3302 = vmatmul.mubr.bf16.gmra.mrb[0].mxu0 %v3105
    %v3303 = vpop.f32.mrb[0].mxu0
    %v3304 = vadd.f32 %v3080, %v3303
    %v3305 = vpop.f32.mrb[0].mxu0
    %v3306 = vadd.f32 %v3084, %v3305
    %v3307 = vpop.f32.mrb[0].mxu0
    %v3308 = vadd.f32 %v3080, %v3307
    %v3309 = vpop.f32.mrb[0].mxu0
    %v3310 = vadd.f32 %v3084, %v3309
    %3311 = vmatprep.mubr.bf16.mxu0 0
    %3312 = vmatmul.mubr.bf16.gmra.mrb[0].mxu0 %v3106
    %v3313 = vpop.f32.mrb[0].mxu0
    %v3314 = vadd.f32 %v3080, %v3313
    %v3315 = vpop.f32.mrb[0].mxu0
    %v3316 = vadd.f32 %v3084, %v3315
    %v3317 = vpop.f32.mrb[0].mxu0
    %v3318 = vadd.f32 %v3080, %v3317
    %v3319 = vpop.f32.mrb[0].mxu0
    %v3320 = vadd.f32 %v3084, %v3319
    %3321 = vdwg.mxu0
    %3322 = vmatprep.subr.bf16.mxu0 %v3208
    %3323 = vmatpush1.bf16.msra.mxu0 %v3207
    %3324 = vmatprep.subr.bf16.mxu0 %v3212
    %3325 = vmatpush1.bf16.msra.mxu0 %v3211
    %3326 = vmatprep.subr.bf16.mxu0 %v3216
    %3327 = vmatpush1.bf16.msra.mxu0 %v3215
    %3328 = vmatprep.subr.bf16.mxu0 %v3220
    %3329 = vmatpush1.bf16.msra.mxu0 %v3219
    %3330 = vmatprep.subr.bf16.mxu0 %v3224
    %3331 = vmatpush1.bf16.msra.mxu0 %v3223
    %3332 = vmatprep.subr.bf16.mxu0 %v3228
    %3333 = vmatpush1.bf16.msra.mxu0 %v3227
    %3334 = vmatprep.subr.bf16.mxu0 %v3232
    %3335 = vmatpush1.bf16.msra.mxu0 %v3231
    %3336 = vmatprep.subr.bf16.mxu0 %v3236
    %3337 = vmatpush1.bf16.msra.mxu0 %v3235
    %3338 = vmatprep.subr.bf16.mxu0 0
    %3339 = vmatpush1.bf16.msra.mxu0 0
    %3340 = vmatprep.subr.bf16.mxu0 0
    %3341 = vmatpush1.bf16.msra.mxu0 0
    %3342 = vmatprep.subr.bf16.mxu0 0
    %3343 = vmatpush1.bf16.msra.mxu0 0
    %3344 = vmatprep.subr.bf16.mxu0 0
    %3345 = vmatpush1.bf16.msra.mxu0 0
    %3346 = vmatprep.subr.bf16.mxu0 0
    %3347 = vmatpush1.bf16.msra.mxu0 0
    %3348 = vmatprep.subr.bf16.mxu0 0
    %3349 = vmatpush1.bf16.msra.mxu0 0
    %3350 = vmatprep.subr.bf16.mxu0 0
    %3351 = vmatpush1.bf16.msra.mxu0 0
    %3352 = vmatprep.subr.bf16.mxu0 0
    %3353 = vmatpush1.bf16.msra.mxu0 0
    %3354 = vmatprep.mubr.bf16.mxu0 0
    %3355 = vmatmul.mubr.bf16.gmra.mrb[0].mxu0 %v3105
    %v3356 = vpop.f32.mrb[0].mxu0
    %v3357 = vadd.f32 %v3088, %v3356
    %v3358 = vpop.f32.mrb[0].mxu0
    %v3359 = vadd.f32 %v3092, %v3358
    %v3360 = vpop.f32.mrb[0].mxu0
    %v3361 = vadd.f32 %v3088, %v3360
    %v3362 = vpop.f32.mrb[0].mxu0
    %v3363 = vadd.f32 %v3092, %v3362
    %3364 = vmatprep.mubr.bf16.mxu0 0
    %3365 = vmatmul.mubr.bf16.gmra.mrb[0].mxu0 %v3106
    %v3366 = vpop.f32.mrb[0].mxu0
    %v3367 = vadd.f32 %v3088, %v3366
    %v3368 = vpop.f32.mrb[0].mxu0
    %v3369 = vadd.f32 %v3092, %v3368
    %v3370 = vpop.f32.mrb[0].mxu0
    %v3371 = vadd.f32 %v3088, %v3370
    %v3372 = vpop.f32.mrb[0].mxu0
    %v3373 = vadd.f32 %v3092, %v3372
    %3374 = vdwg.mxu0
    %v3375 = vpack.c.bf16 %v3304, %v3304
    %v3376 = vpack.c.bf16 %v3306, %v3306
    %v3377 = vpack.c.bf16 %v3357, %v3357
    %v3378 = vpack.c.bf16 %v3359, %v3359
    %v3379 = vpack.c.bf16 %v3308, %v3308
    %v3380 = vpack.c.bf16 %v3310, %v3310
    %v3381 = vpack.c.bf16 %v3361, %v3361
    %v3382 = vpack.c.bf16 %v3363, %v3363
    %v3383 = vpack.c.bf16 %v3314, %v3314
    %v3384 = vpack.c.bf16 %v3316, %v3316
    %v3385 = vpack.c.bf16 %v3367, %v3367
    %v3386 = vpack.c.bf16 %v3369, %v3369
    %v3387 = vpack.c.bf16 %v3318, %v3318
    %v3388 = vpack.c.bf16 %v3320, %v3320
    %v3389 = vpack.c.bf16 %v3371, %v3371
    %v3390 = vpack.c.bf16 %v3373, %v3373
    %v3407 = vunpack.c.l.b16 %v3375
    %v3408 = vunpack.c.l.b16 %v3376
    %v3409 = vunpack.c.l.b16 %v3377
    %v3410 = vunpack.c.l.b16 %v3378
    %v3411 = vunpack.c.l.b16 %v3379
    %v3412 = vunpack.c.l.b16 %v3380
    %v3413 = vunpack.c.l.b16 %v3381
    %v3414 = vunpack.c.l.b16 %v3382
    %v3415 = vunpack.c.l.b16 %v3383
    %v3416 = vunpack.c.l.b16 %v3384
    %v3417 = vunpack.c.l.b16 %v3385
    %v3418 = vunpack.c.l.b16 %v3386
    %v3419 = vunpack.c.l.b16 %v3387
    %v3420 = vunpack.c.l.b16 %v3388
    %v3421 = vunpack.c.l.b16 %v3389
    %v3422 = vunpack.c.l.b16 %v3390
    %v3423 = vpack.c.b16 %v3408, %v3407
    %v3424 = vpack.c.b16 %v3410, %v3409
    %v3425 = vpack.c.b16 %v3412, %v3411
    %v3426 = vpack.c.b16 %v3414, %v3413
    %v3427 = vpack.c.b16 %v3416, %v3415
    %v3428 = vpack.c.b16 %v3418, %v3417
    %v3429 = vpack.c.b16 %v3420, %v3419
    %v3430 = vpack.c.b16 %v3422, %v3421
    %3439 = vst [vmem:[#allocation2] sm:$0xff] %v3423
    %3440 = vst [vmem:[#allocation2 + $0x8] sm:$0xff] %v3424
    %3441 = vst [vmem:[#allocation2 + $0x10] sm:$0xff] %v3425
    %3442 = vst [vmem:[#allocation2 + $0x18] sm:$0xff] %v3426
    %3443 = vst [vmem:[#allocation2 + $0x20] sm:$0xff] %v3427
    %3444 = vst [vmem:[#allocation2 + $0x28] sm:$0xff] %v3428
    %3445 = vst [vmem:[#allocation2 + $0x30] sm:$0xff] %v3429
    %3446 = vst [vmem:[#allocation2 + $0x38] sm:$0xff] %v3430
    loop: start=0, step=1, limit=4
    $region101: #{rul_forward.1} parent=1 // loop_pre_header
      _
    $region102: #{rul_forward.1} parent=1 // loop_header
      %s3448 = sphi 0, %s3452
      %p3449 = scmp.ge.s32.totalorder %s3448, 4
      %v3453 = vphi 0.0, %v3734
      %v3454 = vphi 0.0, %v3732
    $region103: #{rul_forward.1} parent=1 // loop_header_branch
      %3451 = sbr.rel (%p3449) target = $region107
    $region104: #{rul_forward.1} parent=1 // loop_body
      %s3455 = smul.u32 %s3448, 4
      %s3456 = smul.addr %s3455, 4
      %s3457 = scalar_lea.vmem [#allocation2], %s3456
      %v3458 = vld [vmem:[%s3457] sm:$0xff]
      %v3459 = vld [vmem:[%s3457 + $0x8] sm:$0xff]
      %v3460 = vunpack.c.l.bf16 %v3458
      %v3461 = vunpack.c.h.bf16 %v3458
      %v3462 = vunpack.c.l.bf16 %v3459
      %v3463 = vunpack.c.h.bf16 %v3459
      %v3464 = vpack.c.bf16 %v3453, %v3453
      %v3497 = vunpack.c.l.b16 %v3011
      %v3498 = vunpack.c.h.b16 %v3011
      %v3499 = vunpack.c.l.b16 %v3012
      %v3500 = vunpack.c.h.b16 %v3012
      %v3501 = vunpack.c.l.b16 %v3013
      %v3502 = vunpack.c.h.b16 %v3013
      %v3503 = vunpack.c.l.b16 %v3014
      %v3504 = vunpack.c.h.b16 %v3014
      %v3505 = vunpack.c.l.b16 %v3015
      %v3506 = vunpack.c.h.b16 %v3015
      %v3507 = vunpack.c.l.b16 %v3016
      %v3508 = vunpack.c.h.b16 %v3016
      %v3509 = vunpack.c.l.b16 %v3017
      %v3510 = vunpack.c.h.b16 %v3017
      %v3511 = vunpack.c.l.b16 %v3018
      %v3512 = vunpack.c.h.b16 %v3018
      %v3513 = vunpack.c.l.b16 %v3019
      %v3514 = vunpack.c.h.b16 %v3019
      %v3515 = vunpack.c.l.b16 %v3020
      %v3516 = vunpack.c.h.b16 %v3020
      %v3517 = vunpack.c.l.b16 %v3021
      %v3518 = vunpack.c.h.b16 %v3021
      %v3519 = vunpack.c.l.b16 %v3022
      %v3520 = vunpack.c.h.b16 %v3022
      %v3521 = vunpack.c.l.b16 %v3023
      %v3522 = vunpack.c.h.b16 %v3023
      %v3523 = vunpack.c.l.b16 %v3024
      %v3524 = vunpack.c.h.b16 %v3024
      %v3525 = vunpack.c.l.b16 %v3025
      %v3526 = vunpack.c.h.b16 %v3025
      %v3527 = vunpack.c.l.b16 %v3026
      %v3528 = vunpack.c.h.b16 %v3026
      %v3529 = vunpack.c.l.b16 %v3027
      %v3530 = vunpack.c.h.b16 %v3027
      %v3531 = vunpack.c.l.b16 %v3028
      %v3532 = vunpack.c.h.b16 %v3028
      %v3533 = vunpack.c.l.b16 %v3029
      %v3534 = vunpack.c.h.b16 %v3029
      %v3535 = vunpack.c.l.b16 %v3030
      %v3536 = vunpack.c.h.b16 %v3030
      %v3537 = vunpack.c.l.b16 %v3031
      %v3538 = vunpack.c.h.b16 %v3031
      %v3539 = vunpack.c.l.b16 %v3032
      %v3540 = vunpack.c.h.b16 %v3032
      %v3541 = vunpack.c.l.b16 %v3033
      %v3542 = vunpack.c.h.b16 %v3033
      %v3543 = vunpack.c.l.b16 %v3034
      %v3544 = vunpack.c.h.b16 %v3034
      %v3545 = vunpack.c.l.b16 %v3035
      %v3546 = vunpack.c.h.b16 %v3035
      %v3547 = vunpack.c.l.b16 %v3036
      %v3548 = vunpack.c.h.b16 %v3036
      %v3549 = vunpack.c.l.b16 %v3037
      %v3550 = vunpack.c.h.b16 %v3037
      %v3551 = vunpack.c.l.b16 %v3038
      %v3552 = vunpack.c.h.b16 %v3038
      %v3553 = vunpack.c.l.b16 %v3039
      %v3554 = vunpack.c.h.b16 %v3039
      %v3555 = vunpack.c.l.b16 %v3040
      %v3556 = vunpack.c.h.b16 %v3040
      %v3557 = vunpack.c.l.b16 %v3041
      %v3558 = vunpack.c.h.b16 %v3041
      %v3559 = vunpack.c.l.b16 %v3042
      %v3560 = vunpack.c.h.b16 %v3042
      %v3561 = vpack.c.b16 %v3501, %v3497
      %v3562 = vpack.c.b16 %v3502, %v3498
      %v3563 = vpack.c.b16 %v3503, %v3499
      %v3564 = vpack.c.b16 %v3504, %v3500
      %v3565 = vpack.c.b16 %v3509, %v3505
      %v3566 = vpack.c.b16 %v3510, %v3506
      %v3567 = vpack.c.b16 %v3511, %v3507
      %v3568 = vpack.c.b16 %v3512, %v3508
      %v3569 = vpack.c.b16 %v3517, %v3513
      %v3570 = vpack.c.b16 %v3518, %v3514
      %v3571 = vpack.c.b16 %v3519, %v3515
      %v3572 = vpack.c.b16 %v3520, %v3516
      %v3573 = vpack.c.b16 %v3525, %v3521
      %v3574 = vpack.c.b16 %v3526, %v3522
      %v3575 = vpack.c.b16 %v3527, %v3523
      %v3576 = vpack.c.b16 %v3528, %v3524
      %v3577 = vpack.c.b16 %v3533, %v3529
      %v3578 = vpack.c.b16 %v3534, %v3530
      %v3579 = vpack.c.b16 %v3535, %v3531
      %v3580 = vpack.c.b16 %v3536, %v3532
      %v3581 = vpack.c.b16 %v3541, %v3537
      %v3582 = vpack.c.b16 %v3542, %v3538
      %v3583 = vpack.c.b16 %v3543, %v3539
      %v3584 = vpack.c.b16 %v3544, %v3540
      %v3585 = vpack.c.b16 %v3549, %v3545
      %v3586 = vpack.c.b16 %v3550, %v3546
      %v3587 = vpack.c.b16 %v3551, %v3547
      %v3588 = vpack.c.b16 %v3552, %v3548
      %v3589 = vpack.c.b16 %v3557, %v3553
      %v3590 = vpack.c.b16 %v3558, %v3554
      %v3591 = vpack.c.b16 %v3559, %v3555
      %v3592 = vpack.c.b16 %v3560, %v3556
      %3625 = vmatprep.subr.bf16.mxu0 %v3562
      %3626 = vmatpush1.bf16.msra.mxu0 %v3561
      %3627 = vmatprep.subr.bf16.mxu0 %v3566
      %3628 = vmatpush1.bf16.msra.mxu0 %v3565
      %3629 = vmatprep.subr.bf16.mxu0 %v3570
      %3630 = vmatpush1.bf16.msra.mxu0 %v3569
      %3631 = vmatprep.subr.bf16.mxu0 %v3574
      %3632 = vmatpush1.bf16.msra.mxu0 %v3573
      %3633 = vmatprep.subr.bf16.mxu0 %v3578
      %3634 = vmatpush1.bf16.msra.mxu0 %v3577
      %3635 = vmatprep.subr.bf16.mxu0 %v3582
      %3636 = vmatpush1.bf16.msra.mxu0 %v3581
      %3637 = vmatprep.subr.bf16.mxu0 %v3586
      %3638 = vmatpush1.bf16.msra.mxu0 %v3585
      %3639 = vmatprep.subr.bf16.mxu0 %v3590
      %3640 = vmatpush1.bf16.msra.mxu0 %v3589
      %3641 = vmatprep.subr.bf16.mxu0 0
      %3642 = vmatpush1.bf16.msra.mxu0 0
      %3643 = vmatprep.subr.bf16.mxu0 0
      %3644 = vmatpush1.bf16.msra.mxu0 0
      %3645 = vmatprep.subr.bf16.mxu0 0
      %3646 = vmatpush1.bf16.msra.mxu0 0
      %3647 = vmatprep.subr.bf16.mxu0 0
      %3648 = vmatpush1.bf16.msra.mxu0 0
      %3649 = vmatprep.subr.bf16.mxu0 0
      %3650 = vmatpush1.bf16.msra.mxu0 0
      %3651 = vmatprep.subr.bf16.mxu0 0
      %3652 = vmatpush1.bf16.msra.mxu0 0
      %3653 = vmatprep.subr.bf16.mxu0 0
      %3654 = vmatpush1.bf16.msra.mxu0 0
      %3655 = vmatprep.subr.bf16.mxu0 0
      %3656 = vmatpush1.bf16.msra.mxu0 0
      %3657 = vmatprep.mubr.bf16.mxu0 0
      %3658 = vmatmul.mubr.bf16.gmra.mrb[0].mxu0 %v3464
      %v3659 = vpop.f32.mrb[0].mxu0
      %v3660 = vadd.f32 0.0, %v3659
      %v3661 = vpop.f32.mrb[0].mxu0
      %v3662 = vadd.f32 0.0, %v3661
      %v3663 = vpop.f32.mrb[0].mxu0
      %v3664 = vpop.f32.mrb[0].mxu0
      %3665 = vdwg.mxu0
      %3666 = vmatprep.subr.bf16.mxu0 %v3564
      %3667 = vmatpush1.bf16.msra.mxu0 %v3563
      %3668 = vmatprep.subr.bf16.mxu0 %v3568
      %3669 = vmatpush1.bf16.msra.mxu0 %v3567
      %3670 = vmatprep.subr.bf16.mxu0 %v3572
      %3671 = vmatpush1.bf16.msra.mxu0 %v3571
      %3672 = vmatprep.subr.bf16.mxu0 %v3576
      %3673 = vmatpush1.bf16.msra.mxu0 %v3575
      %3674 = vmatprep.subr.bf16.mxu0 %v3580
      %3675 = vmatpush1.bf16.msra.mxu0 %v3579
      %3676 = vmatprep.subr.bf16.mxu0 %v3584
      %3677 = vmatpush1.bf16.msra.mxu0 %v3583
      %3678 = vmatprep.subr.bf16.mxu0 %v3588
      %3679 = vmatpush1.bf16.msra.mxu0 %v3587
      %3680 = vmatprep.subr.bf16.mxu0 %v3592
      %3681 = vmatpush1.bf16.msra.mxu0 %v3591
      %3682 = vmatprep.subr.bf16.mxu0 0
      %3683 = vmatpush1.bf16.msra.mxu0 0
      %3684 = vmatprep.subr.bf16.mxu0 0
      %3685 = vmatpush1.bf16.msra.mxu0 0
      %3686 = vmatprep.subr.bf16.mxu0 0
      %3687 = vmatpush1.bf16.msra.mxu0 0
      %3688 = vmatprep.subr.bf16.mxu0 0
      %3689 = vmatpush1.bf16.msra.mxu0 0
      %3690 = vmatprep.subr.bf16.mxu0 0
      %3691 = vmatpush1.bf16.msra.mxu0 0
      %3692 = vmatprep.subr.bf16.mxu0 0
      %3693 = vmatpush1.bf16.msra.mxu0 0
      %3694 = vmatprep.subr.bf16.mxu0 0
      %3695 = vmatpush1.bf16.msra.mxu0 0
      %3696 = vmatprep.subr.bf16.mxu0 0
      %3697 = vmatpush1.bf16.msra.mxu0 0
      %3698 = vmatprep.mubr.bf16.mxu0 0
      %3699 = vmatmul.mubr.bf16.gmra.mrb[0].mxu0 %v3464
      %v3700 = vpop.f32.mrb[0].mxu0
      %v3701 = vadd.f32 0.0, %v3700
      %v3702 = vpop.f32.mrb[0].mxu0
      %v3703 = vadd.f32 0.0, %v3702
      %v3704 = vpop.f32.mrb[0].mxu0
      %v3705 = vpop.f32.mrb[0].mxu0
      %3706 = vdwg.mxu0
      %v3707 = vadd.f32 %v3460, %v3660
      %v3708 = vadd.f32 %v3461, %v3662
      %v3709 = vadd.f32 %v3462, %v3701
      %v3710 = vadd.f32 %v3463, %v3703
      %v3711 = vxor.u32 %v3707, 2147483648
      %v3712 = vmul.f32 %v3711, 1.442695
      %v3713 = vpow.pop %v3712
      %v3714 = vadd.f32 %v3713, 1.0
      %v3715 = vrcp.pop %v3714
      %v3716 = vmul.f32 1.0, %v3715
      %v3717 = vxor.u32 %v3708, 2147483648
      %v3718 = vmul.f32 %v3717, 1.442695
      %v3719 = vpow.pop %v3718
      %v3720 = vadd.f32 %v3719, 1.0
      %v3721 = vrcp.pop %v3720
      %v3722 = vmul.f32 1.0, %v3721
      %v3723 = vtanh.pop %v3709
      %v3724 = vxor.u32 %v3710, 2147483648
      %v3725 = vmul.f32 %v3724, 1.442695
      %v3726 = vpow.pop %v3725
      %v3727 = vadd.f32 %v3726, 1.0
      %v3728 = vrcp.pop %v3727
      %v3729 = vmul.f32 1.0, %v3728
      %v3730 = vmul.f32 %v3722, %v3454
      %v3731 = vmul.f32 %v3716, %v3723
      %v3732 = vadd.f32 %v3730, %v3731
      %v3733 = vtanh.pop %v3732
      %v3734 = vmul.f32 %v3729, %v3733
    $region105: #{rul_forward.1} parent=1 // loop_footer
      %s3452 = sadd.s32 1, %s3448
    $region106: #{rul_forward.1} parent=1 // loop_footer_branch
      %3447 = sbr.rel target = $region102
    $region107: #{rul_forward.1} parent=1 // loop_exit
      _
    %v3735 = vpack.c.bf16 %v3453, %v3453
    %v3736 = vld [vmem:[%s15] sm:$0xf]
    %v3737 = vld [vmem:[%s15 + $0x4] sm:$0xf]
    %v3738 = vld [vmem:[%s15 + $0x8] sm:$0xf]
    %v3739 = vld [vmem:[%s15 + $0xc] sm:$0xf]
    %v3740 = vld [vmem:[%s15 + $0x10] sm:$0xf]
    %v3741 = vld [vmem:[%s15 + $0x14] sm:$0xf]
    %v3742 = vld [vmem:[%s15 + $0x18] sm:$0xf]
    %v3743 = vld [vmem:[%s15 + $0x1c] sm:$0xf]
    %v3744 = vld [vmem:[%s15 + $0x20] sm:$0xf]
    %v3745 = vld [vmem:[%s15 + $0x24] sm:$0xf]
    %v3746 = vld [vmem:[%s15 + $0x28] sm:$0xf]
    %v3747 = vld [vmem:[%s15 + $0x2c] sm:$0xf]
    %v3748 = vld [vmem:[%s15 + $0x30] sm:$0xf]
    %v3749 = vld [vmem:[%s15 + $0x34] sm:$0xf]
    %v3750 = vld [vmem:[%s15 + $0x38] sm:$0xf]
    %v3751 = vld [vmem:[%s15 + $0x3c] sm:$0xf]
    %v3752 = vld [vmem:[%s16] sm:$0x1]
    %v3754 = vlaneseq
    %v3755 = vshrl.u32 %v3754, 7
    %v3756 = vsub.s32 0, %v3755
    %v3757 = vrot.slane %v3752, %v3756
    %v3775 = vunpack.c.l.b16 %v3736
    %v3776 = vunpack.c.l.b16 %v3737
    %v3777 = vunpack.c.l.b16 %v3738
    %v3778 = vunpack.c.l.b16 %v3739
    %v3779 = vunpack.c.l.b16 %v3740
    %v3780 = vunpack.c.l.b16 %v3741
    %v3781 = vunpack.c.l.b16 %v3742
    %v3782 = vunpack.c.l.b16 %v3743
    %v3783 = vunpack.c.l.b16 %v3744
    %v3784 = vunpack.c.l.b16 %v3745
    %v3785 = vunpack.c.l.b16 %v3746
    %v3786 = vunpack.c.l.b16 %v3747
    %v3787 = vunpack.c.l.b16 %v3748
    %v3788 = vunpack.c.l.b16 %v3749
    %v3789 = vunpack.c.l.b16 %v3750
    %v3790 = vunpack.c.l.b16 %v3751
    %v3791 = vpack.c.b16 %v3776, %v3775
    %v3792 = vpack.c.b16 %v3778, %v3777
    %v3793 = vpack.c.b16 %v3780, %v3779
    %v3794 = vpack.c.b16 %v3782, %v3781
    %v3795 = vpack.c.b16 %v3784, %v3783
    %v3796 = vpack.c.b16 %v3786, %v3785
    %v3797 = vpack.c.b16 %v3788, %v3787
    %v3798 = vpack.c.b16 %v3790, %v3789
    %3807 = vmatprep.subr.bf16.mxu0 0
    %3808 = vmatpush1.bf16.msra.mxu0 %v3791
    %3809 = vmatprep.subr.bf16.mxu0 0
    %3810 = vmatpush1.bf16.msra.mxu0 %v3792
    %3811 = vmatprep.subr.bf16.mxu0 0
    %3812 = vmatpush1.bf16.msra.mxu0 %v3793
    %3813 = vmatprep.subr.bf16.mxu0 0
    %3814 = vmatpush1.bf16.msra.mxu0 %v3794
    %3815 = vmatprep.subr.bf16.mxu0 0
    %3816 = vmatpush1.bf16.msra.mxu0 %v3795
    %3817 = vmatprep.subr.bf16.mxu0 0
    %3818 = vmatpush1.bf16.msra.mxu0 %v3796
    %3819 = vmatprep.subr.bf16.mxu0 0
    %3820 = vmatpush1.bf16.msra.mxu0 %v3797
    %3821 = vmatprep.subr.bf16.mxu0 0
    %3822 = vmatpush1.bf16.msra.mxu0 %v3798
    %3823 = vmatprep.subr.bf16.mxu0 0
    %3824 = vmatpush1.bf16.msra.mxu0 0
    %3825 = vmatprep.subr.bf16.mxu0 0
    %3826 = vmatpush1.bf16.msra.mxu0 0
    %3827 = vmatprep.subr.bf16.mxu0 0
    %3828 = vmatpush1.bf16.msra.mxu0 0
    %3829 = vmatprep.subr.bf16.mxu0 0
    %3830 = vmatpush1.bf16.msra.mxu0 0
    %3831 = vmatprep.subr.bf16.mxu0 0
    %3832 = vmatpush1.bf16.msra.mxu0 0
    %3833 = vmatprep.subr.bf16.mxu0 0
    %3834 = vmatpush1.bf16.msra.mxu0 0
    %3835 = vmatprep.subr.bf16.mxu0 0
    %3836 = vmatpush1.bf16.msra.mxu0 0
    %3837 = vmatprep.subr.bf16.mxu0 0
    %3838 = vmatpush1.bf16.msra.mxu0 0
    %3839 = vmatprep.mubr.bf16.mxu0 0
    %3840 = vmatmul.mubr.bf16.gmra.mrb[0].mxu0 %v3735
    %v3841 = vpop.f32.mrb[0].mxu0
    %v3842 = vadd.f32 %v3757, %v3841
    %v3843 = vpop.f32.mrb[0].mxu0
    %v3844 = vpop.f32.mrb[0].mxu0
    %v3845 = vpop.f32.mrb[0].mxu0
    %3846 = vdwg.mxu0
    %3847 = vst [vmem:[%s17] sm:$0xff] %v3842
    // Predicated region
    $region108: #{rul_forward.1} parent=1 // pred_check
      _
    $region109: #{rul_forward.1} parent=1 // pred_check_branch
      %3849 = sbr.rel (0) target = $region111
    $region110: #{rul_forward.1} parent=1 // pred_region
      _
    $region111: #{rul_forward.1} parent=1 // pred_fallthru
      _
    // Predicated region
    $region112: #{rul_forward.1} parent=1 // pred_check
      _
    $region113: #{rul_forward.1} parent=1 // pred_check_branch
      %3851 = sbr.rel (0) target = $region115
    $region114: #{rul_forward.1} parent=1 // pred_region
      _
    $region115: #{rul_forward.1} parent=1 // pred_fallthru
      _
    %3852 = vsyncpa [#allocation5], 1
    %3853 = vsyncpa [#allocation7], 1
    %3854 = vsyncpa [#allocation10], 1
    %3855 = vsyncpa [#allocation13], 1

</llo_original>
